<compile_context>
chip_gen: v5e
topology: v5e:2x2
jax: 0.10.0
libtpu: 0.0.40
codegen_flags: <defaults>
</compile_context>

<pallas_src>
import math
import functools

import jax
import jax.numpy as jnp
from jax import lax
from jax.experimental import pallas as pl
from jax.experimental.pallas import tpu as pltpu


# ----------------------------------------------------------------------------
# Helpers
# ----------------------------------------------------------------------------
def _sublane_multiple(dtype):
    """Sublane pack for a dtype: 8 for f32, 16 for bf16, 32 for int8/fp8."""
    return max(8, 32 // jnp.dtype(dtype).itemsize)


def _pick_tile(dim, max_tile, align):
    """Largest divisor of `dim` that is <= max_tile and a multiple of `align`
    (or `dim` itself, which is always layout-legal)."""
    upper = min(dim, max_tile)
    for t in range(upper, 0, -1):
        if dim % t == 0 and (t % align == 0 or t == dim):
            return t
    return dim


def make_rotary(seq_len, head_dim, rope_theta):
    """Default (non-scaled) Llama rotary tables in f32: (S, D) each."""
    inv_freq = 1.0 / (
        rope_theta ** (jnp.arange(0, head_dim, 2, dtype=jnp.float32) / head_dim)
    )                                                       # (D/2,)
    pos = jnp.arange(seq_len, dtype=jnp.float32)            # (S,)
    freqs = pos[:, None] * inv_freq[None, :]                # (S, D/2)
    emb = jnp.concatenate([freqs, freqs], axis=-1)          # (S, D)
    return jnp.cos(emb), jnp.sin(emb)


def prepare_params(raw, dtype=jnp.float32):
    """One-time weight prep: transpose + fuse QKV along N (no per-call .T).
    `dtype` lets the whole layer run in bf16 (halved HBM traffic)."""
    w_qkv_t = jnp.concatenate(
        [raw["wq"].T, raw["wk"].T, raw["wv"].T], axis=1).astype(dtype)
    return {"w_qkv_t": w_qkv_t, "wo_t": jnp.asarray(raw["wo"].T).astype(dtype)}


def _swap_halves(x, head_dim):
    """[x1, x2] -> [x2, x1] along the last dim. The -1 sign of rotate_half is
    folded into the sin table on the host, so only a swap is needed here."""
    half = head_dim // 2
    if head_dim % 128 == 0:
        # lane-aligned: XLU rotate, no lane-crossing concatenate on the VPU path
        return pltpu.roll(x, half, axis=x.ndim - 1)
    # TODO(synk): head_dim < 128 falls back to a concatenate (masked lanes).
    return jnp.concatenate([x[..., half:], x[..., :half]], axis=-1)


# ----------------------------------------------------------------------------
# Tiled matmul kernel (QKV and o_proj projections)
# ----------------------------------------------------------------------------
def matmul_kernel(x_ref, w_ref, o_ref, acc_ref):
    @pl.when(pl.program_id(2) == 0)
    def _init():
        acc_ref[...] = jnp.zeros_like(acc_ref)

    acc_ref[...] += jnp.dot(
        x_ref[...], w_ref[...], preferred_element_type=jnp.float32)

    @pl.when(pl.program_id(2) == pl.num_programs(2) - 1)
    def _finalize():
        o_ref[...] = acc_ref[...].astype(o_ref.dtype)


def pallas_matmul(x, w, *, tm_max=512, tn_max=1024, tk_max=1024):
    """x: (M, K), w: (K, N) (already transposed from torch layout)."""
    M, K = x.shape
    K2, N = w.shape
    assert K == K2
    sub = _sublane_multiple(x.dtype)
    tm = _pick_tile(M, tm_max, sub)
    tn = _pick_tile(N, tn_max, 128)
    tk = _pick_tile(K, tk_max, 128)
    grid = (M // tm, N // tn, K // tk)
    cost = pl.CostEstimate(
        flops=2 * M * N * K,
        transcendentals=0,
        bytes_accessed=(M * K + K * N + M * N) * x.dtype.itemsize)
    return pl.pallas_call(
        matmul_kernel,
        out_shape=jax.ShapeDtypeStruct((M, N), x.dtype),
        grid_spec=pltpu.PrefetchScalarGridSpec(
            num_scalar_prefetch=0,
            grid=grid,
            in_specs=[
                pl.BlockSpec((tm, tk), lambda i, j, k: (i, k)),
                pl.BlockSpec((tk, tn), lambda i, j, k: (k, j)),
            ],
            out_specs=pl.BlockSpec((tm, tn), lambda i, j, k: (i, j)),
            scratch_shapes=[pltpu.VMEM((tm, tn), jnp.float32)]),
        compiler_params=pltpu.CompilerParams(
            dimension_semantics=("parallel", "parallel", "arbitrary"),
            vmem_limit_bytes=64 * 1024 * 1024),
        cost_estimate=cost,
    )(x, w)


# ----------------------------------------------------------------------------
# Flash-style causal attention with fused RoPE and GQA group packing
# ----------------------------------------------------------------------------
def flash_attn_kernel(q_ref, k_ref, v_ref, cos_q_ref, sin_q_ref,
                      cos_k_ref, sin_k_ref, o_ref, m_ref, l_ref, acc_ref,
                      *, sm_scale, groups, head_dim):
    qi = pl.program_id(2)
    ki = pl.program_id(3)
    nk = pl.num_programs(3)
    tq = q_ref.shape[1]
    tk = k_ref.shape[1]

    @pl.when(ki == 0)
    def _init():
        m_ref[...] = jnp.full(m_ref.shape, -jnp.inf, dtype=m_ref.dtype)
        l_ref[...] = jnp.zeros(l_ref.shape, dtype=l_ref.dtype)
        acc_ref[...] = jnp.zeros(acc_ref.shape, dtype=acc_ref.dtype)

    def _process(apply_mask):
        # RoPE on the K tile (recomputed per revisit: cheap VPU/XLU work traded
        # for removing a whole HBM pass of a standalone RoPE kernel).
        cos_k = cos_k_ref[...]
        sin_k = sin_k_ref[...]
        k = k_ref[0]                                               # (tk, hd)
        k = k * cos_k + _swap_halves(k, head_dim) * sin_k
        v = v_ref[0]                                               # (tk, hd)
        cos_q = cos_q_ref[...]
        sin_q = sin_q_ref[...]

        if apply_mask:
            # Only tiles straddling the diagonal pay for the mask.
            q_pos = qi * tq + lax.broadcasted_iota(jnp.int32, (tq, tk), 0)
            k_pos = ki * tk + lax.broadcasted_iota(jnp.int32, (tq, tk), 1)
            mask = q_pos >= k_pos

        # All query heads of this KV group share the K/V tile fetched above.
        for g in range(groups):
            q = q_ref[0, :, g * head_dim:(g + 1) * head_dim]       # (tq, hd)
            q = q * cos_q + _swap_halves(q, head_dim) * sin_q
            s = lax.dot_general(
                q, k, (((1,), (1,)), ((), ())),
                preferred_element_type=jnp.float32) * sm_scale     # (tq, tk)
            if apply_mask:
                s = jnp.where(mask, s, -1e30)

            # Online softmax. Safe: kv tile ki=0 is never skipped and never has
            # a fully-masked row (k=0 is always causal-valid), so m is finite
            # before any fully-masked row can occur.
            m_prev = m_ref[g]                                      # (tq, 1)
            m_new = jnp.maximum(m_prev, jnp.max(s, axis=-1, keepdims=True))
            alpha = jnp.exp(m_prev - m_new)
            p = jnp.exp(s - m_new)
            l_ref[g] = alpha * l_ref[g] + jnp.sum(p, axis=-1, keepdims=True)
            acc_ref[g] = alpha * acc_ref[g] + jnp.dot(
                p.astype(v.dtype), v, preferred_element_type=jnp.float32)
            m_ref[g] = m_new

    # Tile classification (all Python-int arithmetic on traced scalars).
    has_valid = ki * tk <= qi * tq + tq - 1    # not fully above the diagonal
    has_masked = ki * tk + tk - 1 > qi * tq    # straddles the diagonal

    @pl.when(jnp.logical_and(has_valid, has_masked))
    def _diag_tile():
        _process(apply_mask=True)

    @pl.when(jnp.logical_and(has_valid, jnp.logical_not(has_masked)))
    def _full_tile():
        _process(apply_mask=False)

    @pl.when(ki == nk - 1)
    def _finalize():
        for g in range(groups):
            # Exact divide; l > 0 for every row of full causal self-attention.
            o_ref[0, :, g * head_dim:(g + 1) * head_dim] = (
                acc_ref[g] / l_ref[g]).astype(o_ref.dtype)


def pallas_flash_attention(qkv, cos, sin_rot, *, num_heads, num_kv_heads,
                           head_dim, sm_scale, tq_max=512, tk_max=512):
    """qkv: (B, S, (nh + 2*nkv) * hd) in [Q heads | K heads | V heads] column
    order. cos/sin_rot: (S, hd) (sin_rot has rotate_half's sign folded in).
    Returns (B, S, nh*hd) — directly consumable by o_proj (no transpose)."""
    B, S, total = qkv.shape
    assert num_heads % num_kv_heads == 0
    groups = num_heads // num_kv_heads
    assert total == (num_heads + 2 * num_kv_heads) * head_dim
    nh, nkv = num_heads, num_kv_heads

    sub = _sublane_multiple(qkv.dtype)
    tq = _pick_tile(S, tq_max, sub)
    tk = _pick_tile(S, tk_max, sub)
    nq_t, nk_t = S // tq, S // tk
    grid = (B, nkv, nq_t, nk_t)

    # Q / output blocks: all heads of one KV group (columns g*groups*hd ...).
    def q_map(b, g, qi, ki):
        return (b, qi, g)

    # K/V (and their cos/sin) index_maps clamp ki so causally-skipped tiles do
    # not change the block index -> Pallas issues no DMA for them.
    def k_map(b, g, qi, ki):
        last = (qi * tq + tq - 1) // tk
        return (b, jnp.minimum(ki, last), nh + g)

    def v_map(b, g, qi, ki):
        last = (qi * tq + tq - 1) // tk
        return (b, jnp.minimum(ki, last), nh + nkv + g)

    def rope_q_map(b, g, qi, ki):
        return (qi, 0)

    def rope_k_map(b, g, qi, ki):
        last = (qi * tq + tq - 1) // tk
        return (jnp.minimum(ki, last), 0)

    kernel = functools.partial(flash_attn_kernel, sm_scale=sm_scale,
                               groups=groups, head_dim=head_dim)
    itemsize = qkv.dtype.itemsize
    cost = pl.CostEstimate(
        flops=2 * B * num_heads * S * S * head_dim,          # ~causal half
        transcendentals=B * num_heads * S * S // 2,
        bytes_accessed=int(
            B * S * num_heads * head_dim * itemsize * 2            # Q + out
            + B * S * 2 * nkv * head_dim * itemsize * max(1, nq_t // 2)))

    return pl.pallas_call(
        kernel,
        out_shape=jax.ShapeDtypeStruct((B, S, num_heads * head_dim), qkv.dtype),
        grid_spec=pltpu.PrefetchScalarGridSpec(
            num_scalar_prefetch=0,
            grid=grid,
            in_specs=[
                pl.BlockSpec((1, tq, groups * head_dim), q_map),   # Q window
                pl.BlockSpec((1, tk, head_dim), k_map),            # K window
                pl.BlockSpec((1, tk, head_dim), v_map),            # V window
                pl.BlockSpec((tq, head_dim), rope_q_map),          # cos (q rows)
                pl.BlockSpec((tq, head_dim), rope_q_map),          # sin (q rows)
                pl.BlockSpec((tk, head_dim), rope_k_map),          # cos (k rows)
                pl.BlockSpec((tk, head_dim), rope_k_map),          # sin (k rows)
            ],
            out_specs=pl.BlockSpec((1, tq, groups * head_dim),
                                   lambda b, g, qi, ki: (b, qi, g)),
            scratch_shapes=[
                pltpu.VMEM((groups, tq, 1), jnp.float32),          # running max
                pltpu.VMEM((groups, tq, 1), jnp.float32),          # running sum
                pltpu.VMEM((groups, tq, head_dim), jnp.float32),   # accumulator
            ]),
        compiler_params=pltpu.CompilerParams(
            dimension_semantics=("parallel", "parallel", "parallel",
                                 "arbitrary"),
            vmem_limit_bytes=64 * 1024 * 1024),
        cost_estimate=cost,
    )(qkv, qkv, qkv, cos, sin_rot, cos, sin_rot)


# ----------------------------------------------------------------------------
# LlamaAttention forward
# ----------------------------------------------------------------------------
def llama_attention_forward(hidden_states, params, cfg, *, tq_max=512,
                            tk_max=512):
    B, S, H = hidden_states.shape
    nh, nkv, hd = cfg["num_heads"], cfg["num_kv_heads"], cfg["head_dim"]
    M = B * S
    dtype = params["w_qkv_t"].dtype

    x2d = hidden_states.astype(dtype).reshape(M, H)

    # Fused QKV projection: one tiled matmul, one HBM pass over activations.
    qkv = pallas_matmul(x2d, params["w_qkv_t"])          # (M, (nh+2*nkv)*hd)
    qkv = qkv.reshape(B, S, (nh + 2 * nkv) * hd)         # free reshape

    # RoPE tables; rotate_half's sign folded into sin so the kernel only needs
    # a swap-halves (pltpu.roll) and two multiply-adds.
    cos, sin = make_rotary(S, hd, cfg["rope_theta"])
    half = hd // 2
    sin_rot = jnp.concatenate([-sin[:, :half], sin[:, half:]], axis=-1)
    cos = cos.astype(dtype)
    sin_rot = sin_rot.astype(dtype)

    # Flash attention with fused RoPE; output already in (B, S, nh*hd) layout.
    attn = pallas_flash_attention(
        qkv, cos, sin_rot,
        num_heads=nh, num_kv_heads=nkv, head_dim=hd,
        sm_scale=1.0 / math.sqrt(hd), tq_max=tq_max, tk_max=tk_max)

    out = pallas_matmul(attn.reshape(M, nh * hd), params["wo_t"])
    return out.reshape(B, S, H)


# ----------------------------------------------------------------------------
# Pure-JAX reference (mirrors the PyTorch forward) for a sanity check
# ----------------------------------------------------------------------------
def reference_forward(hidden_states, raw_params, cfg):
    B, S, H = hidden_states.shape
    nh, nkv, hd = cfg["num_heads"], cfg["num_kv_heads"], cfg["head_dim"]
    groups = nh // nkv

    q = hidden_states @ raw_params["wq"].T
    k = hidden_states @ raw_params["wk"].T
    v = hidden_states @ raw_params["wv"].T
    q = q.reshape(B, S, nh, hd).transpose(0, 2, 1, 3)
    k = k.reshape(B, S, nkv, hd).transpose(0, 2, 1, 3)
    v = v.reshape(B, S, nkv, hd).transpose(0, 2, 1, 3)

    cos, sin = make_rotary(S, hd, cfg["rope_theta"])
    cos_b, sin_b = cos[None, None], sin[None, None]

    def rot_half(x):
        x1, x2 = x[..., : hd // 2], x[..., hd // 2:]
        return jnp.concatenate([-x2, x1], axis=-1)

    q = q * cos_b + rot_half(q) * sin_b
    k = k * cos_b + rot_half(k) * sin_b

    k = jnp.repeat(k, groups, axis=1)
    v = jnp.repeat(v, groups, axis=1)

    scores = jnp.einsum("bhqd,bhkd->bhqk", q, k) / math.sqrt(hd)
    neg = jnp.finfo(jnp.float32).min
    causal = jnp.where(jnp.arange(S)[:, None] >= jnp.arange(S)[None, :], 0.0, neg)
    scores = scores + causal[None, None]
    probs = jax.nn.softmax(scores.astype(jnp.float32), axis=-1).astype(q.dtype)
    attn = jnp.einsum("bhqk,bhkd->bhqd", probs, v)
    attn = attn.transpose(0, 2, 1, 3).reshape(B, S, nh * hd)
    return attn @ raw_params["wo"].T


# ----------------------------------------------------------------------------
if __name__ == "__main__":
    cfg = dict(
        hidden_size=512,
        num_heads=4,
        num_kv_heads=2,          # GQA: num_key_value_groups = 2
        head_dim=128,            # native Llama head_dim -> lane-dense blocks
        rope_theta=10000.0,
        attention_dropout=0.0,   # eval: dropout is a no-op
    )
    B, S, H = 2, 64, cfg["hidden_size"]
    nh, nkv, hd = cfg["num_heads"], cfg["num_kv_heads"], cfg["head_dim"]

    key = jax.random.PRNGKey(0)
    k0, k1, k2, k3, k4 = jax.random.split(key, 5)
    raw_params = {
        # torch nn.Linear weight layout: (out_features, in_features), no bias.
        "wq": 0.02 * jax.random.normal(k0, (nh * hd, H), jnp.float32),
        "wk": 0.02 * jax.random.normal(k1, (nkv * hd, H), jnp.float32),
        "wv": 0.02 * jax.random.normal(k2, (nkv * hd, H), jnp.float32),
        "wo": 0.02 * jax.random.normal(k3, (H, H), jnp.float32),
    }
    hidden_states = jax.random.normal(k4, (B, S, H), jnp.float32)
    ref = reference_forward(hidden_states, raw_params, cfg)

    # f32 path (strict numerical check). Small tq/tk so that at this toy S=64
    # the kernel exercises all causal tile classes (skipped / diagonal / full).
    params = prepare_params(raw_params, jnp.float32)
    out = llama_attention_forward(hidden_states, params, cfg,
                                  tq_max=32, tk_max=32)
    out = jax.block_until_ready(out)
    assert out.shape == (B, S, H)
    assert bool(jnp.all(jnp.isfinite(out)))
    assert jnp.allclose(out, ref, rtol=1e-4, atol=1e-4), \
        f"f32 max err {jnp.max(jnp.abs(out - ref))}"

    # bf16 path (halved HBM traffic, native MXU dtype), f32 accumulation.
    params_bf16 = prepare_params(raw_params, jnp.bfloat16)
    out_bf16 = llama_attention_forward(hidden_states.astype(jnp.bfloat16),
                                       params_bf16, cfg,
                                       tq_max=32, tk_max=32)
    out_bf16 = jax.block_until_ready(out_bf16).astype(jnp.float32)
    assert bool(jnp.all(jnp.isfinite(out_bf16)))
    assert jnp.allclose(out_bf16, ref, rtol=1e-1, atol=5e-2), \
        f"bf16 max err {jnp.max(jnp.abs(out_bf16 - ref))}"

    print("KERNEL_OK")
</pallas_src>

<mosaic_0001>
module attributes {stable_mosaic.version = 11 : i64} {
  func.func @matmul_kernel(%arg0: i32, %arg1: i32, %arg2: i32, %arg3: memref<128x512xf32, #tpu.memory_space<vmem>>, %arg4: memref<512x1024xf32, #tpu.memory_space<vmem>>, %arg5: memref<128x1024xf32, #tpu.memory_space<vmem>>, %arg6: memref<128x1024xf32, #tpu.memory_space<vmem>>) attributes {dimension_semantics = [#tpu.dimension_semantics<parallel>, #tpu.dimension_semantics<parallel>, #tpu.dimension_semantics<arbitrary>], iteration_bounds = array<i64: 1, 1, 1>, scalar_prefetch = 0 : i64, scratch_operands = 1 : i64, tpu.core_type = #tpu.core_type<tc>, window_params = [{transform_indices = @transform_0, window_bounds = array<i64: 128, 512>}, {transform_indices = @transform_1, window_bounds = array<i64: 512, 1024>}, {transform_indices = @transform_2, window_bounds = array<i64: 128, 1024>}]} {
    %c0_i32 = arith.constant 0 : i32
    %0 = arith.cmpi eq, %arg2, %c0_i32 : i32
    %1 = arith.extui %0 : i1 to i32
    %c0_i32_0 = arith.constant 0 : i32
    %2 = arith.cmpi ne, %1, %c0_i32_0 : i32
    scf.if %2 {
      %cst_10 = arith.constant 0.000000e+00 : f32
      %12 = vector.broadcast %cst_10 : f32 to vector<128x1024xf32>
      %c0_11 = arith.constant 0 : index
      %c0_12 = arith.constant 0 : index
      %13 = vector.load %arg6[%c0_11, %c0_12] : memref<128x1024xf32, #tpu.memory_space<vmem>>, vector<128x1024xf32>
      tpu.vector_store %arg6[%c0_11, %c0_12], %12 {strides = array<i32>} : memref<128x1024xf32, #tpu.memory_space<vmem>>, vector<128x1024xf32>,
    } else {
    }
    %c0 = arith.constant 0 : index
    %c0_1 = arith.constant 0 : index
    %3 = vector.load %arg6[%c0, %c0_1] : memref<128x1024xf32, #tpu.memory_space<vmem>>, vector<128x1024xf32>
    %c0_2 = arith.constant 0 : index
    %c0_3 = arith.constant 0 : index
    %4 = vector.load %arg3[%c0_2, %c0_3] : memref<128x512xf32, #tpu.memory_space<vmem>>, vector<128x512xf32>
    %c0_4 = arith.constant 0 : index
    %c0_5 = arith.constant 0 : index
    %5 = vector.load %arg4[%c0_4, %c0_5] : memref<512x1024xf32, #tpu.memory_space<vmem>>, vector<512x1024xf32>
    %cst = arith.constant dense<0.000000e+00> : vector<128x1024xf32>
    %6 = tpu.matmul %4, %5, %cst {dimension_numbers = #tpu.dot_dimension_numbers<[1], [0], [0], [1], [0, 0, 1, 1], [], []>} : vector<128x512xf32>, vector<512x1024xf32>, vector<128x1024xf32> -> vector<128x1024xf32>
    %7 = arith.addf %3, %6 : vector<128x1024xf32>
    %c0_6 = arith.constant 0 : index
    %c0_7 = arith.constant 0 : index
    %8 = vector.load %arg6[%c0_6, %c0_7] : memref<128x1024xf32, #tpu.memory_space<vmem>>, vector<128x1024xf32>
    tpu.vector_store %arg6[%c0_6, %c0_7], %7 {strides = array<i32>} : memref<128x1024xf32, #tpu.memory_space<vmem>>, vector<128x1024xf32>,
    %c0_i32_8 = arith.constant 0 : i32
    %9 = arith.cmpi eq, %arg2, %c0_i32_8 : i32
    %10 = arith.extui %9 : i1 to i32
    %c0_i32_9 = arith.constant 0 : i32
    %11 = arith.cmpi ne, %10, %c0_i32_9 : i32
    scf.if %11 {
      %c0_10 = arith.constant 0 : index
      %c0_11 = arith.constant 0 : index
      %12 = vector.load %arg6[%c0_10, %c0_11] : memref<128x1024xf32, #tpu.memory_space<vmem>>, vector<128x1024xf32>
      %c0_12 = arith.constant 0 : index
      %c0_13 = arith.constant 0 : index
      %13 = vector.load %arg5[%c0_12, %c0_13] : memref<128x1024xf32, #tpu.memory_space<vmem>>, vector<128x1024xf32>
      tpu.vector_store %arg5[%c0_12, %c0_13], %12 {strides = array<i32>} : memref<128x1024xf32, #tpu.memory_space<vmem>>, vector<128x1024xf32>,
    } else {
    }
    return
  }
  func.func @transform_0(%arg0: i32, %arg1: i32, %arg2: i32) -> (i32, i32) {
    %c0_i32 = arith.constant 0 : i32
    return %arg0, %arg2 : i32, i32
  }
  func.func @transform_1(%arg0: i32, %arg1: i32, %arg2: i32) -> (i32, i32) {
    %c0_i32 = arith.constant 0 : i32
    return %arg2, %arg1 : i32, i32
  }
  func.func @transform_2(%arg0: i32, %arg1: i32, %arg2: i32) -> (i32, i32) {
    %c0_i32 = arith.constant 0 : i32
    return %arg0, %arg1 : i32, i32
  }
}

</mosaic_0001>

<llo_original>
// kernel: tpu_custom_call.1
$region0: #{tpu_custom_call.1}
  #allocation0 [shape = 'u32[]', space=smem, size = 0x4, offset = 0x4, fixed_abs, tag = 'smem constant byte address 0x4 - core index']
  #allocation1 [shape = 'u32[72,128]{1,0:T(1,128)}', space=vmem, size = 0x9000, scoped, tag = 'internal scratch']
  #allocation2 [shape = 'f32[128,1024]{1,0:T(8,128)}', space=vmem, size = 0x80000, scoped, tag = 'scratch operand']
  %s0 = inlined_call_operand.hbm [shape: f32[128,512], index: 0, kind: input, shape index: {}]
  %s1 = inlined_call_operand.hbm [shape: f32[512,1024], index: 1, kind: input, shape index: {}]
  %s2 = inlined_call_operand.hbm [shape: f32[128,1024], index: 2, kind: output, shape index: {}]
  %s3 = sld [smem:[#allocation0]]
  $region34: #{tpu_custom_call.1} parent=0
    _
  %s5 = ssub.s32 1, %s3
  %s6 = scalar_select 0, %s5, %s3
  $region1: #{tpu_custom_call.1} parent=0
    #allocation3 [shape = 'u8[262144]{0}', space=vmem, size = 0x40000, scoped, tag = 'input window, operand 0, single buffered']
    #allocation4 [shape = 's32[1]{0}', space=sflag, size = 0x4, scoped, tag = 'scoped memory for tpu_custom_call.1']
    #allocation5 [shape = 's32[1]{0}', space=sflag, size = 0x4, scoped, tag = 'scoped memory for tpu_custom_call.1']
    #allocation6 [shape = 'u8[2097152]{0}', space=vmem, size = 0x200000, scoped, tag = 'input window, operand 1, single buffered']
    #allocation7 [shape = 's32[1]{0}', space=sflag, size = 0x4, scoped, tag = 'scoped memory for tpu_custom_call.1']
    #allocation8 [shape = 'u8[524288]{0}', space=vmem, size = 0x80000, scoped, tag = 'output window, operand 0, single buffered']
    %7 = vsyncpa [#allocation4], 0
    %8 = vsyncpa [#allocation7], 0
    %9 = vsyncpa [#allocation5], 0
    // Predicated region
    $region2: #{tpu_custom_call.1} parent=1 // pred_check
      _
    $region3: #{tpu_custom_call.1} parent=1 // pred_check_branch
      %11 = sbr.rel (0) target = $region5
    $region4: #{tpu_custom_call.1} parent=1 // pred_region
      %13 = vsyncadd [#allocation4], 0
      %s14 = sshll.u32 %s0, 4
      %s15 = int_to_ptr.hbm [resolvable:$true] %s14
      %s16 = sshll.u32 [#allocation3], 4
      %s17 = int_to_ptr.vmem [resolvable:$true] %s16
      %22 = dma.hbm_to_vmem [thread:$0]  %s15, 8192, %s17, [#allocation4], 512, 512, 32
    $region5: #{tpu_custom_call.1} parent=1 // pred_fallthru
      _
    // Predicated region
    $region6: #{tpu_custom_call.1} parent=1 // pred_check
      _
    $region7: #{tpu_custom_call.1} parent=1 // pred_check_branch
      %24 = sbr.rel (0) target = $region9
    $region8: #{tpu_custom_call.1} parent=1 // pred_region
      %26 = vsyncadd [#allocation7], 0
      %s27 = sshll.u32 %s1, 4
      %s28 = int_to_ptr.hbm [resolvable:$true] %s27
      %s29 = sshll.u32 [#allocation6], 4
      %s30 = int_to_ptr.vmem [resolvable:$true] %s29
      %35 = dma.hbm_to_vmem [thread:$0]  %s28, 65536, %s30, [#allocation7], 1024, 1024, 64
    $region9: #{tpu_custom_call.1} parent=1 // pred_fallthru
      _
    // Predicated region
    $region10: #{tpu_custom_call.1} parent=1 // pred_check
      _
    $region11: #{tpu_custom_call.1} parent=1 // pred_check_branch
      %37 = sbr.rel (0) target = $region13
    $region12: #{tpu_custom_call.1} parent=1 // pred_region
      %39 = dma.done [#allocation4], 8192
    $region13: #{tpu_custom_call.1} parent=1 // pred_fallthru
      _
    // Predicated region
    $region14: #{tpu_custom_call.1} parent=1 // pred_check
      _
    $region15: #{tpu_custom_call.1} parent=1 // pred_check_branch
      %41 = sbr.rel (0) target = $region17
    $region16: #{tpu_custom_call.1} parent=1 // pred_region
      %43 = dma.done [#allocation7], 65536
    $region17: #{tpu_custom_call.1} parent=1 // pred_fallthru
      _
    %p44 = scmp.eq.s32.totalorder 0, 0
    // Predicated region
    $region18: #{tpu_custom_call.1} parent=1 // pred_check
      %p45 = pneg %p44
    $region19: #{tpu_custom_call.1} parent=1 // pred_check_branch
      %47 = sbr.rel (%p45) target = $region21
    $region20: #{tpu_custom_call.1} parent=1 // pred_region
      %48 = vst [vmem:[#allocation2] sm:$0xff] 0.0
      %49 = vst [vmem:[#allocation2 + $0x8] sm:$0xff] 0.0
      %50 = vst [vmem:[#allocation2 + $0x10] sm:$0xff] 0.0
      %51 = vst [vmem:[#allocation2 + $0x18] sm:$0xff] 0.0
      %52 = vst [vmem:[#allocation2 + $0x20] sm:$0xff] 0.0
      %53 = vst [vmem:[#allocation2 + $0x28] sm:$0xff] 0.0
      %54 = vst [vmem:[#allocation2 + $0x30] sm:$0xff] 0.0
      %55 = vst [vmem:[#allocation2 + $0x38] sm:$0xff] 0.0
      %56 = vst [vmem:[#allocation2 + $0x40] sm:$0xff] 0.0
      %57 = vst [vmem:[#allocation2 + $0x48] sm:$0xff] 0.0
      %58 = vst [vmem:[#allocation2 + $0x50] sm:$0xff] 0.0
      %59 = vst [vmem:[#allocation2 + $0x58] sm:$0xff] 0.0
      %60 = vst [vmem:[#allocation2 + $0x60] sm:$0xff] 0.0
      %61 = vst [vmem:[#allocation2 + $0x68] sm:$0xff] 0.0
      %62 = vst [vmem:[#allocation2 + $0x70] sm:$0xff] 0.0
      %63 = vst [vmem:[#allocation2 + $0x78] sm:$0xff] 0.0
      %64 = vst [vmem:[#allocation2 + $0x80] sm:$0xff] 0.0
      %65 = vst [vmem:[#allocation2 + $0x88] sm:$0xff] 0.0
      %66 = vst [vmem:[#allocation2 + $0x90] sm:$0xff] 0.0
      %67 = vst [vmem:[#allocation2 + $0x98] sm:$0xff] 0.0
      %68 = vst [vmem:[#allocation2 + $0xa0] sm:$0xff] 0.0
      %69 = vst [vmem:[#allocation2 + $0xa8] sm:$0xff] 0.0
      %70 = vst [vmem:[#allocation2 + $0xb0] sm:$0xff] 0.0
      %71 = vst [vmem:[#allocation2 + $0xb8] sm:$0xff] 0.0
      %72 = vst [vmem:[#allocation2 + $0xc0] sm:$0xff] 0.0
      %73 = vst [vmem:[#allocation2 + $0xc8] sm:$0xff] 0.0
      %74 = vst [vmem:[#allocation2 + $0xd0] sm:$0xff] 0.0
      %75 = vst [vmem:[#allocation2 + $0xd8] sm:$0xff] 0.0
      %76 = vst [vmem:[#allocation2 + $0xe0] sm:$0xff] 0.0
      %77 = vst [vmem:[#allocation2 + $0xe8] sm:$0xff] 0.0
      %78 = vst [vmem:[#allocation2 + $0xf0] sm:$0xff] 0.0
      %79 = vst [vmem:[#allocation2 + $0xf8] sm:$0xff] 0.0
      %80 = vst [vmem:[#allocation2 + $0x100] sm:$0xff] 0.0
      %81 = vst [vmem:[#allocation2 + $0x108] sm:$0xff] 0.0
      %82 = vst [vmem:[#allocation2 + $0x110] sm:$0xff] 0.0
      %83 = vst [vmem:[#allocation2 + $0x118] sm:$0xff] 0.0
      %84 = vst [vmem:[#allocation2 + $0x120] sm:$0xff] 0.0
      %85 = vst [vmem:[#allocation2 + $0x128] sm:$0xff] 0.0
      %86 = vst [vmem:[#allocation2 + $0x130] sm:$0xff] 0.0
      %87 = vst [vmem:[#allocation2 + $0x138] sm:$0xff] 0.0
      %88 = vst [vmem:[#allocation2 + $0x140] sm:$0xff] 0.0
      %89 = vst [vmem:[#allocation2 + $0x148] sm:$0xff] 0.0
      %90 = vst [vmem:[#allocation2 + $0x150] sm:$0xff] 0.0
      %91 = vst [vmem:[#allocation2 + $0x158] sm:$0xff] 0.0
      %92 = vst [vmem:[#allocation2 + $0x160] sm:$0xff] 0.0
      %93 = vst [vmem:[#allocation2 + $0x168] sm:$0xff] 0.0
      %94 = vst [vmem:[#allocation2 + $0x170] sm:$0xff] 0.0
      %95 = vst [vmem:[#allocation2 + $0x178] sm:$0xff] 0.0
      %96 = vst [vmem:[#allocation2 + $0x180] sm:$0xff] 0.0
      %97 = vst [vmem:[#allocation2 + $0x188] sm:$0xff] 0.0
      %98 = vst [vmem:[#allocation2 + $0x190] sm:$0xff] 0.0
      %99 = vst [vmem:[#allocation2 + $0x198] sm:$0xff] 0.0
      %100 = vst [vmem:[#allocation2 + $0x1a0] sm:$0xff] 0.0
      %101 = vst [vmem:[#allocation2 + $0x1a8] sm:$0xff] 0.0
      %102 = vst [vmem:[#allocation2 + $0x1b0] sm:$0xff] 0.0
      %103 = vst [vmem:[#allocation2 + $0x1b8] sm:$0xff] 0.0
      %104 = vst [vmem:[#allocation2 + $0x1c0] sm:$0xff] 0.0
      %105 = vst [vmem:[#allocation2 + $0x1c8] sm:$0xff] 0.0
      %106 = vst [vmem:[#allocation2 + $0x1d0] sm:$0xff] 0.0
      %107 = vst [vmem:[#allocation2 + $0x1d8] sm:$0xff] 0.0
      %108 = vst [vmem:[#allocation2 + $0x1e0] sm:$0xff] 0.0
      %109 = vst [vmem:[#allocation2 + $0x1e8] sm:$0xff] 0.0
      %110 = vst [vmem:[#allocation2 + $0x1f0] sm:$0xff] 0.0
      %111 = vst [vmem:[#allocation2 + $0x1f8] sm:$0xff] 0.0
      %112 = vst [vmem:[#allocation2 + $0x200] sm:$0xff] 0.0
      %113 = vst [vmem:[#allocation2 + $0x208] sm:$0xff] 0.0
      %114 = vst [vmem:[#allocation2 + $0x210] sm:$0xff] 0.0
      %115 = vst [vmem:[#allocation2 + $0x218] sm:$0xff] 0.0
      %116 = vst [vmem:[#allocation2 + $0x220] sm:$0xff] 0.0
      %117 = vst [vmem:[#allocation2 + $0x228] sm:$0xff] 0.0
      %118 = vst [vmem:[#allocation2 + $0x230] sm:$0xff] 0.0
      %119 = vst [vmem:[#allocation2 + $0x238] sm:$0xff] 0.0
      %120 = vst [vmem:[#allocation2 + $0x240] sm:$0xff] 0.0
      %121 = vst [vmem:[#allocation2 + $0x248] sm:$0xff] 0.0
      %122 = vst [vmem:[#allocation2 + $0x250] sm:$0xff] 0.0
      %123 = vst [vmem:[#allocation2 + $0x258] sm:$0xff] 0.0
      %124 = vst [vmem:[#allocation2 + $0x260] sm:$0xff] 0.0
      %125 = vst [vmem:[#allocation2 + $0x268] sm:$0xff] 0.0
      %126 = vst [vmem:[#allocation2 + $0x270] sm:$0xff] 0.0
      %127 = vst [vmem:[#allocation2 + $0x278] sm:$0xff] 0.0
      %128 = vst [vmem:[#allocation2 + $0x280] sm:$0xff] 0.0
      %129 = vst [vmem:[#allocation2 + $0x288] sm:$0xff] 0.0
      %130 = vst [vmem:[#allocation2 + $0x290] sm:$0xff] 0.0
      %131 = vst [vmem:[#allocation2 + $0x298] sm:$0xff] 0.0
      %132 = vst [vmem:[#allocation2 + $0x2a0] sm:$0xff] 0.0
      %133 = vst [vmem:[#allocation2 + $0x2a8] sm:$0xff] 0.0
      %134 = vst [vmem:[#allocation2 + $0x2b0] sm:$0xff] 0.0
      %135 = vst [vmem:[#allocation2 + $0x2b8] sm:$0xff] 0.0
      %136 = vst [vmem:[#allocation2 + $0x2c0] sm:$0xff] 0.0
      %137 = vst [vmem:[#allocation2 + $0x2c8] sm:$0xff] 0.0
      %138 = vst [vmem:[#allocation2 + $0x2d0] sm:$0xff] 0.0
      %139 = vst [vmem:[#allocation2 + $0x2d8] sm:$0xff] 0.0
      %140 = vst [vmem:[#allocation2 + $0x2e0] sm:$0xff] 0.0
      %141 = vst [vmem:[#allocation2 + $0x2e8] sm:$0xff] 0.0
      %142 = vst [vmem:[#allocation2 + $0x2f0] sm:$0xff] 0.0
      %143 = vst [vmem:[#allocation2 + $0x2f8] sm:$0xff] 0.0
      %144 = vst [vmem:[#allocation2 + $0x300] sm:$0xff] 0.0
      %145 = vst [vmem:[#allocation2 + $0x308] sm:$0xff] 0.0
      %146 = vst [vmem:[#allocation2 + $0x310] sm:$0xff] 0.0
      %147 = vst [vmem:[#allocation2 + $0x318] sm:$0xff] 0.0
      %148 = vst [vmem:[#allocation2 + $0x320] sm:$0xff] 0.0
      %149 = vst [vmem:[#allocation2 + $0x328] sm:$0xff] 0.0
      %150 = vst [vmem:[#allocation2 + $0x330] sm:$0xff] 0.0
      %151 = vst [vmem:[#allocation2 + $0x338] sm:$0xff] 0.0
      %152 = vst [vmem:[#allocation2 + $0x340] sm:$0xff] 0.0
      %153 = vst [vmem:[#allocation2 + $0x348] sm:$0xff] 0.0
      %154 = vst [vmem:[#allocation2 + $0x350] sm:$0xff] 0.0
      %155 = vst [vmem:[#allocation2 + $0x358] sm:$0xff] 0.0
      %156 = vst [vmem:[#allocation2 + $0x360] sm:$0xff] 0.0
      %157 = vst [vmem:[#allocation2 + $0x368] sm:$0xff] 0.0
      %158 = vst [vmem:[#allocation2 + $0x370] sm:$0xff] 0.0
      %159 = vst [vmem:[#allocation2 + $0x378] sm:$0xff] 0.0
      %160 = vst [vmem:[#allocation2 + $0x380] sm:$0xff] 0.0
      %161 = vst [vmem:[#allocation2 + $0x388] sm:$0xff] 0.0
      %162 = vst [vmem:[#allocation2 + $0x390] sm:$0xff] 0.0
      %163 = vst [vmem:[#allocation2 + $0x398] sm:$0xff] 0.0
      %164 = vst [vmem:[#allocation2 + $0x3a0] sm:$0xff] 0.0
      %165 = vst [vmem:[#allocation2 + $0x3a8] sm:$0xff] 0.0
      %166 = vst [vmem:[#allocation2 + $0x3b0] sm:$0xff] 0.0
      %167 = vst [vmem:[#allocation2 + $0x3b8] sm:$0xff] 0.0
      %168 = vst [vmem:[#allocation2 + $0x3c0] sm:$0xff] 0.0
      %169 = vst [vmem:[#allocation2 + $0x3c8] sm:$0xff] 0.0
      %170 = vst [vmem:[#allocation2 + $0x3d0] sm:$0xff] 0.0
      %171 = vst [vmem:[#allocation2 + $0x3d8] sm:$0xff] 0.0
      %172 = vst [vmem:[#allocation2 + $0x3e0] sm:$0xff] 0.0
      %173 = vst [vmem:[#allocation2 + $0x3e8] sm:$0xff] 0.0
      %174 = vst [vmem:[#allocation2 + $0x3f0] sm:$0xff] 0.0
      %175 = vst [vmem:[#allocation2 + $0x3f8] sm:$0xff] 0.0
    $region21: #{tpu_custom_call.1} parent=1 // pred_fallthru
      _
    %v176 = vld [vmem:[#allocation2] sm:$0xff]
    %v177 = vld [vmem:[#allocation2 + $0x8] sm:$0xff]
    %v178 = vld [vmem:[#allocation2 + $0x10] sm:$0xff]
    %v179 = vld [vmem:[#allocation2 + $0x18] sm:$0xff]
    %v180 = vld [vmem:[#allocation2 + $0x20] sm:$0xff]
    %v181 = vld [vmem:[#allocation2 + $0x28] sm:$0xff]
    %v182 = vld [vmem:[#allocation2 + $0x30] sm:$0xff]
    %v183 = vld [vmem:[#allocation2 + $0x38] sm:$0xff]
    %v184 = vld [vmem:[#allocation2 + $0x40] sm:$0xff]
    %v185 = vld [vmem:[#allocation2 + $0x48] sm:$0xff]
    %v186 = vld [vmem:[#allocation2 + $0x50] sm:$0xff]
    %v187 = vld [vmem:[#allocation2 + $0x58] sm:$0xff]
    %v188 = vld [vmem:[#allocation2 + $0x60] sm:$0xff]
    %v189 = vld [vmem:[#allocation2 + $0x68] sm:$0xff]
    %v190 = vld [vmem:[#allocation2 + $0x70] sm:$0xff]
    %v191 = vld [vmem:[#allocation2 + $0x78] sm:$0xff]
    %v192 = vld [vmem:[#allocation2 + $0x80] sm:$0xff]
    %v193 = vld [vmem:[#allocation2 + $0x88] sm:$0xff]
    %v194 = vld [vmem:[#allocation2 + $0x90] sm:$0xff]
    %v195 = vld [vmem:[#allocation2 + $0x98] sm:$0xff]
    %v196 = vld [vmem:[#allocation2 + $0xa0] sm:$0xff]
    %v197 = vld [vmem:[#allocation2 + $0xa8] sm:$0xff]
    %v198 = vld [vmem:[#allocation2 + $0xb0] sm:$0xff]
    %v199 = vld [vmem:[#allocation2 + $0xb8] sm:$0xff]
    %v200 = vld [vmem:[#allocation2 + $0xc0] sm:$0xff]
    %v201 = vld [vmem:[#allocation2 + $0xc8] sm:$0xff]
    %v202 = vld [vmem:[#allocation2 + $0xd0] sm:$0xff]
    %v203 = vld [vmem:[#allocation2 + $0xd8] sm:$0xff]
    %v204 = vld [vmem:[#allocation2 + $0xe0] sm:$0xff]
    %v205 = vld [vmem:[#allocation2 + $0xe8] sm:$0xff]
    %v206 = vld [vmem:[#allocation2 + $0xf0] sm:$0xff]
    %v207 = vld [vmem:[#allocation2 + $0xf8] sm:$0xff]
    %v208 = vld [vmem:[#allocation2 + $0x100] sm:$0xff]
    %v209 = vld [vmem:[#allocation2 + $0x108] sm:$0xff]
    %v210 = vld [vmem:[#allocation2 + $0x110] sm:$0xff]
    %v211 = vld [vmem:[#allocation2 + $0x118] sm:$0xff]
    %v212 = vld [vmem:[#allocation2 + $0x120] sm:$0xff]
    %v213 = vld [vmem:[#allocation2 + $0x128] sm:$0xff]
    %v214 = vld [vmem:[#allocation2 + $0x130] sm:$0xff]
    %v215 = vld [vmem:[#allocation2 + $0x138] sm:$0xff]
    %v216 = vld [vmem:[#allocation2 + $0x140] sm:$0xff]
    %v217 = vld [vmem:[#allocation2 + $0x148] sm:$0xff]
    %v218 = vld [vmem:[#allocation2 + $0x150] sm:$0xff]
    %v219 = vld [vmem:[#allocation2 + $0x158] sm:$0xff]
    %v220 = vld [vmem:[#allocation2 + $0x160] sm:$0xff]
    %v221 = vld [vmem:[#allocation2 + $0x168] sm:$0xff]
    %v222 = vld [vmem:[#allocation2 + $0x170] sm:$0xff]
    %v223 = vld [vmem:[#allocation2 + $0x178] sm:$0xff]
    %v224 = vld [vmem:[#allocation2 + $0x180] sm:$0xff]
    %v225 = vld [vmem:[#allocation2 + $0x188] sm:$0xff]
    %v226 = vld [vmem:[#allocation2 + $0x190] sm:$0xff]
    %v227 = vld [vmem:[#allocation2 + $0x198] sm:$0xff]
    %v228 = vld [vmem:[#allocation2 + $0x1a0] sm:$0xff]
    %v229 = vld [vmem:[#allocation2 + $0x1a8] sm:$0xff]
    %v230 = vld [vmem:[#allocation2 + $0x1b0] sm:$0xff]
    %v231 = vld [vmem:[#allocation2 + $0x1b8] sm:$0xff]
    %v232 = vld [vmem:[#allocation2 + $0x1c0] sm:$0xff]
    %v233 = vld [vmem:[#allocation2 + $0x1c8] sm:$0xff]
    %v234 = vld [vmem:[#allocation2 + $0x1d0] sm:$0xff]
    %v235 = vld [vmem:[#allocation2 + $0x1d8] sm:$0xff]
    %v236 = vld [vmem:[#allocation2 + $0x1e0] sm:$0xff]
    %v237 = vld [vmem:[#allocation2 + $0x1e8] sm:$0xff]
    %v238 = vld [vmem:[#allocation2 + $0x1f0] sm:$0xff]
    %v239 = vld [vmem:[#allocation2 + $0x1f8] sm:$0xff]
    %v240 = vld [vmem:[#allocation2 + $0x200] sm:$0xff]
    %v241 = vld [vmem:[#allocation2 + $0x208] sm:$0xff]
    %v242 = vld [vmem:[#allocation2 + $0x210] sm:$0xff]
    %v243 = vld [vmem:[#allocation2 + $0x218] sm:$0xff]
    %v244 = vld [vmem:[#allocation2 + $0x220] sm:$0xff]
    %v245 = vld [vmem:[#allocation2 + $0x228] sm:$0xff]
    %v246 = vld [vmem:[#allocation2 + $0x230] sm:$0xff]
    %v247 = vld [vmem:[#allocation2 + $0x238] sm:$0xff]
    %v248 = vld [vmem:[#allocation2 + $0x240] sm:$0xff]
    %v249 = vld [vmem:[#allocation2 + $0x248] sm:$0xff]
    %v250 = vld [vmem:[#allocation2 + $0x250] sm:$0xff]
    %v251 = vld [vmem:[#allocation2 + $0x258] sm:$0xff]
    %v252 = vld [vmem:[#allocation2 + $0x260] sm:$0xff]
    %v253 = vld [vmem:[#allocation2 + $0x268] sm:$0xff]
    %v254 = vld [vmem:[#allocation2 + $0x270] sm:$0xff]
    %v255 = vld [vmem:[#allocation2 + $0x278] sm:$0xff]
    %v256 = vld [vmem:[#allocation2 + $0x280] sm:$0xff]
    %v257 = vld [vmem:[#allocation2 + $0x288] sm:$0xff]
    %v258 = vld [vmem:[#allocation2 + $0x290] sm:$0xff]
    %v259 = vld [vmem:[#allocation2 + $0x298] sm:$0xff]
    %v260 = vld [vmem:[#allocation2 + $0x2a0] sm:$0xff]
    %v261 = vld [vmem:[#allocation2 + $0x2a8] sm:$0xff]
    %v262 = vld [vmem:[#allocation2 + $0x2b0] sm:$0xff]
    %v263 = vld [vmem:[#allocation2 + $0x2b8] sm:$0xff]
    %v264 = vld [vmem:[#allocation2 + $0x2c0] sm:$0xff]
    %v265 = vld [vmem:[#allocation2 + $0x2c8] sm:$0xff]
    %v266 = vld [vmem:[#allocation2 + $0x2d0] sm:$0xff]
    %v267 = vld [vmem:[#allocation2 + $0x2d8] sm:$0xff]
    %v268 = vld [vmem:[#allocation2 + $0x2e0] sm:$0xff]
    %v269 = vld [vmem:[#allocation2 + $0x2e8] sm:$0xff]
    %v270 = vld [vmem:[#allocation2 + $0x2f0] sm:$0xff]
    %v271 = vld [vmem:[#allocation2 + $0x2f8] sm:$0xff]
    %v272 = vld [vmem:[#allocation2 + $0x300] sm:$0xff]
    %v273 = vld [vmem:[#allocation2 + $0x308] sm:$0xff]
    %v274 = vld [vmem:[#allocation2 + $0x310] sm:$0xff]
    %v275 = vld [vmem:[#allocation2 + $0x318] sm:$0xff]
    %v276 = vld [vmem:[#allocation2 + $0x320] sm:$0xff]
    %v277 = vld [vmem:[#allocation2 + $0x328] sm:$0xff]
    %v278 = vld [vmem:[#allocation2 + $0x330] sm:$0xff]
    %v279 = vld [vmem:[#allocation2 + $0x338] sm:$0xff]
    %v280 = vld [vmem:[#allocation2 + $0x340] sm:$0xff]
    %v281 = vld [vmem:[#allocation2 + $0x348] sm:$0xff]
    %v282 = vld [vmem:[#allocation2 + $0x350] sm:$0xff]
    %v283 = vld [vmem:[#allocation2 + $0x358] sm:$0xff]
    %v284 = vld [vmem:[#allocation2 + $0x360] sm:$0xff]
    %v285 = vld [vmem:[#allocation2 + $0x368] sm:$0xff]
    %v286 = vld [vmem:[#allocation2 + $0x370] sm:$0xff]
    %v287 = vld [vmem:[#allocation2 + $0x378] sm:$0xff]
    %v288 = vld [vmem:[#allocation2 + $0x380] sm:$0xff]
    %v289 = vld [vmem:[#allocation2 + $0x388] sm:$0xff]
    %v290 = vld [vmem:[#allocation2 + $0x390] sm:$0xff]
    %v291 = vld [vmem:[#allocation2 + $0x398] sm:$0xff]
    %v292 = vld [vmem:[#allocation2 + $0x3a0] sm:$0xff]
    %v293 = vld [vmem:[#allocation2 + $0x3a8] sm:$0xff]
    %v294 = vld [vmem:[#allocation2 + $0x3b0] sm:$0xff]
    %v295 = vld [vmem:[#allocation2 + $0x3b8] sm:$0xff]
    %v296 = vld [vmem:[#allocation2 + $0x3c0] sm:$0xff]
    %v297 = vld [vmem:[#allocation2 + $0x3c8] sm:$0xff]
    %v298 = vld [vmem:[#allocation2 + $0x3d0] sm:$0xff]
    %v299 = vld [vmem:[#allocation2 + $0x3d8] sm:$0xff]
    %v300 = vld [vmem:[#allocation2 + $0x3e0] sm:$0xff]
    %v301 = vld [vmem:[#allocation2 + $0x3e8] sm:$0xff]
    %v302 = vld [vmem:[#allocation2 + $0x3f0] sm:$0xff]
    %v303 = vld [vmem:[#allocation2 + $0x3f8] sm:$0xff]
    %v304 = vld [vmem:[#allocation3] sm:$0xff]
    %v305 = vld [vmem:[#allocation3 + $0x8] sm:$0xff]
    %v306 = vld [vmem:[#allocation3 + $0x10] sm:$0xff]
    %v307 = vld [vmem:[#allocation3 + $0x18] sm:$0xff]
    %v308 = vld [vmem:[#allocation3 + $0x20] sm:$0xff]
    %v309 = vld [vmem:[#allocation3 + $0x28] sm:$0xff]
    %v310 = vld [vmem:[#allocation3 + $0x30] sm:$0xff]
    %v311 = vld [vmem:[#allocation3 + $0x38] sm:$0xff]
    %v312 = vld [vmem:[#allocation3 + $0x40] sm:$0xff]
    %v313 = vld [vmem:[#allocation3 + $0x48] sm:$0xff]
    %v314 = vld [vmem:[#allocation3 + $0x50] sm:$0xff]
    %v315 = vld [vmem:[#allocation3 + $0x58] sm:$0xff]
    %v316 = vld [vmem:[#allocation3 + $0x60] sm:$0xff]
    %v317 = vld [vmem:[#allocation3 + $0x68] sm:$0xff]
    %v318 = vld [vmem:[#allocation3 + $0x70] sm:$0xff]
    %v319 = vld [vmem:[#allocation3 + $0x78] sm:$0xff]
    %v320 = vld [vmem:[#allocation3 + $0x80] sm:$0xff]
    %v321 = vld [vmem:[#allocation3 + $0x88] sm:$0xff]
    %v322 = vld [vmem:[#allocation3 + $0x90] sm:$0xff]
    %v323 = vld [vmem:[#allocation3 + $0x98] sm:$0xff]
    %v324 = vld [vmem:[#allocation3 + $0xa0] sm:$0xff]
    %v325 = vld [vmem:[#allocation3 + $0xa8] sm:$0xff]
    %v326 = vld [vmem:[#allocation3 + $0xb0] sm:$0xff]
    %v327 = vld [vmem:[#allocation3 + $0xb8] sm:$0xff]
    %v328 = vld [vmem:[#allocation3 + $0xc0] sm:$0xff]
    %v329 = vld [vmem:[#allocation3 + $0xc8] sm:$0xff]
    %v330 = vld [vmem:[#allocation3 + $0xd0] sm:$0xff]
    %v331 = vld [vmem:[#allocation3 + $0xd8] sm:$0xff]
    %v332 = vld [vmem:[#allocation3 + $0xe0] sm:$0xff]
    %v333 = vld [vmem:[#allocation3 + $0xe8] sm:$0xff]
    %v334 = vld [vmem:[#allocation3 + $0xf0] sm:$0xff]
    %v335 = vld [vmem:[#allocation3 + $0xf8] sm:$0xff]
    %v336 = vld [vmem:[#allocation3 + $0x100] sm:$0xff]
    %v337 = vld [vmem:[#allocation3 + $0x108] sm:$0xff]
    %v338 = vld [vmem:[#allocation3 + $0x110] sm:$0xff]
    %v339 = vld [vmem:[#allocation3 + $0x118] sm:$0xff]
    %v340 = vld [vmem:[#allocation3 + $0x120] sm:$0xff]
    %v341 = vld [vmem:[#allocation3 + $0x128] sm:$0xff]
    %v342 = vld [vmem:[#allocation3 + $0x130] sm:$0xff]
    %v343 = vld [vmem:[#allocation3 + $0x138] sm:$0xff]
    %v344 = vld [vmem:[#allocation3 + $0x140] sm:$0xff]
    %v345 = vld [vmem:[#allocation3 + $0x148] sm:$0xff]
    %v346 = vld [vmem:[#allocation3 + $0x150] sm:$0xff]
    %v347 = vld [vmem:[#allocation3 + $0x158] sm:$0xff]
    %v348 = vld [vmem:[#allocation3 + $0x160] sm:$0xff]
    %v349 = vld [vmem:[#allocation3 + $0x168] sm:$0xff]
    %v350 = vld [vmem:[#allocation3 + $0x170] sm:$0xff]
    %v351 = vld [vmem:[#allocation3 + $0x178] sm:$0xff]
    %v352 = vld [vmem:[#allocation3 + $0x180] sm:$0xff]
    %v353 = vld [vmem:[#allocation3 + $0x188] sm:$0xff]
    %v354 = vld [vmem:[#allocation3 + $0x190] sm:$0xff]
    %v355 = vld [vmem:[#allocation3 + $0x198] sm:$0xff]
    %v356 = vld [vmem:[#allocation3 + $0x1a0] sm:$0xff]
    %v357 = vld [vmem:[#allocation3 + $0x1a8] sm:$0xff]
    %v358 = vld [vmem:[#allocation3 + $0x1b0] sm:$0xff]
    %v359 = vld [vmem:[#allocation3 + $0x1b8] sm:$0xff]
    %v360 = vld [vmem:[#allocation3 + $0x1c0] sm:$0xff]
    %v361 = vld [vmem:[#allocation3 + $0x1c8] sm:$0xff]
    %v362 = vld [vmem:[#allocation3 + $0x1d0] sm:$0xff]
    %v363 = vld [vmem:[#allocation3 + $0x1d8] sm:$0xff]
    %v364 = vld [vmem:[#allocation3 + $0x1e0] sm:$0xff]
    %v365 = vld [vmem:[#allocation3 + $0x1e8] sm:$0xff]
    %v366 = vld [vmem:[#allocation3 + $0x1f0] sm:$0xff]
    %v367 = vld [vmem:[#allocation3 + $0x1f8] sm:$0xff]
    %v368 = vld [vmem:[#allocation6] sm:$0xff]
    %v369 = vld [vmem:[#allocation6 + $0x8] sm:$0xff]
    %v370 = vld [vmem:[#allocation6 + $0x10] sm:$0xff]
    %v371 = vld [vmem:[#allocation6 + $0x18] sm:$0xff]
    %v372 = vld [vmem:[#allocation6 + $0x20] sm:$0xff]
    %v373 = vld [vmem:[#allocation6 + $0x28] sm:$0xff]
    %v374 = vld [vmem:[#allocation6 + $0x30] sm:$0xff]
    %v375 = vld [vmem:[#allocation6 + $0x38] sm:$0xff]
    %v376 = vld [vmem:[#allocation6 + $0x40] sm:$0xff]
    %v377 = vld [vmem:[#allocation6 + $0x48] sm:$0xff]
    %v378 = vld [vmem:[#allocation6 + $0x50] sm:$0xff]
    %v379 = vld [vmem:[#allocation6 + $0x58] sm:$0xff]
    %v380 = vld [vmem:[#allocation6 + $0x60] sm:$0xff]
    %v381 = vld [vmem:[#allocation6 + $0x68] sm:$0xff]
    %v382 = vld [vmem:[#allocation6 + $0x70] sm:$0xff]
    %v383 = vld [vmem:[#allocation6 + $0x78] sm:$0xff]
    %v384 = vld [vmem:[#allocation6 + $0x80] sm:$0xff]
    %v385 = vld [vmem:[#allocation6 + $0x88] sm:$0xff]
    %v386 = vld [vmem:[#allocation6 + $0x90] sm:$0xff]
    %v387 = vld [vmem:[#allocation6 + $0x98] sm:$0xff]
    %v388 = vld [vmem:[#allocation6 + $0xa0] sm:$0xff]
    %v389 = vld [vmem:[#allocation6 + $0xa8] sm:$0xff]
    %v390 = vld [vmem:[#allocation6 + $0xb0] sm:$0xff]
    %v391 = vld [vmem:[#allocation6 + $0xb8] sm:$0xff]
    %v392 = vld [vmem:[#allocation6 + $0xc0] sm:$0xff]
    %v393 = vld [vmem:[#allocation6 + $0xc8] sm:$0xff]
    %v394 = vld [vmem:[#allocation6 + $0xd0] sm:$0xff]
    %v395 = vld [vmem:[#allocation6 + $0xd8] sm:$0xff]
    %v396 = vld [vmem:[#allocation6 + $0xe0] sm:$0xff]
    %v397 = vld [vmem:[#allocation6 + $0xe8] sm:$0xff]
    %v398 = vld [vmem:[#allocation6 + $0xf0] sm:$0xff]
    %v399 = vld [vmem:[#allocation6 + $0xf8] sm:$0xff]
    %v400 = vld [vmem:[#allocation6 + $0x100] sm:$0xff]
    %v401 = vld [vmem:[#allocation6 + $0x108] sm:$0xff]
    %v402 = vld [vmem:[#allocation6 + $0x110] sm:$0xff]
    %v403 = vld [vmem:[#allocation6 + $0x118] sm:$0xff]
    %v404 = vld [vmem:[#allocation6 + $0x120] sm:$0xff]
    %v405 = vld [vmem:[#allocation6 + $0x128] sm:$0xff]
    %v406 = vld [vmem:[#allocation6 + $0x130] sm:$0xff]
    %v407 = vld [vmem:[#allocation6 + $0x138] sm:$0xff]
    %v408 = vld [vmem:[#allocation6 + $0x140] sm:$0xff]
    %v409 = vld [vmem:[#allocation6 + $0x148] sm:$0xff]
    %v410 = vld [vmem:[#allocation6 + $0x150] sm:$0xff]
    %v411 = vld [vmem:[#allocation6 + $0x158] sm:$0xff]
    %v412 = vld [vmem:[#allocation6 + $0x160] sm:$0xff]
    %v413 = vld [vmem:[#allocation6 + $0x168] sm:$0xff]
    %v414 = vld [vmem:[#allocation6 + $0x170] sm:$0xff]
    %v415 = vld [vmem:[#allocation6 + $0x178] sm:$0xff]
    %v416 = vld [vmem:[#allocation6 + $0x180] sm:$0xff]
    %v417 = vld [vmem:[#allocation6 + $0x188] sm:$0xff]
    %v418 = vld [vmem:[#allocation6 + $0x190] sm:$0xff]
    %v419 = vld [vmem:[#allocation6 + $0x198] sm:$0xff]
    %v420 = vld [vmem:[#allocation6 + $0x1a0] sm:$0xff]
    %v421 = vld [vmem:[#allocation6 + $0x1a8] sm:$0xff]
    %v422 = vld [vmem:[#allocation6 + $0x1b0] sm:$0xff]
    %v423 = vld [vmem:[#allocation6 + $0x1b8] sm:$0xff]
    %v424 = vld [vmem:[#allocation6 + $0x1c0] sm:$0xff]
    %v425 = vld [vmem:[#allocation6 + $0x1c8] sm:$0xff]
    %v426 = vld [vmem:[#allocation6 + $0x1d0] sm:$0xff]
    %v427 = vld [vmem:[#allocation6 + $0x1d8] sm:$0xff]
    %v428 = vld [vmem:[#allocation6 + $0x1e0] sm:$0xff]
    %v429 = vld [vmem:[#allocation6 + $0x1e8] sm:$0xff]
    %v430 = vld [vmem:[#allocation6 + $0x1f0] sm:$0xff]
    %v431 = vld [vmem:[#allocation6 + $0x1f8] sm:$0xff]
    %v432 = vld [vmem:[#allocation6 + $0x200] sm:$0xff]
    %v433 = vld [vmem:[#allocation6 + $0x208] sm:$0xff]
    %v434 = vld [vmem:[#allocation6 + $0x210] sm:$0xff]
    %v435 = vld [vmem:[#allocation6 + $0x218] sm:$0xff]
    %v436 = vld [vmem:[#allocation6 + $0x220] sm:$0xff]
    %v437 = vld [vmem:[#allocation6 + $0x228] sm:$0xff]
    %v438 = vld [vmem:[#allocation6 + $0x230] sm:$0xff]
    %v439 = vld [vmem:[#allocation6 + $0x238] sm:$0xff]
    %v440 = vld [vmem:[#allocation6 + $0x240] sm:$0xff]
    %v441 = vld [vmem:[#allocation6 + $0x248] sm:$0xff]
    %v442 = vld [vmem:[#allocation6 + $0x250] sm:$0xff]
    %v443 = vld [vmem:[#allocation6 + $0x258] sm:$0xff]
    %v444 = vld [vmem:[#allocation6 + $0x260] sm:$0xff]
    %v445 = vld [vmem:[#allocation6 + $0x268] sm:$0xff]
    %v446 = vld [vmem:[#allocation6 + $0x270] sm:$0xff]
    %v447 = vld [vmem:[#allocation6 + $0x278] sm:$0xff]
    %v448 = vld [vmem:[#allocation6 + $0x280] sm:$0xff]
    %v449 = vld [vmem:[#allocation6 + $0x288] sm:$0xff]
    %v450 = vld [vmem:[#allocation6 + $0x290] sm:$0xff]
    %v451 = vld [vmem:[#allocation6 + $0x298] sm:$0xff]
    %v452 = vld [vmem:[#allocation6 + $0x2a0] sm:$0xff]
    %v453 = vld [vmem:[#allocation6 + $0x2a8] sm:$0xff]
    %v454 = vld [vmem:[#allocation6 + $0x2b0] sm:$0xff]
    %v455 = vld [vmem:[#allocation6 + $0x2b8] sm:$0xff]
    %v456 = vld [vmem:[#allocation6 + $0x2c0] sm:$0xff]
    %v457 = vld [vmem:[#allocation6 + $0x2c8] sm:$0xff]
    %v458 = vld [vmem:[#allocation6 + $0x2d0] sm:$0xff]
    %v459 = vld [vmem:[#allocation6 + $0x2d8] sm:$0xff]
    %v460 = vld [vmem:[#allocation6 + $0x2e0] sm:$0xff]
    %v461 = vld [vmem:[#allocation6 + $0x2e8] sm:$0xff]
    %v462 = vld [vmem:[#allocation6 + $0x2f0] sm:$0xff]
    %v463 = vld [vmem:[#allocation6 + $0x2f8] sm:$0xff]
    %v464 = vld [vmem:[#allocation6 + $0x300] sm:$0xff]
    %v465 = vld [vmem:[#allocation6 + $0x308] sm:$0xff]
    %v466 = vld [vmem:[#allocation6 + $0x310] sm:$0xff]
    %v467 = vld [vmem:[#allocation6 + $0x318] sm:$0xff]
    %v468 = vld [vmem:[#allocation6 + $0x320] sm:$0xff]
    %v469 = vld [vmem:[#allocation6 + $0x328] sm:$0xff]
    %v470 = vld [vmem:[#allocation6 + $0x330] sm:$0xff]
    %v471 = vld [vmem:[#allocation6 + $0x338] sm:$0xff]
    %v472 = vld [vmem:[#allocation6 + $0x340] sm:$0xff]
    %v473 = vld [vmem:[#allocation6 + $0x348] sm:$0xff]
    %v474 = vld [vmem:[#allocation6 + $0x350] sm:$0xff]
    %v475 = vld [vmem:[#allocation6 + $0x358] sm:$0xff]
    %v476 = vld [vmem:[#allocation6 + $0x360] sm:$0xff]
    %v477 = vld [vmem:[#allocation6 + $0x368] sm:$0xff]
    %v478 = vld [vmem:[#allocation6 + $0x370] sm:$0xff]
    %v479 = vld [vmem:[#allocation6 + $0x378] sm:$0xff]
    %v480 = vld [vmem:[#allocation6 + $0x380] sm:$0xff]
    %v481 = vld [vmem:[#allocation6 + $0x388] sm:$0xff]
    %v482 = vld [vmem:[#allocation6 + $0x390] sm:$0xff]
    %v483 = vld [vmem:[#allocation6 + $0x398] sm:$0xff]
    %v484 = vld [vmem:[#allocation6 + $0x3a0] sm:$0xff]
    %v485 = vld [vmem:[#allocation6 + $0x3a8] sm:$0xff]
    %v486 = vld [vmem:[#allocation6 + $0x3b0] sm:$0xff]
    %v487 = vld [vmem:[#allocation6 + $0x3b8] sm:$0xff]
    %v488 = vld [vmem:[#allocation6 + $0x3c0] sm:$0xff]
    %v489 = vld [vmem:[#allocation6 + $0x3c8] sm:$0xff]
    %v490 = vld [vmem:[#allocation6 + $0x3d0] sm:$0xff]
    %v491 = vld [vmem:[#allocation6 + $0x3d8] sm:$0xff]
    %v492 = vld [vmem:[#allocation6 + $0x3e0] sm:$0xff]
    %v493 = vld [vmem:[#allocation6 + $0x3e8] sm:$0xff]
    %v494 = vld [vmem:[#allocation6 + $0x3f0] sm:$0xff]
    %v495 = vld [vmem:[#allocation6 + $0x3f8] sm:$0xff]
    %v496 = vld [vmem:[#allocation6 + $0x400] sm:$0xff]
    %v497 = vld [vmem:[#allocation6 + $0x408] sm:$0xff]
    %v498 = vld [vmem:[#allocation6 + $0x410] sm:$0xff]
    %v499 = vld [vmem:[#allocation6 + $0x418] sm:$0xff]
    %v500 = vld [vmem:[#allocation6 + $0x420] sm:$0xff]
    %v501 = vld [vmem:[#allocation6 + $0x428] sm:$0xff]
    %v502 = vld [vmem:[#allocation6 + $0x430] sm:$0xff]
    %v503 = vld [vmem:[#allocation6 + $0x438] sm:$0xff]
    %v504 = vld [vmem:[#allocation6 + $0x440] sm:$0xff]
    %v505 = vld [vmem:[#allocation6 + $0x448] sm:$0xff]
    %v506 = vld [vmem:[#allocation6 + $0x450] sm:$0xff]
    %v507 = vld [vmem:[#allocation6 + $0x458] sm:$0xff]
    %v508 = vld [vmem:[#allocation6 + $0x460] sm:$0xff]
    %v509 = vld [vmem:[#allocation6 + $0x468] sm:$0xff]
    %v510 = vld [vmem:[#allocation6 + $0x470] sm:$0xff]
    %v511 = vld [vmem:[#allocation6 + $0x478] sm:$0xff]
    %v512 = vld [vmem:[#allocation6 + $0x480] sm:$0xff]
    %v513 = vld [vmem:[#allocation6 + $0x488] sm:$0xff]
    %v514 = vld [vmem:[#allocation6 + $0x490] sm:$0xff]
    %v515 = vld [vmem:[#allocation6 + $0x498] sm:$0xff]
    %v516 = vld [vmem:[#allocation6 + $0x4a0] sm:$0xff]
    %v517 = vld [vmem:[#allocation6 + $0x4a8] sm:$0xff]
    %v518 = vld [vmem:[#allocation6 + $0x4b0] sm:$0xff]
    %v519 = vld [vmem:[#allocation6 + $0x4b8] sm:$0xff]
    %v520 = vld [vmem:[#allocation6 + $0x4c0] sm:$0xff]
    %v521 = vld [vmem:[#allocation6 + $0x4c8] sm:$0xff]
    %v522 = vld [vmem:[#allocation6 + $0x4d0] sm:$0xff]
    %v523 = vld [vmem:[#allocation6 + $0x4d8] sm:$0xff]
    %v524 = vld [vmem:[#allocation6 + $0x4e0] sm:$0xff]
    %v525 = vld [vmem:[#allocation6 + $0x4e8] sm:$0xff]
    %v526 = vld [vmem:[#allocation6 + $0x4f0] sm:$0xff]
    %v527 = vld [vmem:[#allocation6 + $0x4f8] sm:$0xff]
    %v528 = vld [vmem:[#allocation6 + $0x500] sm:$0xff]
    %v529 = vld [vmem:[#allocation6 + $0x508] sm:$0xff]
    %v530 = vld [vmem:[#allocation6 + $0x510] sm:$0xff]
    %v531 = vld [vmem:[#allocation6 + $0x518] sm:$0xff]
    %v532 = vld [vmem:[#allocation6 + $0x520] sm:$0xff]
    %v533 = vld [vmem:[#allocation6 + $0x528] sm:$0xff]
    %v534 = vld [vmem:[#allocation6 + $0x530] sm:$0xff]
    %v535 = vld [vmem:[#allocation6 + $0x538] sm:$0xff]
    %v536 = vld [vmem:[#allocation6 + $0x540] sm:$0xff]
    %v537 = vld [vmem:[#allocation6 + $0x548] sm:$0xff]
    %v538 = vld [vmem:[#allocation6 + $0x550] sm:$0xff]
    %v539 = vld [vmem:[#allocation6 + $0x558] sm:$0xff]
    %v540 = vld [vmem:[#allocation6 + $0x560] sm:$0xff]
    %v541 = vld [vmem:[#allocation6 + $0x568] sm:$0xff]
    %v542 = vld [vmem:[#allocation6 + $0x570] sm:$0xff]
    %v543 = vld [vmem:[#allocation6 + $0x578] sm:$0xff]
    %v544 = vld [vmem:[#allocation6 + $0x580] sm:$0xff]
    %v545 = vld [vmem:[#allocation6 + $0x588] sm:$0xff]
    %v546 = vld [vmem:[#allocation6 + $0x590] sm:$0xff]
    %v547 = vld [vmem:[#allocation6 + $0x598] sm:$0xff]
    %v548 = vld [vmem:[#allocation6 + $0x5a0] sm:$0xff]
    %v549 = vld [vmem:[#allocation6 + $0x5a8] sm:$0xff]
    %v550 = vld [vmem:[#allocation6 + $0x5b0] sm:$0xff]
    %v551 = vld [vmem:[#allocation6 + $0x5b8] sm:$0xff]
    %v552 = vld [vmem:[#allocation6 + $0x5c0] sm:$0xff]
    %v553 = vld [vmem:[#allocation6 + $0x5c8] sm:$0xff]
    %v554 = vld [vmem:[#allocation6 + $0x5d0] sm:$0xff]
    %v555 = vld [vmem:[#allocation6 + $0x5d8] sm:$0xff]
    %v556 = vld [vmem:[#allocation6 + $0x5e0] sm:$0xff]
    %v557 = vld [vmem:[#allocation6 + $0x5e8] sm:$0xff]
    %v558 = vld [vmem:[#allocation6 + $0x5f0] sm:$0xff]
    %v559 = vld [vmem:[#allocation6 + $0x5f8] sm:$0xff]
    %v560 = vld [vmem:[#allocation6 + $0x600] sm:$0xff]
    %v561 = vld [vmem:[#allocation6 + $0x608] sm:$0xff]
    %v562 = vld [vmem:[#allocation6 + $0x610] sm:$0xff]
    %v563 = vld [vmem:[#allocation6 + $0x618] sm:$0xff]
    %v564 = vld [vmem:[#allocation6 + $0x620] sm:$0xff]
    %v565 = vld [vmem:[#allocation6 + $0x628] sm:$0xff]
    %v566 = vld [vmem:[#allocation6 + $0x630] sm:$0xff]
    %v567 = vld [vmem:[#allocation6 + $0x638] sm:$0xff]
    %v568 = vld [vmem:[#allocation6 + $0x640] sm:$0xff]
    %v569 = vld [vmem:[#allocation6 + $0x648] sm:$0xff]
    %v570 = vld [vmem:[#allocation6 + $0x650] sm:$0xff]
    %v571 = vld [vmem:[#allocation6 + $0x658] sm:$0xff]
    %v572 = vld [vmem:[#allocation6 + $0x660] sm:$0xff]
    %v573 = vld [vmem:[#allocation6 + $0x668] sm:$0xff]
    %v574 = vld [vmem:[#allocation6 + $0x670] sm:$0xff]
    %v575 = vld [vmem:[#allocation6 + $0x678] sm:$0xff]
    %v576 = vld [vmem:[#allocation6 + $0x680] sm:$0xff]
    %v577 = vld [vmem:[#allocation6 + $0x688] sm:$0xff]
    %v578 = vld [vmem:[#allocation6 + $0x690] sm:$0xff]
    %v579 = vld [vmem:[#allocation6 + $0x698] sm:$0xff]
    %v580 = vld [vmem:[#allocation6 + $0x6a0] sm:$0xff]
    %v581 = vld [vmem:[#allocation6 + $0x6a8] sm:$0xff]
    %v582 = vld [vmem:[#allocation6 + $0x6b0] sm:$0xff]
    %v583 = vld [vmem:[#allocation6 + $0x6b8] sm:$0xff]
    %v584 = vld [vmem:[#allocation6 + $0x6c0] sm:$0xff]
    %v585 = vld [vmem:[#allocation6 + $0x6c8] sm:$0xff]
    %v586 = vld [vmem:[#allocation6 + $0x6d0] sm:$0xff]
    %v587 = vld [vmem:[#allocation6 + $0x6d8] sm:$0xff]
    %v588 = vld [vmem:[#allocation6 + $0x6e0] sm:$0xff]
    %v589 = vld [vmem:[#allocation6 + $0x6e8] sm:$0xff]
    %v590 = vld [vmem:[#allocation6 + $0x6f0] sm:$0xff]
    %v591 = vld [vmem:[#allocation6 + $0x6f8] sm:$0xff]
    %v592 = vld [vmem:[#allocation6 + $0x700] sm:$0xff]
    %v593 = vld [vmem:[#allocation6 + $0x708] sm:$0xff]
    %v594 = vld [vmem:[#allocation6 + $0x710] sm:$0xff]
    %v595 = vld [vmem:[#allocation6 + $0x718] sm:$0xff]
    %v596 = vld [vmem:[#allocation6 + $0x720] sm:$0xff]
    %v597 = vld [vmem:[#allocation6 + $0x728] sm:$0xff]
    %v598 = vld [vmem:[#allocation6 + $0x730] sm:$0xff]
    %v599 = vld [vmem:[#allocation6 + $0x738] sm:$0xff]
    %v600 = vld [vmem:[#allocation6 + $0x740] sm:$0xff]
    %v601 = vld [vmem:[#allocation6 + $0x748] sm:$0xff]
    %v602 = vld [vmem:[#allocation6 + $0x750] sm:$0xff]
    %v603 = vld [vmem:[#allocation6 + $0x758] sm:$0xff]
    %v604 = vld [vmem:[#allocation6 + $0x760] sm:$0xff]
    %v605 = vld [vmem:[#allocation6 + $0x768] sm:$0xff]
    %v606 = vld [vmem:[#allocation6 + $0x770] sm:$0xff]
    %v607 = vld [vmem:[#allocation6 + $0x778] sm:$0xff]
    %v608 = vld [vmem:[#allocation6 + $0x780] sm:$0xff]
    %v609 = vld [vmem:[#allocation6 + $0x788] sm:$0xff]
    %v610 = vld [vmem:[#allocation6 + $0x790] sm:$0xff]
    %v611 = vld [vmem:[#allocation6 + $0x798] sm:$0xff]
    %v612 = vld [vmem:[#allocation6 + $0x7a0] sm:$0xff]
    %v613 = vld [vmem:[#allocation6 + $0x7a8] sm:$0xff]
    %v614 = vld [vmem:[#allocation6 + $0x7b0] sm:$0xff]
    %v615 = vld [vmem:[#allocation6 + $0x7b8] sm:$0xff]
    %v616 = vld [vmem:[#allocation6 + $0x7c0] sm:$0xff]
    %v617 = vld [vmem:[#allocation6 + $0x7c8] sm:$0xff]
    %v618 = vld [vmem:[#allocation6 + $0x7d0] sm:$0xff]
    %v619 = vld [vmem:[#allocation6 + $0x7d8] sm:$0xff]
    %v620 = vld [vmem:[#allocation6 + $0x7e0] sm:$0xff]
    %v621 = vld [vmem:[#allocation6 + $0x7e8] sm:$0xff]
    %v622 = vld [vmem:[#allocation6 + $0x7f0] sm:$0xff]
    %v623 = vld [vmem:[#allocation6 + $0x7f8] sm:$0xff]
    %v624 = vld [vmem:[#allocation6 + $0x800] sm:$0xff]
    %v625 = vld [vmem:[#allocation6 + $0x808] sm:$0xff]
    %v626 = vld [vmem:[#allocation6 + $0x810] sm:$0xff]
    %v627 = vld [vmem:[#allocation6 + $0x818] sm:$0xff]
    %v628 = vld [vmem:[#allocation6 + $0x820] sm:$0xff]
    %v629 = vld [vmem:[#allocation6 + $0x828] sm:$0xff]
    %v630 = vld [vmem:[#allocation6 + $0x830] sm:$0xff]
    %v631 = vld [vmem:[#allocation6 + $0x838] sm:$0xff]
    %v632 = vld [vmem:[#allocation6 + $0x840] sm:$0xff]
    %v633 = vld [vmem:[#allocation6 + $0x848] sm:$0xff]
    %v634 = vld [vmem:[#allocation6 + $0x850] sm:$0xff]
    %v635 = vld [vmem:[#allocation6 + $0x858] sm:$0xff]
    %v636 = vld [vmem:[#allocation6 + $0x860] sm:$0xff]
    %v637 = vld [vmem:[#allocation6 + $0x868] sm:$0xff]
    %v638 = vld [vmem:[#allocation6 + $0x870] sm:$0xff]
    %v639 = vld [vmem:[#allocation6 + $0x878] sm:$0xff]
    %v640 = vld [vmem:[#allocation6 + $0x880] sm:$0xff]
    %v641 = vld [vmem:[#allocation6 + $0x888] sm:$0xff]
    %v642 = vld [vmem:[#allocation6 + $0x890] sm:$0xff]
    %v643 = vld [vmem:[#allocation6 + $0x898] sm:$0xff]
    %v644 = vld [vmem:[#allocation6 + $0x8a0] sm:$0xff]
    %v645 = vld [vmem:[#allocation6 + $0x8a8] sm:$0xff]
    %v646 = vld [vmem:[#allocation6 + $0x8b0] sm:$0xff]
    %v647 = vld [vmem:[#allocation6 + $0x8b8] sm:$0xff]
    %v648 = vld [vmem:[#allocation6 + $0x8c0] sm:$0xff]
    %v649 = vld [vmem:[#allocation6 + $0x8c8] sm:$0xff]
    %v650 = vld [vmem:[#allocation6 + $0x8d0] sm:$0xff]
    %v651 = vld [vmem:[#allocation6 + $0x8d8] sm:$0xff]
    %v652 = vld [vmem:[#allocation6 + $0x8e0] sm:$0xff]
    %v653 = vld [vmem:[#allocation6 + $0x8e8] sm:$0xff]
    %v654 = vld [vmem:[#allocation6 + $0x8f0] sm:$0xff]
    %v655 = vld [vmem:[#allocation6 + $0x8f8] sm:$0xff]
    %v656 = vld [vmem:[#allocation6 + $0x900] sm:$0xff]
    %v657 = vld [vmem:[#allocation6 + $0x908] sm:$0xff]
    %v658 = vld [vmem:[#allocation6 + $0x910] sm:$0xff]
    %v659 = vld [vmem:[#allocation6 + $0x918] sm:$0xff]
    %v660 = vld [vmem:[#allocation6 + $0x920] sm:$0xff]
    %v661 = vld [vmem:[#allocation6 + $0x928] sm:$0xff]
    %v662 = vld [vmem:[#allocation6 + $0x930] sm:$0xff]
    %v663 = vld [vmem:[#allocation6 + $0x938] sm:$0xff]
    %v664 = vld [vmem:[#allocation6 + $0x940] sm:$0xff]
    %v665 = vld [vmem:[#allocation6 + $0x948] sm:$0xff]
    %v666 = vld [vmem:[#allocation6 + $0x950] sm:$0xff]
    %v667 = vld [vmem:[#allocation6 + $0x958] sm:$0xff]
    %v668 = vld [vmem:[#allocation6 + $0x960] sm:$0xff]
    %v669 = vld [vmem:[#allocation6 + $0x968] sm:$0xff]
    %v670 = vld [vmem:[#allocation6 + $0x970] sm:$0xff]
    %v671 = vld [vmem:[#allocation6 + $0x978] sm:$0xff]
    %v672 = vld [vmem:[#allocation6 + $0x980] sm:$0xff]
    %v673 = vld [vmem:[#allocation6 + $0x988] sm:$0xff]
    %v674 = vld [vmem:[#allocation6 + $0x990] sm:$0xff]
    %v675 = vld [vmem:[#allocation6 + $0x998] sm:$0xff]
    %v676 = vld [vmem:[#allocation6 + $0x9a0] sm:$0xff]
    %v677 = vld [vmem:[#allocation6 + $0x9a8] sm:$0xff]
    %v678 = vld [vmem:[#allocation6 + $0x9b0] sm:$0xff]
    %v679 = vld [vmem:[#allocation6 + $0x9b8] sm:$0xff]
    %v680 = vld [vmem:[#allocation6 + $0x9c0] sm:$0xff]
    %v681 = vld [vmem:[#allocation6 + $0x9c8] sm:$0xff]
    %v682 = vld [vmem:[#allocation6 + $0x9d0] sm:$0xff]
    %v683 = vld [vmem:[#allocation6 + $0x9d8] sm:$0xff]
    %v684 = vld [vmem:[#allocation6 + $0x9e0] sm:$0xff]
    %v685 = vld [vmem:[#allocation6 + $0x9e8] sm:$0xff]
    %v686 = vld [vmem:[#allocation6 + $0x9f0] sm:$0xff]
    %v687 = vld [vmem:[#allocation6 + $0x9f8] sm:$0xff]
    %v688 = vld [vmem:[#allocation6 + $0xa00] sm:$0xff]
    %v689 = vld [vmem:[#allocation6 + $0xa08] sm:$0xff]
    %v690 = vld [vmem:[#allocation6 + $0xa10] sm:$0xff]
    %v691 = vld [vmem:[#allocation6 + $0xa18] sm:$0xff]
    %v692 = vld [vmem:[#allocation6 + $0xa20] sm:$0xff]
    %v693 = vld [vmem:[#allocation6 + $0xa28] sm:$0xff]
    %v694 = vld [vmem:[#allocation6 + $0xa30] sm:$0xff]
    %v695 = vld [vmem:[#allocation6 + $0xa38] sm:$0xff]
    %v696 = vld [vmem:[#allocation6 + $0xa40] sm:$0xff]
    %v697 = vld [vmem:[#allocation6 + $0xa48] sm:$0xff]
    %v698 = vld [vmem:[#allocation6 + $0xa50] sm:$0xff]
    %v699 = vld [vmem:[#allocation6 + $0xa58] sm:$0xff]
    %v700 = vld [vmem:[#allocation6 + $0xa60] sm:$0xff]
    %v701 = vld [vmem:[#allocation6 + $0xa68] sm:$0xff]
    %v702 = vld [vmem:[#allocation6 + $0xa70] sm:$0xff]
    %v703 = vld [vmem:[#allocation6 + $0xa78] sm:$0xff]
    %v704 = vld [vmem:[#allocation6 + $0xa80] sm:$0xff]
    %v705 = vld [vmem:[#allocation6 + $0xa88] sm:$0xff]
    %v706 = vld [vmem:[#allocation6 + $0xa90] sm:$0xff]
    %v707 = vld [vmem:[#allocation6 + $0xa98] sm:$0xff]
    %v708 = vld [vmem:[#allocation6 + $0xaa0] sm:$0xff]
    %v709 = vld [vmem:[#allocation6 + $0xaa8] sm:$0xff]
    %v710 = vld [vmem:[#allocation6 + $0xab0] sm:$0xff]
    %v711 = vld [vmem:[#allocation6 + $0xab8] sm:$0xff]
    %v712 = vld [vmem:[#allocation6 + $0xac0] sm:$0xff]
    %v713 = vld [vmem:[#allocation6 + $0xac8] sm:$0xff]
    %v714 = vld [vmem:[#allocation6 + $0xad0] sm:$0xff]
    %v715 = vld [vmem:[#allocation6 + $0xad8] sm:$0xff]
    %v716 = vld [vmem:[#allocation6 + $0xae0] sm:$0xff]
    %v717 = vld [vmem:[#allocation6 + $0xae8] sm:$0xff]
    %v718 = vld [vmem:[#allocation6 + $0xaf0] sm:$0xff]
    %v719 = vld [vmem:[#allocation6 + $0xaf8] sm:$0xff]
    %v720 = vld [vmem:[#allocation6 + $0xb00] sm:$0xff]
    %v721 = vld [vmem:[#allocation6 + $0xb08] sm:$0xff]
    %v722 = vld [vmem:[#allocation6 + $0xb10] sm:$0xff]
    %v723 = vld [vmem:[#allocation6 + $0xb18] sm:$0xff]
    %v724 = vld [vmem:[#allocation6 + $0xb20] sm:$0xff]
    %v725 = vld [vmem:[#allocation6 + $0xb28] sm:$0xff]
    %v726 = vld [vmem:[#allocation6 + $0xb30] sm:$0xff]
    %v727 = vld [vmem:[#allocation6 + $0xb38] sm:$0xff]
    %v728 = vld [vmem:[#allocation6 + $0xb40] sm:$0xff]
    %v729 = vld [vmem:[#allocation6 + $0xb48] sm:$0xff]
    %v730 = vld [vmem:[#allocation6 + $0xb50] sm:$0xff]
    %v731 = vld [vmem:[#allocation6 + $0xb58] sm:$0xff]
    %v732 = vld [vmem:[#allocation6 + $0xb60] sm:$0xff]
    %v733 = vld [vmem:[#allocation6 + $0xb68] sm:$0xff]
    %v734 = vld [vmem:[#allocation6 + $0xb70] sm:$0xff]
    %v735 = vld [vmem:[#allocation6 + $0xb78] sm:$0xff]
    %v736 = vld [vmem:[#allocation6 + $0xb80] sm:$0xff]
    %v737 = vld [vmem:[#allocation6 + $0xb88] sm:$0xff]
    %v738 = vld [vmem:[#allocation6 + $0xb90] sm:$0xff]
    %v739 = vld [vmem:[#allocation6 + $0xb98] sm:$0xff]
    %v740 = vld [vmem:[#allocation6 + $0xba0] sm:$0xff]
    %v741 = vld [vmem:[#allocation6 + $0xba8] sm:$0xff]
    %v742 = vld [vmem:[#allocation6 + $0xbb0] sm:$0xff]
    %v743 = vld [vmem:[#allocation6 + $0xbb8] sm:$0xff]
    %v744 = vld [vmem:[#allocation6 + $0xbc0] sm:$0xff]
    %v745 = vld [vmem:[#allocation6 + $0xbc8] sm:$0xff]
    %v746 = vld [vmem:[#allocation6 + $0xbd0] sm:$0xff]
    %v747 = vld [vmem:[#allocation6 + $0xbd8] sm:$0xff]
    %v748 = vld [vmem:[#allocation6 + $0xbe0] sm:$0xff]
    %v749 = vld [vmem:[#allocation6 + $0xbe8] sm:$0xff]
    %v750 = vld [vmem:[#allocation6 + $0xbf0] sm:$0xff]
    %v751 = vld [vmem:[#allocation6 + $0xbf8] sm:$0xff]
    %v752 = vld [vmem:[#allocation6 + $0xc00] sm:$0xff]
    %v753 = vld [vmem:[#allocation6 + $0xc08] sm:$0xff]
    %v754 = vld [vmem:[#allocation6 + $0xc10] sm:$0xff]
    %v755 = vld [vmem:[#allocation6 + $0xc18] sm:$0xff]
    %v756 = vld [vmem:[#allocation6 + $0xc20] sm:$0xff]
    %v757 = vld [vmem:[#allocation6 + $0xc28] sm:$0xff]
    %v758 = vld [vmem:[#allocation6 + $0xc30] sm:$0xff]
    %v759 = vld [vmem:[#allocation6 + $0xc38] sm:$0xff]
    %v760 = vld [vmem:[#allocation6 + $0xc40] sm:$0xff]
    %v761 = vld [vmem:[#allocation6 + $0xc48] sm:$0xff]
    %v762 = vld [vmem:[#allocation6 + $0xc50] sm:$0xff]
    %v763 = vld [vmem:[#allocation6 + $0xc58] sm:$0xff]
    %v764 = vld [vmem:[#allocation6 + $0xc60] sm:$0xff]
    %v765 = vld [vmem:[#allocation6 + $0xc68] sm:$0xff]
    %v766 = vld [vmem:[#allocation6 + $0xc70] sm:$0xff]
    %v767 = vld [vmem:[#allocation6 + $0xc78] sm:$0xff]
    %v768 = vld [vmem:[#allocation6 + $0xc80] sm:$0xff]
    %v769 = vld [vmem:[#allocation6 + $0xc88] sm:$0xff]
    %v770 = vld [vmem:[#allocation6 + $0xc90] sm:$0xff]
    %v771 = vld [vmem:[#allocation6 + $0xc98] sm:$0xff]
    %v772 = vld [vmem:[#allocation6 + $0xca0] sm:$0xff]
    %v773 = vld [vmem:[#allocation6 + $0xca8] sm:$0xff]
    %v774 = vld [vmem:[#allocation6 + $0xcb0] sm:$0xff]
    %v775 = vld [vmem:[#allocation6 + $0xcb8] sm:$0xff]
    %v776 = vld [vmem:[#allocation6 + $0xcc0] sm:$0xff]
    %v777 = vld [vmem:[#allocation6 + $0xcc8] sm:$0xff]
    %v778 = vld [vmem:[#allocation6 + $0xcd0] sm:$0xff]
    %v779 = vld [vmem:[#allocation6 + $0xcd8] sm:$0xff]
    %v780 = vld [vmem:[#allocation6 + $0xce0] sm:$0xff]
    %v781 = vld [vmem:[#allocation6 + $0xce8] sm:$0xff]
    %v782 = vld [vmem:[#allocation6 + $0xcf0] sm:$0xff]
    %v783 = vld [vmem:[#allocation6 + $0xcf8] sm:$0xff]
    %v784 = vld [vmem:[#allocation6 + $0xd00] sm:$0xff]
    %v785 = vld [vmem:[#allocation6 + $0xd08] sm:$0xff]
    %v786 = vld [vmem:[#allocation6 + $0xd10] sm:$0xff]
    %v787 = vld [vmem:[#allocation6 + $0xd18] sm:$0xff]
    %v788 = vld [vmem:[#allocation6 + $0xd20] sm:$0xff]
    %v789 = vld [vmem:[#allocation6 + $0xd28] sm:$0xff]
    %v790 = vld [vmem:[#allocation6 + $0xd30] sm:$0xff]
    %v791 = vld [vmem:[#allocation6 + $0xd38] sm:$0xff]
    %v792 = vld [vmem:[#allocation6 + $0xd40] sm:$0xff]
    %v793 = vld [vmem:[#allocation6 + $0xd48] sm:$0xff]
    %v794 = vld [vmem:[#allocation6 + $0xd50] sm:$0xff]
    %v795 = vld [vmem:[#allocation6 + $0xd58] sm:$0xff]
    %v796 = vld [vmem:[#allocation6 + $0xd60] sm:$0xff]
    %v797 = vld [vmem:[#allocation6 + $0xd68] sm:$0xff]
    %v798 = vld [vmem:[#allocation6 + $0xd70] sm:$0xff]
    %v799 = vld [vmem:[#allocation6 + $0xd78] sm:$0xff]
    %v800 = vld [vmem:[#allocation6 + $0xd80] sm:$0xff]
    %v801 = vld [vmem:[#allocation6 + $0xd88] sm:$0xff]
    %v802 = vld [vmem:[#allocation6 + $0xd90] sm:$0xff]
    %v803 = vld [vmem:[#allocation6 + $0xd98] sm:$0xff]
    %v804 = vld [vmem:[#allocation6 + $0xda0] sm:$0xff]
    %v805 = vld [vmem:[#allocation6 + $0xda8] sm:$0xff]
    %v806 = vld [vmem:[#allocation6 + $0xdb0] sm:$0xff]
    %v807 = vld [vmem:[#allocation6 + $0xdb8] sm:$0xff]
    %v808 = vld [vmem:[#allocation6 + $0xdc0] sm:$0xff]
    %v809 = vld [vmem:[#allocation6 + $0xdc8] sm:$0xff]
    %v810 = vld [vmem:[#allocation6 + $0xdd0] sm:$0xff]
    %v811 = vld [vmem:[#allocation6 + $0xdd8] sm:$0xff]
    %v812 = vld [vmem:[#allocation6 + $0xde0] sm:$0xff]
    %v813 = vld [vmem:[#allocation6 + $0xde8] sm:$0xff]
    %v814 = vld [vmem:[#allocation6 + $0xdf0] sm:$0xff]
    %v815 = vld [vmem:[#allocation6 + $0xdf8] sm:$0xff]
    %v816 = vld [vmem:[#allocation6 + $0xe00] sm:$0xff]
    %v817 = vld [vmem:[#allocation6 + $0xe08] sm:$0xff]
    %v818 = vld [vmem:[#allocation6 + $0xe10] sm:$0xff]
    %v819 = vld [vmem:[#allocation6 + $0xe18] sm:$0xff]
    %v820 = vld [vmem:[#allocation6 + $0xe20] sm:$0xff]
    %v821 = vld [vmem:[#allocation6 + $0xe28] sm:$0xff]
    %v822 = vld [vmem:[#allocation6 + $0xe30] sm:$0xff]
    %v823 = vld [vmem:[#allocation6 + $0xe38] sm:$0xff]
    %v824 = vld [vmem:[#allocation6 + $0xe40] sm:$0xff]
    %v825 = vld [vmem:[#allocation6 + $0xe48] sm:$0xff]
    %v826 = vld [vmem:[#allocation6 + $0xe50] sm:$0xff]
    %v827 = vld [vmem:[#allocation6 + $0xe58] sm:$0xff]
    %v828 = vld [vmem:[#allocation6 + $0xe60] sm:$0xff]
    %v829 = vld [vmem:[#allocation6 + $0xe68] sm:$0xff]
    %v830 = vld [vmem:[#allocation6 + $0xe70] sm:$0xff]
    %v831 = vld [vmem:[#allocation6 + $0xe78] sm:$0xff]
    %v832 = vld [vmem:[#allocation6 + $0xe80] sm:$0xff]
    %v833 = vld [vmem:[#allocation6 + $0xe88] sm:$0xff]
    %v834 = vld [vmem:[#allocation6 + $0xe90] sm:$0xff]
    %v835 = vld [vmem:[#allocation6 + $0xe98] sm:$0xff]
    %v836 = vld [vmem:[#allocation6 + $0xea0] sm:$0xff]
    %v837 = vld [vmem:[#allocation6 + $0xea8] sm:$0xff]
    %v838 = vld [vmem:[#allocation6 + $0xeb0] sm:$0xff]
    %v839 = vld [vmem:[#allocation6 + $0xeb8] sm:$0xff]
    %v840 = vld [vmem:[#allocation6 + $0xec0] sm:$0xff]
    %v841 = vld [vmem:[#allocation6 + $0xec8] sm:$0xff]
    %v842 = vld [vmem:[#allocation6 + $0xed0] sm:$0xff]
    %v843 = vld [vmem:[#allocation6 + $0xed8] sm:$0xff]
    %v844 = vld [vmem:[#allocation6 + $0xee0] sm:$0xff]
    %v845 = vld [vmem:[#allocation6 + $0xee8] sm:$0xff]
    %v846 = vld [vmem:[#allocation6 + $0xef0] sm:$0xff]
    %v847 = vld [vmem:[#allocation6 + $0xef8] sm:$0xff]
    %v848 = vld [vmem:[#allocation6 + $0xf00] sm:$0xff]
    %v849 = vld [vmem:[#allocation6 + $0xf08] sm:$0xff]
    %v850 = vld [vmem:[#allocation6 + $0xf10] sm:$0xff]
    %v851 = vld [vmem:[#allocation6 + $0xf18] sm:$0xff]
    %v852 = vld [vmem:[#allocation6 + $0xf20] sm:$0xff]
    %v853 = vld [vmem:[#allocation6 + $0xf28] sm:$0xff]
    %v854 = vld [vmem:[#allocation6 + $0xf30] sm:$0xff]
    %v855 = vld [vmem:[#allocation6 + $0xf38] sm:$0xff]
    %v856 = vld [vmem:[#allocation6 + $0xf40] sm:$0xff]
    %v857 = vld [vmem:[#allocation6 + $0xf48] sm:$0xff]
    %v858 = vld [vmem:[#allocation6 + $0xf50] sm:$0xff]
    %v859 = vld [vmem:[#allocation6 + $0xf58] sm:$0xff]
    %v860 = vld [vmem:[#allocation6 + $0xf60] sm:$0xff]
    %v861 = vld [vmem:[#allocation6 + $0xf68] sm:$0xff]
    %v862 = vld [vmem:[#allocation6 + $0xf70] sm:$0xff]
    %v863 = vld [vmem:[#allocation6 + $0xf78] sm:$0xff]
    %v864 = vld [vmem:[#allocation6 + $0xf80] sm:$0xff]
    %v865 = vld [vmem:[#allocation6 + $0xf88] sm:$0xff]
    %v866 = vld [vmem:[#allocation6 + $0xf90] sm:$0xff]
    %v867 = vld [vmem:[#allocation6 + $0xf98] sm:$0xff]
    %v868 = vld [vmem:[#allocation6 + $0xfa0] sm:$0xff]
    %v869 = vld [vmem:[#allocation6 + $0xfa8] sm:$0xff]
    %v870 = vld [vmem:[#allocation6 + $0xfb0] sm:$0xff]
    %v871 = vld [vmem:[#allocation6 + $0xfb8] sm:$0xff]
    %v872 = vld [vmem:[#allocation6 + $0xfc0] sm:$0xff]
    %v873 = vld [vmem:[#allocation6 + $0xfc8] sm:$0xff]
    %v874 = vld [vmem:[#allocation6 + $0xfd0] sm:$0xff]
    %v875 = vld [vmem:[#allocation6 + $0xfd8] sm:$0xff]
    %v876 = vld [vmem:[#allocation6 + $0xfe0] sm:$0xff]
    %v877 = vld [vmem:[#allocation6 + $0xfe8] sm:$0xff]
    %v878 = vld [vmem:[#allocation6 + $0xff0] sm:$0xff]
    %v879 = vld [vmem:[#allocation6 + $0xff8] sm:$0xff]
    %880 = vmatpush.msra.mxu0 %v488
    %881 = vmatpush.msra.mxu0 %v480
    %882 = vmatpush.msra.mxu0 %v472
    %883 = vmatpush.msra.mxu0 %v464
    %884 = vmatpush.msra.mxu0 %v456
    %885 = vmatpush.msra.mxu0 %v448
    %886 = vmatpush.msra.mxu0 %v440
    %887 = vmatpush.msra.mxu0 %v432
    %888 = vmatpush.msra.mxu0 %v424
    %889 = vmatpush.msra.mxu0 %v416
    %890 = vmatpush.msra.mxu0 %v408
    %891 = vmatpush.msra.mxu0 %v400
    %892 = vmatpush.msra.mxu0 %v392
    %893 = vmatpush.msra.mxu0 %v384
    %894 = vmatpush.msra.mxu0 %v376
    %895 = vmatpush.msra.mxu0 %v368
    %896 = vmatmul.f32.gmra.mxu0 %v304
    %v897 = vpop.f32.mrf.mxu0
    %v898 = vadd.f32 0.0, %v897
    %899 = vmatmul.f32.gmra.mxu0 %v308
    %v900 = vpop.f32.mrf.mxu0
    %v901 = vadd.f32 0.0, %v900
    %902 = vmatmul.f32.gmra.mxu0 %v312
    %v903 = vpop.f32.mrf.mxu0
    %v904 = vadd.f32 0.0, %v903
    %905 = vmatmul.f32.gmra.mxu0 %v316
    %v906 = vpop.f32.mrf.mxu0
    %v907 = vadd.f32 0.0, %v906
    %908 = vmatmul.f32.gmra.mxu0 %v320
    %v909 = vpop.f32.mrf.mxu0
    %v910 = vadd.f32 0.0, %v909
    %911 = vmatmul.f32.gmra.mxu0 %v324
    %v912 = vpop.f32.mrf.mxu0
    %v913 = vadd.f32 0.0, %v912
    %914 = vmatmul.f32.gmra.mxu0 %v328
    %v915 = vpop.f32.mrf.mxu0
    %v916 = vadd.f32 0.0, %v915
    %917 = vmatmul.f32.gmra.mxu0 %v332
    %v918 = vpop.f32.mrf.mxu0
    %v919 = vadd.f32 0.0, %v918
    %920 = vmatmul.f32.gmra.mxu0 %v336
    %v921 = vpop.f32.mrf.mxu0
    %v922 = vadd.f32 0.0, %v921
    %923 = vmatmul.f32.gmra.mxu0 %v340
    %v924 = vpop.f32.mrf.mxu0
    %v925 = vadd.f32 0.0, %v924
    %926 = vmatmul.f32.gmra.mxu0 %v344
    %v927 = vpop.f32.mrf.mxu0
    %v928 = vadd.f32 0.0, %v927
    %929 = vmatmul.f32.gmra.mxu0 %v348
    %v930 = vpop.f32.mrf.mxu0
    %v931 = vadd.f32 0.0, %v930
    %932 = vmatmul.f32.gmra.mxu0 %v352
    %v933 = vpop.f32.mrf.mxu0
    %v934 = vadd.f32 0.0, %v933
    %935 = vmatmul.f32.gmra.mxu0 %v356
    %v936 = vpop.f32.mrf.mxu0
    %v937 = vadd.f32 0.0, %v936
    %938 = vmatmul.f32.gmra.mxu0 %v360
    %v939 = vpop.f32.mrf.mxu0
    %v940 = vadd.f32 0.0, %v939
    %941 = vmatmul.f32.gmra.mxu0 %v364
    %v942 = vpop.f32.mrf.mxu0
    %v943 = vadd.f32 0.0, %v942
    %944 = vdwg.mxu0
    %945 = vmatpush.msra.mxu0 %v616
    %946 = vmatpush.msra.mxu0 %v608
    %947 = vmatpush.msra.mxu0 %v600
    %948 = vmatpush.msra.mxu0 %v592
    %949 = vmatpush.msra.mxu0 %v584
    %950 = vmatpush.msra.mxu0 %v576
    %951 = vmatpush.msra.mxu0 %v568
    %952 = vmatpush.msra.mxu0 %v560
    %953 = vmatpush.msra.mxu0 %v552
    %954 = vmatpush.msra.mxu0 %v544
    %955 = vmatpush.msra.mxu0 %v536
    %956 = vmatpush.msra.mxu0 %v528
    %957 = vmatpush.msra.mxu0 %v520
    %958 = vmatpush.msra.mxu0 %v512
    %959 = vmatpush.msra.mxu0 %v504
    %960 = vmatpush.msra.mxu0 %v496
    %961 = vmatmul.f32.gmra.mxu0 %v305
    %v962 = vpop.f32.mrf.mxu0
    %v963 = vadd.f32 %v898, %v962
    %964 = vmatmul.f32.gmra.mxu0 %v309
    %v965 = vpop.f32.mrf.mxu0
    %v966 = vadd.f32 %v901, %v965
    %967 = vmatmul.f32.gmra.mxu0 %v313
    %v968 = vpop.f32.mrf.mxu0
    %v969 = vadd.f32 %v904, %v968
    %970 = vmatmul.f32.gmra.mxu0 %v317
    %v971 = vpop.f32.mrf.mxu0
    %v972 = vadd.f32 %v907, %v971
    %973 = vmatmul.f32.gmra.mxu0 %v321
    %v974 = vpop.f32.mrf.mxu0
    %v975 = vadd.f32 %v910, %v974
    %976 = vmatmul.f32.gmra.mxu0 %v325
    %v977 = vpop.f32.mrf.mxu0
    %v978 = vadd.f32 %v913, %v977
    %979 = vmatmul.f32.gmra.mxu0 %v329
    %v980 = vpop.f32.mrf.mxu0
    %v981 = vadd.f32 %v916, %v980
    %982 = vmatmul.f32.gmra.mxu0 %v333
    %v983 = vpop.f32.mrf.mxu0
    %v984 = vadd.f32 %v919, %v983
    %985 = vmatmul.f32.gmra.mxu0 %v337
    %v986 = vpop.f32.mrf.mxu0
    %v987 = vadd.f32 %v922, %v986
    %988 = vmatmul.f32.gmra.mxu0 %v341
    %v989 = vpop.f32.mrf.mxu0
    %v990 = vadd.f32 %v925, %v989
    %991 = vmatmul.f32.gmra.mxu0 %v345
    %v992 = vpop.f32.mrf.mxu0
    %v993 = vadd.f32 %v928, %v992
    %994 = vmatmul.f32.gmra.mxu0 %v349
    %v995 = vpop.f32.mrf.mxu0
    %v996 = vadd.f32 %v931, %v995
    %997 = vmatmul.f32.gmra.mxu0 %v353
    %v998 = vpop.f32.mrf.mxu0
    %v999 = vadd.f32 %v934, %v998
    %1000 = vmatmul.f32.gmra.mxu0 %v357
    %v1001 = vpop.f32.mrf.mxu0
    %v1002 = vadd.f32 %v937, %v1001
    %1003 = vmatmul.f32.gmra.mxu0 %v361
    %v1004 = vpop.f32.mrf.mxu0
    %v1005 = vadd.f32 %v940, %v1004
    %1006 = vmatmul.f32.gmra.mxu0 %v365
    %v1007 = vpop.f32.mrf.mxu0
    %v1008 = vadd.f32 %v943, %v1007
    %1009 = vdwg.mxu0
    %1010 = vmatpush.msra.mxu0 %v744
    %1011 = vmatpush.msra.mxu0 %v736
    %1012 = vmatpush.msra.mxu0 %v728
    %1013 = vmatpush.msra.mxu0 %v720
    %1014 = vmatpush.msra.mxu0 %v712
    %1015 = vmatpush.msra.mxu0 %v704
    %1016 = vmatpush.msra.mxu0 %v696
    %1017 = vmatpush.msra.mxu0 %v688
    %1018 = vmatpush.msra.mxu0 %v680
    %1019 = vmatpush.msra.mxu0 %v672
    %1020 = vmatpush.msra.mxu0 %v664
    %1021 = vmatpush.msra.mxu0 %v656
    %1022 = vmatpush.msra.mxu0 %v648
    %1023 = vmatpush.msra.mxu0 %v640
    %1024 = vmatpush.msra.mxu0 %v632
    %1025 = vmatpush.msra.mxu0 %v624
    %1026 = vmatmul.f32.gmra.mxu0 %v306
    %v1027 = vpop.f32.mrf.mxu0
    %v1028 = vadd.f32 %v963, %v1027
    %1029 = vmatmul.f32.gmra.mxu0 %v310
    %v1030 = vpop.f32.mrf.mxu0
    %v1031 = vadd.f32 %v966, %v1030
    %1032 = vmatmul.f32.gmra.mxu0 %v314
    %v1033 = vpop.f32.mrf.mxu0
    %v1034 = vadd.f32 %v969, %v1033
    %1035 = vmatmul.f32.gmra.mxu0 %v318
    %v1036 = vpop.f32.mrf.mxu0
    %v1037 = vadd.f32 %v972, %v1036
    %1038 = vmatmul.f32.gmra.mxu0 %v322
    %v1039 = vpop.f32.mrf.mxu0
    %v1040 = vadd.f32 %v975, %v1039
    %1041 = vmatmul.f32.gmra.mxu0 %v326
    %v1042 = vpop.f32.mrf.mxu0
    %v1043 = vadd.f32 %v978, %v1042
    %1044 = vmatmul.f32.gmra.mxu0 %v330
    %v1045 = vpop.f32.mrf.mxu0
    %v1046 = vadd.f32 %v981, %v1045
    %1047 = vmatmul.f32.gmra.mxu0 %v334
    %v1048 = vpop.f32.mrf.mxu0
    %v1049 = vadd.f32 %v984, %v1048
    %1050 = vmatmul.f32.gmra.mxu0 %v338
    %v1051 = vpop.f32.mrf.mxu0
    %v1052 = vadd.f32 %v987, %v1051
    %1053 = vmatmul.f32.gmra.mxu0 %v342
    %v1054 = vpop.f32.mrf.mxu0
    %v1055 = vadd.f32 %v990, %v1054
    %1056 = vmatmul.f32.gmra.mxu0 %v346
    %v1057 = vpop.f32.mrf.mxu0
    %v1058 = vadd.f32 %v993, %v1057
    %1059 = vmatmul.f32.gmra.mxu0 %v350
    %v1060 = vpop.f32.mrf.mxu0
    %v1061 = vadd.f32 %v996, %v1060
    %1062 = vmatmul.f32.gmra.mxu0 %v354
    %v1063 = vpop.f32.mrf.mxu0
    %v1064 = vadd.f32 %v999, %v1063
    %1065 = vmatmul.f32.gmra.mxu0 %v358
    %v1066 = vpop.f32.mrf.mxu0
    %v1067 = vadd.f32 %v1002, %v1066
    %1068 = vmatmul.f32.gmra.mxu0 %v362
    %v1069 = vpop.f32.mrf.mxu0
    %v1070 = vadd.f32 %v1005, %v1069
    %1071 = vmatmul.f32.gmra.mxu0 %v366
    %v1072 = vpop.f32.mrf.mxu0
    %v1073 = vadd.f32 %v1008, %v1072
    %1074 = vdwg.mxu0
    %1075 = vmatpush.msra.mxu0 %v872
    %1076 = vmatpush.msra.mxu0 %v864
    %1077 = vmatpush.msra.mxu0 %v856
    %1078 = vmatpush.msra.mxu0 %v848
    %1079 = vmatpush.msra.mxu0 %v840
    %1080 = vmatpush.msra.mxu0 %v832
    %1081 = vmatpush.msra.mxu0 %v824
    %1082 = vmatpush.msra.mxu0 %v816
    %1083 = vmatpush.msra.mxu0 %v808
    %1084 = vmatpush.msra.mxu0 %v800
    %1085 = vmatpush.msra.mxu0 %v792
    %1086 = vmatpush.msra.mxu0 %v784
    %1087 = vmatpush.msra.mxu0 %v776
    %1088 = vmatpush.msra.mxu0 %v768
    %1089 = vmatpush.msra.mxu0 %v760
    %1090 = vmatpush.msra.mxu0 %v752
    %1091 = vmatmul.f32.gmra.mxu0 %v307
    %v1092 = vpop.f32.mrf.mxu0
    %v1093 = vadd.f32 %v1028, %v1092
    %1094 = vmatmul.f32.gmra.mxu0 %v311
    %v1095 = vpop.f32.mrf.mxu0
    %v1096 = vadd.f32 %v1031, %v1095
    %1097 = vmatmul.f32.gmra.mxu0 %v315
    %v1098 = vpop.f32.mrf.mxu0
    %v1099 = vadd.f32 %v1034, %v1098
    %1100 = vmatmul.f32.gmra.mxu0 %v319
    %v1101 = vpop.f32.mrf.mxu0
    %v1102 = vadd.f32 %v1037, %v1101
    %1103 = vmatmul.f32.gmra.mxu0 %v323
    %v1104 = vpop.f32.mrf.mxu0
    %v1105 = vadd.f32 %v1040, %v1104
    %1106 = vmatmul.f32.gmra.mxu0 %v327
    %v1107 = vpop.f32.mrf.mxu0
    %v1108 = vadd.f32 %v1043, %v1107
    %1109 = vmatmul.f32.gmra.mxu0 %v331
    %v1110 = vpop.f32.mrf.mxu0
    %v1111 = vadd.f32 %v1046, %v1110
    %1112 = vmatmul.f32.gmra.mxu0 %v335
    %v1113 = vpop.f32.mrf.mxu0
    %v1114 = vadd.f32 %v1049, %v1113
    %1115 = vmatmul.f32.gmra.mxu0 %v339
    %v1116 = vpop.f32.mrf.mxu0
    %v1117 = vadd.f32 %v1052, %v1116
    %1118 = vmatmul.f32.gmra.mxu0 %v343
    %v1119 = vpop.f32.mrf.mxu0
    %v1120 = vadd.f32 %v1055, %v1119
    %1121 = vmatmul.f32.gmra.mxu0 %v347
    %v1122 = vpop.f32.mrf.mxu0
    %v1123 = vadd.f32 %v1058, %v1122
    %1124 = vmatmul.f32.gmra.mxu0 %v351
    %v1125 = vpop.f32.mrf.mxu0
    %v1126 = vadd.f32 %v1061, %v1125
    %1127 = vmatmul.f32.gmra.mxu0 %v355
    %v1128 = vpop.f32.mrf.mxu0
    %v1129 = vadd.f32 %v1064, %v1128
    %1130 = vmatmul.f32.gmra.mxu0 %v359
    %v1131 = vpop.f32.mrf.mxu0
    %v1132 = vadd.f32 %v1067, %v1131
    %1133 = vmatmul.f32.gmra.mxu0 %v363
    %v1134 = vpop.f32.mrf.mxu0
    %v1135 = vadd.f32 %v1070, %v1134
    %1136 = vmatmul.f32.gmra.mxu0 %v367
    %v1137 = vpop.f32.mrf.mxu0
    %v1138 = vadd.f32 %v1073, %v1137
    %1139 = vdwg.mxu0
    %1140 = vmatpush.msra.mxu0 %v489
    %1141 = vmatpush.msra.mxu0 %v481
    %1142 = vmatpush.msra.mxu0 %v473
    %1143 = vmatpush.msra.mxu0 %v465
    %1144 = vmatpush.msra.mxu0 %v457
    %1145 = vmatpush.msra.mxu0 %v449
    %1146 = vmatpush.msra.mxu0 %v441
    %1147 = vmatpush.msra.mxu0 %v433
    %1148 = vmatpush.msra.mxu0 %v425
    %1149 = vmatpush.msra.mxu0 %v417
    %1150 = vmatpush.msra.mxu0 %v409
    %1151 = vmatpush.msra.mxu0 %v401
    %1152 = vmatpush.msra.mxu0 %v393
    %1153 = vmatpush.msra.mxu0 %v385
    %1154 = vmatpush.msra.mxu0 %v377
    %1155 = vmatpush.msra.mxu0 %v369
    %1156 = vmatmul.f32.gmra.mxu0 %v304
    %v1157 = vpop.f32.mrf.mxu0
    %v1158 = vadd.f32 0.0, %v1157
    %1159 = vmatmul.f32.gmra.mxu0 %v308
    %v1160 = vpop.f32.mrf.mxu0
    %v1161 = vadd.f32 0.0, %v1160
    %1162 = vmatmul.f32.gmra.mxu0 %v312
    %v1163 = vpop.f32.mrf.mxu0
    %v1164 = vadd.f32 0.0, %v1163
    %1165 = vmatmul.f32.gmra.mxu0 %v316
    %v1166 = vpop.f32.mrf.mxu0
    %v1167 = vadd.f32 0.0, %v1166
    %1168 = vmatmul.f32.gmra.mxu0 %v320
    %v1169 = vpop.f32.mrf.mxu0
    %v1170 = vadd.f32 0.0, %v1169
    %1171 = vmatmul.f32.gmra.mxu0 %v324
    %v1172 = vpop.f32.mrf.mxu0
    %v1173 = vadd.f32 0.0, %v1172
    %1174 = vmatmul.f32.gmra.mxu0 %v328
    %v1175 = vpop.f32.mrf.mxu0
    %v1176 = vadd.f32 0.0, %v1175
    %1177 = vmatmul.f32.gmra.mxu0 %v332
    %v1178 = vpop.f32.mrf.mxu0
    %v1179 = vadd.f32 0.0, %v1178
    %1180 = vmatmul.f32.gmra.mxu0 %v336
    %v1181 = vpop.f32.mrf.mxu0
    %v1182 = vadd.f32 0.0, %v1181
    %1183 = vmatmul.f32.gmra.mxu0 %v340
    %v1184 = vpop.f32.mrf.mxu0
    %v1185 = vadd.f32 0.0, %v1184
    %1186 = vmatmul.f32.gmra.mxu0 %v344
    %v1187 = vpop.f32.mrf.mxu0
    %v1188 = vadd.f32 0.0, %v1187
    %1189 = vmatmul.f32.gmra.mxu0 %v348
    %v1190 = vpop.f32.mrf.mxu0
    %v1191 = vadd.f32 0.0, %v1190
    %1192 = vmatmul.f32.gmra.mxu0 %v352
    %v1193 = vpop.f32.mrf.mxu0
    %v1194 = vadd.f32 0.0, %v1193
    %1195 = vmatmul.f32.gmra.mxu0 %v356
    %v1196 = vpop.f32.mrf.mxu0
    %v1197 = vadd.f32 0.0, %v1196
    %1198 = vmatmul.f32.gmra.mxu0 %v360
    %v1199 = vpop.f32.mrf.mxu0
    %v1200 = vadd.f32 0.0, %v1199
    %1201 = vmatmul.f32.gmra.mxu0 %v364
    %v1202 = vpop.f32.mrf.mxu0
    %v1203 = vadd.f32 0.0, %v1202
    %1204 = vdwg.mxu0
    %1205 = vmatpush.msra.mxu0 %v617
    %1206 = vmatpush.msra.mxu0 %v609
    %1207 = vmatpush.msra.mxu0 %v601
    %1208 = vmatpush.msra.mxu0 %v593
    %1209 = vmatpush.msra.mxu0 %v585
    %1210 = vmatpush.msra.mxu0 %v577
    %1211 = vmatpush.msra.mxu0 %v569
    %1212 = vmatpush.msra.mxu0 %v561
    %1213 = vmatpush.msra.mxu0 %v553
    %1214 = vmatpush.msra.mxu0 %v545
    %1215 = vmatpush.msra.mxu0 %v537
    %1216 = vmatpush.msra.mxu0 %v529
    %1217 = vmatpush.msra.mxu0 %v521
    %1218 = vmatpush.msra.mxu0 %v513
    %1219 = vmatpush.msra.mxu0 %v505
    %1220 = vmatpush.msra.mxu0 %v497
    %1221 = vmatmul.f32.gmra.mxu0 %v305
    %v1222 = vpop.f32.mrf.mxu0
    %v1223 = vadd.f32 %v1158, %v1222
    %1224 = vmatmul.f32.gmra.mxu0 %v309
    %v1225 = vpop.f32.mrf.mxu0
    %v1226 = vadd.f32 %v1161, %v1225
    %1227 = vmatmul.f32.gmra.mxu0 %v313
    %v1228 = vpop.f32.mrf.mxu0
    %v1229 = vadd.f32 %v1164, %v1228
    %1230 = vmatmul.f32.gmra.mxu0 %v317
    %v1231 = vpop.f32.mrf.mxu0
    %v1232 = vadd.f32 %v1167, %v1231
    %1233 = vmatmul.f32.gmra.mxu0 %v321
    %v1234 = vpop.f32.mrf.mxu0
    %v1235 = vadd.f32 %v1170, %v1234
    %1236 = vmatmul.f32.gmra.mxu0 %v325
    %v1237 = vpop.f32.mrf.mxu0
    %v1238 = vadd.f32 %v1173, %v1237
    %1239 = vmatmul.f32.gmra.mxu0 %v329
    %v1240 = vpop.f32.mrf.mxu0
    %v1241 = vadd.f32 %v1176, %v1240
    %1242 = vmatmul.f32.gmra.mxu0 %v333
    %v1243 = vpop.f32.mrf.mxu0
    %v1244 = vadd.f32 %v1179, %v1243
    %1245 = vmatmul.f32.gmra.mxu0 %v337
    %v1246 = vpop.f32.mrf.mxu0
    %v1247 = vadd.f32 %v1182, %v1246
    %1248 = vmatmul.f32.gmra.mxu0 %v341
    %v1249 = vpop.f32.mrf.mxu0
    %v1250 = vadd.f32 %v1185, %v1249
    %1251 = vmatmul.f32.gmra.mxu0 %v345
    %v1252 = vpop.f32.mrf.mxu0
    %v1253 = vadd.f32 %v1188, %v1252
    %1254 = vmatmul.f32.gmra.mxu0 %v349
    %v1255 = vpop.f32.mrf.mxu0
    %v1256 = vadd.f32 %v1191, %v1255
    %1257 = vmatmul.f32.gmra.mxu0 %v353
    %v1258 = vpop.f32.mrf.mxu0
    %v1259 = vadd.f32 %v1194, %v1258
    %1260 = vmatmul.f32.gmra.mxu0 %v357
    %v1261 = vpop.f32.mrf.mxu0
    %v1262 = vadd.f32 %v1197, %v1261
    %1263 = vmatmul.f32.gmra.mxu0 %v361
    %v1264 = vpop.f32.mrf.mxu0
    %v1265 = vadd.f32 %v1200, %v1264
    %1266 = vmatmul.f32.gmra.mxu0 %v365
    %v1267 = vpop.f32.mrf.mxu0
    %v1268 = vadd.f32 %v1203, %v1267
    %1269 = vdwg.mxu0
    %1270 = vmatpush.msra.mxu0 %v745
    %1271 = vmatpush.msra.mxu0 %v737
    %1272 = vmatpush.msra.mxu0 %v729
    %1273 = vmatpush.msra.mxu0 %v721
    %1274 = vmatpush.msra.mxu0 %v713
    %1275 = vmatpush.msra.mxu0 %v705
    %1276 = vmatpush.msra.mxu0 %v697
    %1277 = vmatpush.msra.mxu0 %v689
    %1278 = vmatpush.msra.mxu0 %v681
    %1279 = vmatpush.msra.mxu0 %v673
    %1280 = vmatpush.msra.mxu0 %v665
    %1281 = vmatpush.msra.mxu0 %v657
    %1282 = vmatpush.msra.mxu0 %v649
    %1283 = vmatpush.msra.mxu0 %v641
    %1284 = vmatpush.msra.mxu0 %v633
    %1285 = vmatpush.msra.mxu0 %v625
    %1286 = vmatmul.f32.gmra.mxu0 %v306
    %v1287 = vpop.f32.mrf.mxu0
    %v1288 = vadd.f32 %v1223, %v1287
    %1289 = vmatmul.f32.gmra.mxu0 %v310
    %v1290 = vpop.f32.mrf.mxu0
    %v1291 = vadd.f32 %v1226, %v1290
    %1292 = vmatmul.f32.gmra.mxu0 %v314
    %v1293 = vpop.f32.mrf.mxu0
    %v1294 = vadd.f32 %v1229, %v1293
    %1295 = vmatmul.f32.gmra.mxu0 %v318
    %v1296 = vpop.f32.mrf.mxu0
    %v1297 = vadd.f32 %v1232, %v1296
    %1298 = vmatmul.f32.gmra.mxu0 %v322
    %v1299 = vpop.f32.mrf.mxu0
    %v1300 = vadd.f32 %v1235, %v1299
    %1301 = vmatmul.f32.gmra.mxu0 %v326
    %v1302 = vpop.f32.mrf.mxu0
    %v1303 = vadd.f32 %v1238, %v1302
    %1304 = vmatmul.f32.gmra.mxu0 %v330
    %v1305 = vpop.f32.mrf.mxu0
    %v1306 = vadd.f32 %v1241, %v1305
    %1307 = vmatmul.f32.gmra.mxu0 %v334
    %v1308 = vpop.f32.mrf.mxu0
    %v1309 = vadd.f32 %v1244, %v1308
    %1310 = vmatmul.f32.gmra.mxu0 %v338
    %v1311 = vpop.f32.mrf.mxu0
    %v1312 = vadd.f32 %v1247, %v1311
    %1313 = vmatmul.f32.gmra.mxu0 %v342
    %v1314 = vpop.f32.mrf.mxu0
    %v1315 = vadd.f32 %v1250, %v1314
    %1316 = vmatmul.f32.gmra.mxu0 %v346
    %v1317 = vpop.f32.mrf.mxu0
    %v1318 = vadd.f32 %v1253, %v1317
    %1319 = vmatmul.f32.gmra.mxu0 %v350
    %v1320 = vpop.f32.mrf.mxu0
    %v1321 = vadd.f32 %v1256, %v1320
    %1322 = vmatmul.f32.gmra.mxu0 %v354
    %v1323 = vpop.f32.mrf.mxu0
    %v1324 = vadd.f32 %v1259, %v1323
    %1325 = vmatmul.f32.gmra.mxu0 %v358
    %v1326 = vpop.f32.mrf.mxu0
    %v1327 = vadd.f32 %v1262, %v1326
    %1328 = vmatmul.f32.gmra.mxu0 %v362
    %v1329 = vpop.f32.mrf.mxu0
    %v1330 = vadd.f32 %v1265, %v1329
    %1331 = vmatmul.f32.gmra.mxu0 %v366
    %v1332 = vpop.f32.mrf.mxu0
    %v1333 = vadd.f32 %v1268, %v1332
    %1334 = vdwg.mxu0
    %1335 = vmatpush.msra.mxu0 %v873
    %1336 = vmatpush.msra.mxu0 %v865
    %1337 = vmatpush.msra.mxu0 %v857
    %1338 = vmatpush.msra.mxu0 %v849
    %1339 = vmatpush.msra.mxu0 %v841
    %1340 = vmatpush.msra.mxu0 %v833
    %1341 = vmatpush.msra.mxu0 %v825
    %1342 = vmatpush.msra.mxu0 %v817
    %1343 = vmatpush.msra.mxu0 %v809
    %1344 = vmatpush.msra.mxu0 %v801
    %1345 = vmatpush.msra.mxu0 %v793
    %1346 = vmatpush.msra.mxu0 %v785
    %1347 = vmatpush.msra.mxu0 %v777
    %1348 = vmatpush.msra.mxu0 %v769
    %1349 = vmatpush.msra.mxu0 %v761
    %1350 = vmatpush.msra.mxu0 %v753
    %1351 = vmatmul.f32.gmra.mxu0 %v307
    %v1352 = vpop.f32.mrf.mxu0
    %v1353 = vadd.f32 %v1288, %v1352
    %1354 = vmatmul.f32.gmra.mxu0 %v311
    %v1355 = vpop.f32.mrf.mxu0
    %v1356 = vadd.f32 %v1291, %v1355
    %1357 = vmatmul.f32.gmra.mxu0 %v315
    %v1358 = vpop.f32.mrf.mxu0
    %v1359 = vadd.f32 %v1294, %v1358
    %1360 = vmatmul.f32.gmra.mxu0 %v319
    %v1361 = vpop.f32.mrf.mxu0
    %v1362 = vadd.f32 %v1297, %v1361
    %1363 = vmatmul.f32.gmra.mxu0 %v323
    %v1364 = vpop.f32.mrf.mxu0
    %v1365 = vadd.f32 %v1300, %v1364
    %1366 = vmatmul.f32.gmra.mxu0 %v327
    %v1367 = vpop.f32.mrf.mxu0
    %v1368 = vadd.f32 %v1303, %v1367
    %1369 = vmatmul.f32.gmra.mxu0 %v331
    %v1370 = vpop.f32.mrf.mxu0
    %v1371 = vadd.f32 %v1306, %v1370
    %1372 = vmatmul.f32.gmra.mxu0 %v335
    %v1373 = vpop.f32.mrf.mxu0
    %v1374 = vadd.f32 %v1309, %v1373
    %1375 = vmatmul.f32.gmra.mxu0 %v339
    %v1376 = vpop.f32.mrf.mxu0
    %v1377 = vadd.f32 %v1312, %v1376
    %1378 = vmatmul.f32.gmra.mxu0 %v343
    %v1379 = vpop.f32.mrf.mxu0
    %v1380 = vadd.f32 %v1315, %v1379
    %1381 = vmatmul.f32.gmra.mxu0 %v347
    %v1382 = vpop.f32.mrf.mxu0
    %v1383 = vadd.f32 %v1318, %v1382
    %1384 = vmatmul.f32.gmra.mxu0 %v351
    %v1385 = vpop.f32.mrf.mxu0
    %v1386 = vadd.f32 %v1321, %v1385
    %1387 = vmatmul.f32.gmra.mxu0 %v355
    %v1388 = vpop.f32.mrf.mxu0
    %v1389 = vadd.f32 %v1324, %v1388
    %1390 = vmatmul.f32.gmra.mxu0 %v359
    %v1391 = vpop.f32.mrf.mxu0
    %v1392 = vadd.f32 %v1327, %v1391
    %1393 = vmatmul.f32.gmra.mxu0 %v363
    %v1394 = vpop.f32.mrf.mxu0
    %v1395 = vadd.f32 %v1330, %v1394
    %1396 = vmatmul.f32.gmra.mxu0 %v367
    %v1397 = vpop.f32.mrf.mxu0
    %v1398 = vadd.f32 %v1333, %v1397
    %1399 = vdwg.mxu0
    %1400 = vmatpush.msra.mxu0 %v490
    %1401 = vmatpush.msra.mxu0 %v482
    %1402 = vmatpush.msra.mxu0 %v474
    %1403 = vmatpush.msra.mxu0 %v466
    %1404 = vmatpush.msra.mxu0 %v458
    %1405 = vmatpush.msra.mxu0 %v450
    %1406 = vmatpush.msra.mxu0 %v442
    %1407 = vmatpush.msra.mxu0 %v434
    %1408 = vmatpush.msra.mxu0 %v426
    %1409 = vmatpush.msra.mxu0 %v418
    %1410 = vmatpush.msra.mxu0 %v410
    %1411 = vmatpush.msra.mxu0 %v402
    %1412 = vmatpush.msra.mxu0 %v394
    %1413 = vmatpush.msra.mxu0 %v386
    %1414 = vmatpush.msra.mxu0 %v378
    %1415 = vmatpush.msra.mxu0 %v370
    %1416 = vmatmul.f32.gmra.mxu0 %v304
    %v1417 = vpop.f32.mrf.mxu0
    %v1418 = vadd.f32 0.0, %v1417
    %1419 = vmatmul.f32.gmra.mxu0 %v308
    %v1420 = vpop.f32.mrf.mxu0
    %v1421 = vadd.f32 0.0, %v1420
    %1422 = vmatmul.f32.gmra.mxu0 %v312
    %v1423 = vpop.f32.mrf.mxu0
    %v1424 = vadd.f32 0.0, %v1423
    %1425 = vmatmul.f32.gmra.mxu0 %v316
    %v1426 = vpop.f32.mrf.mxu0
    %v1427 = vadd.f32 0.0, %v1426
    %1428 = vmatmul.f32.gmra.mxu0 %v320
    %v1429 = vpop.f32.mrf.mxu0
    %v1430 = vadd.f32 0.0, %v1429
    %1431 = vmatmul.f32.gmra.mxu0 %v324
    %v1432 = vpop.f32.mrf.mxu0
    %v1433 = vadd.f32 0.0, %v1432
    %1434 = vmatmul.f32.gmra.mxu0 %v328
    %v1435 = vpop.f32.mrf.mxu0
    %v1436 = vadd.f32 0.0, %v1435
    %1437 = vmatmul.f32.gmra.mxu0 %v332
    %v1438 = vpop.f32.mrf.mxu0
    %v1439 = vadd.f32 0.0, %v1438
    %1440 = vmatmul.f32.gmra.mxu0 %v336
    %v1441 = vpop.f32.mrf.mxu0
    %v1442 = vadd.f32 0.0, %v1441
    %1443 = vmatmul.f32.gmra.mxu0 %v340
    %v1444 = vpop.f32.mrf.mxu0
    %v1445 = vadd.f32 0.0, %v1444
    %1446 = vmatmul.f32.gmra.mxu0 %v344
    %v1447 = vpop.f32.mrf.mxu0
    %v1448 = vadd.f32 0.0, %v1447
    %1449 = vmatmul.f32.gmra.mxu0 %v348
    %v1450 = vpop.f32.mrf.mxu0
    %v1451 = vadd.f32 0.0, %v1450
    %1452 = vmatmul.f32.gmra.mxu0 %v352
    %v1453 = vpop.f32.mrf.mxu0
    %v1454 = vadd.f32 0.0, %v1453
    %1455 = vmatmul.f32.gmra.mxu0 %v356
    %v1456 = vpop.f32.mrf.mxu0
    %v1457 = vadd.f32 0.0, %v1456
    %1458 = vmatmul.f32.gmra.mxu0 %v360
    %v1459 = vpop.f32.mrf.mxu0
    %v1460 = vadd.f32 0.0, %v1459
    %1461 = vmatmul.f32.gmra.mxu0 %v364
    %v1462 = vpop.f32.mrf.mxu0
    %v1463 = vadd.f32 0.0, %v1462
    %1464 = vdwg.mxu0
    %1465 = vmatpush.msra.mxu0 %v618
    %1466 = vmatpush.msra.mxu0 %v610
    %1467 = vmatpush.msra.mxu0 %v602
    %1468 = vmatpush.msra.mxu0 %v594
    %1469 = vmatpush.msra.mxu0 %v586
    %1470 = vmatpush.msra.mxu0 %v578
    %1471 = vmatpush.msra.mxu0 %v570
    %1472 = vmatpush.msra.mxu0 %v562
    %1473 = vmatpush.msra.mxu0 %v554
    %1474 = vmatpush.msra.mxu0 %v546
    %1475 = vmatpush.msra.mxu0 %v538
    %1476 = vmatpush.msra.mxu0 %v530
    %1477 = vmatpush.msra.mxu0 %v522
    %1478 = vmatpush.msra.mxu0 %v514
    %1479 = vmatpush.msra.mxu0 %v506
    %1480 = vmatpush.msra.mxu0 %v498
    %1481 = vmatmul.f32.gmra.mxu0 %v305
    %v1482 = vpop.f32.mrf.mxu0
    %v1483 = vadd.f32 %v1418, %v1482
    %1484 = vmatmul.f32.gmra.mxu0 %v309
    %v1485 = vpop.f32.mrf.mxu0
    %v1486 = vadd.f32 %v1421, %v1485
    %1487 = vmatmul.f32.gmra.mxu0 %v313
    %v1488 = vpop.f32.mrf.mxu0
    %v1489 = vadd.f32 %v1424, %v1488
    %1490 = vmatmul.f32.gmra.mxu0 %v317
    %v1491 = vpop.f32.mrf.mxu0
    %v1492 = vadd.f32 %v1427, %v1491
    %1493 = vmatmul.f32.gmra.mxu0 %v321
    %v1494 = vpop.f32.mrf.mxu0
    %v1495 = vadd.f32 %v1430, %v1494
    %1496 = vmatmul.f32.gmra.mxu0 %v325
    %v1497 = vpop.f32.mrf.mxu0
    %v1498 = vadd.f32 %v1433, %v1497
    %1499 = vmatmul.f32.gmra.mxu0 %v329
    %v1500 = vpop.f32.mrf.mxu0
    %v1501 = vadd.f32 %v1436, %v1500
    %1502 = vmatmul.f32.gmra.mxu0 %v333
    %v1503 = vpop.f32.mrf.mxu0
    %v1504 = vadd.f32 %v1439, %v1503
    %1505 = vmatmul.f32.gmra.mxu0 %v337
    %v1506 = vpop.f32.mrf.mxu0
    %v1507 = vadd.f32 %v1442, %v1506
    %1508 = vmatmul.f32.gmra.mxu0 %v341
    %v1509 = vpop.f32.mrf.mxu0
    %v1510 = vadd.f32 %v1445, %v1509
    %1511 = vmatmul.f32.gmra.mxu0 %v345
    %v1512 = vpop.f32.mrf.mxu0
    %v1513 = vadd.f32 %v1448, %v1512
    %1514 = vmatmul.f32.gmra.mxu0 %v349
    %v1515 = vpop.f32.mrf.mxu0
    %v1516 = vadd.f32 %v1451, %v1515
    %1517 = vmatmul.f32.gmra.mxu0 %v353
    %v1518 = vpop.f32.mrf.mxu0
    %v1519 = vadd.f32 %v1454, %v1518
    %1520 = vmatmul.f32.gmra.mxu0 %v357
    %v1521 = vpop.f32.mrf.mxu0
    %v1522 = vadd.f32 %v1457, %v1521
    %1523 = vmatmul.f32.gmra.mxu0 %v361
    %v1524 = vpop.f32.mrf.mxu0
    %v1525 = vadd.f32 %v1460, %v1524
    %1526 = vmatmul.f32.gmra.mxu0 %v365
    %v1527 = vpop.f32.mrf.mxu0
    %v1528 = vadd.f32 %v1463, %v1527
    %1529 = vdwg.mxu0
    %1530 = vmatpush.msra.mxu0 %v746
    %1531 = vmatpush.msra.mxu0 %v738
    %1532 = vmatpush.msra.mxu0 %v730
    %1533 = vmatpush.msra.mxu0 %v722
    %1534 = vmatpush.msra.mxu0 %v714
    %1535 = vmatpush.msra.mxu0 %v706
    %1536 = vmatpush.msra.mxu0 %v698
    %1537 = vmatpush.msra.mxu0 %v690
    %1538 = vmatpush.msra.mxu0 %v682
    %1539 = vmatpush.msra.mxu0 %v674
    %1540 = vmatpush.msra.mxu0 %v666
    %1541 = vmatpush.msra.mxu0 %v658
    %1542 = vmatpush.msra.mxu0 %v650
    %1543 = vmatpush.msra.mxu0 %v642
    %1544 = vmatpush.msra.mxu0 %v634
    %1545 = vmatpush.msra.mxu0 %v626
    %1546 = vmatmul.f32.gmra.mxu0 %v306
    %v1547 = vpop.f32.mrf.mxu0
    %v1548 = vadd.f32 %v1483, %v1547
    %1549 = vmatmul.f32.gmra.mxu0 %v310
    %v1550 = vpop.f32.mrf.mxu0
    %v1551 = vadd.f32 %v1486, %v1550
    %1552 = vmatmul.f32.gmra.mxu0 %v314
    %v1553 = vpop.f32.mrf.mxu0
    %v1554 = vadd.f32 %v1489, %v1553
    %1555 = vmatmul.f32.gmra.mxu0 %v318
    %v1556 = vpop.f32.mrf.mxu0
    %v1557 = vadd.f32 %v1492, %v1556
    %1558 = vmatmul.f32.gmra.mxu0 %v322
    %v1559 = vpop.f32.mrf.mxu0
    %v1560 = vadd.f32 %v1495, %v1559
    %1561 = vmatmul.f32.gmra.mxu0 %v326
    %v1562 = vpop.f32.mrf.mxu0
    %v1563 = vadd.f32 %v1498, %v1562
    %1564 = vmatmul.f32.gmra.mxu0 %v330
    %v1565 = vpop.f32.mrf.mxu0
    %v1566 = vadd.f32 %v1501, %v1565
    %1567 = vmatmul.f32.gmra.mxu0 %v334
    %v1568 = vpop.f32.mrf.mxu0
    %v1569 = vadd.f32 %v1504, %v1568
    %1570 = vmatmul.f32.gmra.mxu0 %v338
    %v1571 = vpop.f32.mrf.mxu0
    %v1572 = vadd.f32 %v1507, %v1571
    %1573 = vmatmul.f32.gmra.mxu0 %v342
    %v1574 = vpop.f32.mrf.mxu0
    %v1575 = vadd.f32 %v1510, %v1574
    %1576 = vmatmul.f32.gmra.mxu0 %v346
    %v1577 = vpop.f32.mrf.mxu0
    %v1578 = vadd.f32 %v1513, %v1577
    %1579 = vmatmul.f32.gmra.mxu0 %v350
    %v1580 = vpop.f32.mrf.mxu0
    %v1581 = vadd.f32 %v1516, %v1580
    %1582 = vmatmul.f32.gmra.mxu0 %v354
    %v1583 = vpop.f32.mrf.mxu0
    %v1584 = vadd.f32 %v1519, %v1583
    %1585 = vmatmul.f32.gmra.mxu0 %v358
    %v1586 = vpop.f32.mrf.mxu0
    %v1587 = vadd.f32 %v1522, %v1586
    %1588 = vmatmul.f32.gmra.mxu0 %v362
    %v1589 = vpop.f32.mrf.mxu0
    %v1590 = vadd.f32 %v1525, %v1589
    %1591 = vmatmul.f32.gmra.mxu0 %v366
    %v1592 = vpop.f32.mrf.mxu0
    %v1593 = vadd.f32 %v1528, %v1592
    %1594 = vdwg.mxu0
    %1595 = vmatpush.msra.mxu0 %v874
    %1596 = vmatpush.msra.mxu0 %v866
    %1597 = vmatpush.msra.mxu0 %v858
    %1598 = vmatpush.msra.mxu0 %v850
    %1599 = vmatpush.msra.mxu0 %v842
    %1600 = vmatpush.msra.mxu0 %v834
    %1601 = vmatpush.msra.mxu0 %v826
    %1602 = vmatpush.msra.mxu0 %v818
    %1603 = vmatpush.msra.mxu0 %v810
    %1604 = vmatpush.msra.mxu0 %v802
    %1605 = vmatpush.msra.mxu0 %v794
    %1606 = vmatpush.msra.mxu0 %v786
    %1607 = vmatpush.msra.mxu0 %v778
    %1608 = vmatpush.msra.mxu0 %v770
    %1609 = vmatpush.msra.mxu0 %v762
    %1610 = vmatpush.msra.mxu0 %v754
    %1611 = vmatmul.f32.gmra.mxu0 %v307
    %v1612 = vpop.f32.mrf.mxu0
    %v1613 = vadd.f32 %v1548, %v1612
    %1614 = vmatmul.f32.gmra.mxu0 %v311
    %v1615 = vpop.f32.mrf.mxu0
    %v1616 = vadd.f32 %v1551, %v1615
    %1617 = vmatmul.f32.gmra.mxu0 %v315
    %v1618 = vpop.f32.mrf.mxu0
    %v1619 = vadd.f32 %v1554, %v1618
    %1620 = vmatmul.f32.gmra.mxu0 %v319
    %v1621 = vpop.f32.mrf.mxu0
    %v1622 = vadd.f32 %v1557, %v1621
    %1623 = vmatmul.f32.gmra.mxu0 %v323
    %v1624 = vpop.f32.mrf.mxu0
    %v1625 = vadd.f32 %v1560, %v1624
    %1626 = vmatmul.f32.gmra.mxu0 %v327
    %v1627 = vpop.f32.mrf.mxu0
    %v1628 = vadd.f32 %v1563, %v1627
    %1629 = vmatmul.f32.gmra.mxu0 %v331
    %v1630 = vpop.f32.mrf.mxu0
    %v1631 = vadd.f32 %v1566, %v1630
    %1632 = vmatmul.f32.gmra.mxu0 %v335
    %v1633 = vpop.f32.mrf.mxu0
    %v1634 = vadd.f32 %v1569, %v1633
    %1635 = vmatmul.f32.gmra.mxu0 %v339
    %v1636 = vpop.f32.mrf.mxu0
    %v1637 = vadd.f32 %v1572, %v1636
    %1638 = vmatmul.f32.gmra.mxu0 %v343
    %v1639 = vpop.f32.mrf.mxu0
    %v1640 = vadd.f32 %v1575, %v1639
    %1641 = vmatmul.f32.gmra.mxu0 %v347
    %v1642 = vpop.f32.mrf.mxu0
    %v1643 = vadd.f32 %v1578, %v1642
    %1644 = vmatmul.f32.gmra.mxu0 %v351
    %v1645 = vpop.f32.mrf.mxu0
    %v1646 = vadd.f32 %v1581, %v1645
    %1647 = vmatmul.f32.gmra.mxu0 %v355
    %v1648 = vpop.f32.mrf.mxu0
    %v1649 = vadd.f32 %v1584, %v1648
    %1650 = vmatmul.f32.gmra.mxu0 %v359
    %v1651 = vpop.f32.mrf.mxu0
    %v1652 = vadd.f32 %v1587, %v1651
    %1653 = vmatmul.f32.gmra.mxu0 %v363
    %v1654 = vpop.f32.mrf.mxu0
    %v1655 = vadd.f32 %v1590, %v1654
    %1656 = vmatmul.f32.gmra.mxu0 %v367
    %v1657 = vpop.f32.mrf.mxu0
    %v1658 = vadd.f32 %v1593, %v1657
    %1659 = vdwg.mxu0
    %1660 = vmatpush.msra.mxu0 %v491
    %1661 = vmatpush.msra.mxu0 %v483
    %1662 = vmatpush.msra.mxu0 %v475
    %1663 = vmatpush.msra.mxu0 %v467
    %1664 = vmatpush.msra.mxu0 %v459
    %1665 = vmatpush.msra.mxu0 %v451
    %1666 = vmatpush.msra.mxu0 %v443
    %1667 = vmatpush.msra.mxu0 %v435
    %1668 = vmatpush.msra.mxu0 %v427
    %1669 = vmatpush.msra.mxu0 %v419
    %1670 = vmatpush.msra.mxu0 %v411
    %1671 = vmatpush.msra.mxu0 %v403
    %1672 = vmatpush.msra.mxu0 %v395
    %1673 = vmatpush.msra.mxu0 %v387
    %1674 = vmatpush.msra.mxu0 %v379
    %1675 = vmatpush.msra.mxu0 %v371
    %1676 = vmatmul.f32.gmra.mxu0 %v304
    %v1677 = vpop.f32.mrf.mxu0
    %v1678 = vadd.f32 0.0, %v1677
    %1679 = vmatmul.f32.gmra.mxu0 %v308
    %v1680 = vpop.f32.mrf.mxu0
    %v1681 = vadd.f32 0.0, %v1680
    %1682 = vmatmul.f32.gmra.mxu0 %v312
    %v1683 = vpop.f32.mrf.mxu0
    %v1684 = vadd.f32 0.0, %v1683
    %1685 = vmatmul.f32.gmra.mxu0 %v316
    %v1686 = vpop.f32.mrf.mxu0
    %v1687 = vadd.f32 0.0, %v1686
    %1688 = vmatmul.f32.gmra.mxu0 %v320
    %v1689 = vpop.f32.mrf.mxu0
    %v1690 = vadd.f32 0.0, %v1689
    %1691 = vmatmul.f32.gmra.mxu0 %v324
    %v1692 = vpop.f32.mrf.mxu0
    %v1693 = vadd.f32 0.0, %v1692
    %1694 = vmatmul.f32.gmra.mxu0 %v328
    %v1695 = vpop.f32.mrf.mxu0
    %v1696 = vadd.f32 0.0, %v1695
    %1697 = vmatmul.f32.gmra.mxu0 %v332
    %v1698 = vpop.f32.mrf.mxu0
    %v1699 = vadd.f32 0.0, %v1698
    %1700 = vmatmul.f32.gmra.mxu0 %v336
    %v1701 = vpop.f32.mrf.mxu0
    %v1702 = vadd.f32 0.0, %v1701
    %1703 = vmatmul.f32.gmra.mxu0 %v340
    %v1704 = vpop.f32.mrf.mxu0
    %v1705 = vadd.f32 0.0, %v1704
    %1706 = vmatmul.f32.gmra.mxu0 %v344
    %v1707 = vpop.f32.mrf.mxu0
    %v1708 = vadd.f32 0.0, %v1707
    %1709 = vmatmul.f32.gmra.mxu0 %v348
    %v1710 = vpop.f32.mrf.mxu0
    %v1711 = vadd.f32 0.0, %v1710
    %1712 = vmatmul.f32.gmra.mxu0 %v352
    %v1713 = vpop.f32.mrf.mxu0
    %v1714 = vadd.f32 0.0, %v1713
    %1715 = vmatmul.f32.gmra.mxu0 %v356
    %v1716 = vpop.f32.mrf.mxu0
    %v1717 = vadd.f32 0.0, %v1716
    %1718 = vmatmul.f32.gmra.mxu0 %v360
    %v1719 = vpop.f32.mrf.mxu0
    %v1720 = vadd.f32 0.0, %v1719
    %1721 = vmatmul.f32.gmra.mxu0 %v364
    %v1722 = vpop.f32.mrf.mxu0
    %v1723 = vadd.f32 0.0, %v1722
    %1724 = vdwg.mxu0
    %1725 = vmatpush.msra.mxu0 %v619
    %1726 = vmatpush.msra.mxu0 %v611
    %1727 = vmatpush.msra.mxu0 %v603
    %1728 = vmatpush.msra.mxu0 %v595
    %1729 = vmatpush.msra.mxu0 %v587
    %1730 = vmatpush.msra.mxu0 %v579
    %1731 = vmatpush.msra.mxu0 %v571
    %1732 = vmatpush.msra.mxu0 %v563
    %1733 = vmatpush.msra.mxu0 %v555
    %1734 = vmatpush.msra.mxu0 %v547
    %1735 = vmatpush.msra.mxu0 %v539
    %1736 = vmatpush.msra.mxu0 %v531
    %1737 = vmatpush.msra.mxu0 %v523
    %1738 = vmatpush.msra.mxu0 %v515
    %1739 = vmatpush.msra.mxu0 %v507
    %1740 = vmatpush.msra.mxu0 %v499
    %1741 = vmatmul.f32.gmra.mxu0 %v305
    %v1742 = vpop.f32.mrf.mxu0
    %v1743 = vadd.f32 %v1678, %v1742
    %1744 = vmatmul.f32.gmra.mxu0 %v309
    %v1745 = vpop.f32.mrf.mxu0
    %v1746 = vadd.f32 %v1681, %v1745
    %1747 = vmatmul.f32.gmra.mxu0 %v313
    %v1748 = vpop.f32.mrf.mxu0
    %v1749 = vadd.f32 %v1684, %v1748
    %1750 = vmatmul.f32.gmra.mxu0 %v317
    %v1751 = vpop.f32.mrf.mxu0
    %v1752 = vadd.f32 %v1687, %v1751
    %1753 = vmatmul.f32.gmra.mxu0 %v321
    %v1754 = vpop.f32.mrf.mxu0
    %v1755 = vadd.f32 %v1690, %v1754
    %1756 = vmatmul.f32.gmra.mxu0 %v325
    %v1757 = vpop.f32.mrf.mxu0
    %v1758 = vadd.f32 %v1693, %v1757
    %1759 = vmatmul.f32.gmra.mxu0 %v329
    %v1760 = vpop.f32.mrf.mxu0
    %v1761 = vadd.f32 %v1696, %v1760
    %1762 = vmatmul.f32.gmra.mxu0 %v333
    %v1763 = vpop.f32.mrf.mxu0
    %v1764 = vadd.f32 %v1699, %v1763
    %1765 = vmatmul.f32.gmra.mxu0 %v337
    %v1766 = vpop.f32.mrf.mxu0
    %v1767 = vadd.f32 %v1702, %v1766
    %1768 = vmatmul.f32.gmra.mxu0 %v341
    %v1769 = vpop.f32.mrf.mxu0
    %v1770 = vadd.f32 %v1705, %v1769
    %1771 = vmatmul.f32.gmra.mxu0 %v345
    %v1772 = vpop.f32.mrf.mxu0
    %v1773 = vadd.f32 %v1708, %v1772
    %1774 = vmatmul.f32.gmra.mxu0 %v349
    %v1775 = vpop.f32.mrf.mxu0
    %v1776 = vadd.f32 %v1711, %v1775
    %1777 = vmatmul.f32.gmra.mxu0 %v353
    %v1778 = vpop.f32.mrf.mxu0
    %v1779 = vadd.f32 %v1714, %v1778
    %1780 = vmatmul.f32.gmra.mxu0 %v357
    %v1781 = vpop.f32.mrf.mxu0
    %v1782 = vadd.f32 %v1717, %v1781
    %1783 = vmatmul.f32.gmra.mxu0 %v361
    %v1784 = vpop.f32.mrf.mxu0
    %v1785 = vadd.f32 %v1720, %v1784
    %1786 = vmatmul.f32.gmra.mxu0 %v365
    %v1787 = vpop.f32.mrf.mxu0
    %v1788 = vadd.f32 %v1723, %v1787
    %1789 = vdwg.mxu0
    %1790 = vmatpush.msra.mxu0 %v747
    %1791 = vmatpush.msra.mxu0 %v739
    %1792 = vmatpush.msra.mxu0 %v731
    %1793 = vmatpush.msra.mxu0 %v723
    %1794 = vmatpush.msra.mxu0 %v715
    %1795 = vmatpush.msra.mxu0 %v707
    %1796 = vmatpush.msra.mxu0 %v699
    %1797 = vmatpush.msra.mxu0 %v691
    %1798 = vmatpush.msra.mxu0 %v683
    %1799 = vmatpush.msra.mxu0 %v675
    %1800 = vmatpush.msra.mxu0 %v667
    %1801 = vmatpush.msra.mxu0 %v659
    %1802 = vmatpush.msra.mxu0 %v651
    %1803 = vmatpush.msra.mxu0 %v643
    %1804 = vmatpush.msra.mxu0 %v635
    %1805 = vmatpush.msra.mxu0 %v627
    %1806 = vmatmul.f32.gmra.mxu0 %v306
    %v1807 = vpop.f32.mrf.mxu0
    %v1808 = vadd.f32 %v1743, %v1807
    %1809 = vmatmul.f32.gmra.mxu0 %v310
    %v1810 = vpop.f32.mrf.mxu0
    %v1811 = vadd.f32 %v1746, %v1810
    %1812 = vmatmul.f32.gmra.mxu0 %v314
    %v1813 = vpop.f32.mrf.mxu0
    %v1814 = vadd.f32 %v1749, %v1813
    %1815 = vmatmul.f32.gmra.mxu0 %v318
    %v1816 = vpop.f32.mrf.mxu0
    %v1817 = vadd.f32 %v1752, %v1816
    %1818 = vmatmul.f32.gmra.mxu0 %v322
    %v1819 = vpop.f32.mrf.mxu0
    %v1820 = vadd.f32 %v1755, %v1819
    %1821 = vmatmul.f32.gmra.mxu0 %v326
    %v1822 = vpop.f32.mrf.mxu0
    %v1823 = vadd.f32 %v1758, %v1822
    %1824 = vmatmul.f32.gmra.mxu0 %v330
    %v1825 = vpop.f32.mrf.mxu0
    %v1826 = vadd.f32 %v1761, %v1825
    %1827 = vmatmul.f32.gmra.mxu0 %v334
    %v1828 = vpop.f32.mrf.mxu0
    %v1829 = vadd.f32 %v1764, %v1828
    %1830 = vmatmul.f32.gmra.mxu0 %v338
    %v1831 = vpop.f32.mrf.mxu0
    %v1832 = vadd.f32 %v1767, %v1831
    %1833 = vmatmul.f32.gmra.mxu0 %v342
    %v1834 = vpop.f32.mrf.mxu0
    %v1835 = vadd.f32 %v1770, %v1834
    %1836 = vmatmul.f32.gmra.mxu0 %v346
    %v1837 = vpop.f32.mrf.mxu0
    %v1838 = vadd.f32 %v1773, %v1837
    %1839 = vmatmul.f32.gmra.mxu0 %v350
    %v1840 = vpop.f32.mrf.mxu0
    %v1841 = vadd.f32 %v1776, %v1840
    %1842 = vmatmul.f32.gmra.mxu0 %v354
    %v1843 = vpop.f32.mrf.mxu0
    %v1844 = vadd.f32 %v1779, %v1843
    %1845 = vmatmul.f32.gmra.mxu0 %v358
    %v1846 = vpop.f32.mrf.mxu0
    %v1847 = vadd.f32 %v1782, %v1846
    %1848 = vmatmul.f32.gmra.mxu0 %v362
    %v1849 = vpop.f32.mrf.mxu0
    %v1850 = vadd.f32 %v1785, %v1849
    %1851 = vmatmul.f32.gmra.mxu0 %v366
    %v1852 = vpop.f32.mrf.mxu0
    %v1853 = vadd.f32 %v1788, %v1852
    %1854 = vdwg.mxu0
    %1855 = vmatpush.msra.mxu0 %v875
    %1856 = vmatpush.msra.mxu0 %v867
    %1857 = vmatpush.msra.mxu0 %v859
    %1858 = vmatpush.msra.mxu0 %v851
    %1859 = vmatpush.msra.mxu0 %v843
    %1860 = vmatpush.msra.mxu0 %v835
    %1861 = vmatpush.msra.mxu0 %v827
    %1862 = vmatpush.msra.mxu0 %v819
    %1863 = vmatpush.msra.mxu0 %v811
    %1864 = vmatpush.msra.mxu0 %v803
    %1865 = vmatpush.msra.mxu0 %v795
    %1866 = vmatpush.msra.mxu0 %v787
    %1867 = vmatpush.msra.mxu0 %v779
    %1868 = vmatpush.msra.mxu0 %v771
    %1869 = vmatpush.msra.mxu0 %v763
    %1870 = vmatpush.msra.mxu0 %v755
    %1871 = vmatmul.f32.gmra.mxu0 %v307
    %v1872 = vpop.f32.mrf.mxu0
    %v1873 = vadd.f32 %v1808, %v1872
    %1874 = vmatmul.f32.gmra.mxu0 %v311
    %v1875 = vpop.f32.mrf.mxu0
    %v1876 = vadd.f32 %v1811, %v1875
    %1877 = vmatmul.f32.gmra.mxu0 %v315
    %v1878 = vpop.f32.mrf.mxu0
    %v1879 = vadd.f32 %v1814, %v1878
    %1880 = vmatmul.f32.gmra.mxu0 %v319
    %v1881 = vpop.f32.mrf.mxu0
    %v1882 = vadd.f32 %v1817, %v1881
    %1883 = vmatmul.f32.gmra.mxu0 %v323
    %v1884 = vpop.f32.mrf.mxu0
    %v1885 = vadd.f32 %v1820, %v1884
    %1886 = vmatmul.f32.gmra.mxu0 %v327
    %v1887 = vpop.f32.mrf.mxu0
    %v1888 = vadd.f32 %v1823, %v1887
    %1889 = vmatmul.f32.gmra.mxu0 %v331
    %v1890 = vpop.f32.mrf.mxu0
    %v1891 = vadd.f32 %v1826, %v1890
    %1892 = vmatmul.f32.gmra.mxu0 %v335
    %v1893 = vpop.f32.mrf.mxu0
    %v1894 = vadd.f32 %v1829, %v1893
    %1895 = vmatmul.f32.gmra.mxu0 %v339
    %v1896 = vpop.f32.mrf.mxu0
    %v1897 = vadd.f32 %v1832, %v1896
    %1898 = vmatmul.f32.gmra.mxu0 %v343
    %v1899 = vpop.f32.mrf.mxu0
    %v1900 = vadd.f32 %v1835, %v1899
    %1901 = vmatmul.f32.gmra.mxu0 %v347
    %v1902 = vpop.f32.mrf.mxu0
    %v1903 = vadd.f32 %v1838, %v1902
    %1904 = vmatmul.f32.gmra.mxu0 %v351
    %v1905 = vpop.f32.mrf.mxu0
    %v1906 = vadd.f32 %v1841, %v1905
    %1907 = vmatmul.f32.gmra.mxu0 %v355
    %v1908 = vpop.f32.mrf.mxu0
    %v1909 = vadd.f32 %v1844, %v1908
    %1910 = vmatmul.f32.gmra.mxu0 %v359
    %v1911 = vpop.f32.mrf.mxu0
    %v1912 = vadd.f32 %v1847, %v1911
    %1913 = vmatmul.f32.gmra.mxu0 %v363
    %v1914 = vpop.f32.mrf.mxu0
    %v1915 = vadd.f32 %v1850, %v1914
    %1916 = vmatmul.f32.gmra.mxu0 %v367
    %v1917 = vpop.f32.mrf.mxu0
    %v1918 = vadd.f32 %v1853, %v1917
    %1919 = vdwg.mxu0
    %1920 = vmatpush.msra.mxu0 %v492
    %1921 = vmatpush.msra.mxu0 %v484
    %1922 = vmatpush.msra.mxu0 %v476
    %1923 = vmatpush.msra.mxu0 %v468
    %1924 = vmatpush.msra.mxu0 %v460
    %1925 = vmatpush.msra.mxu0 %v452
    %1926 = vmatpush.msra.mxu0 %v444
    %1927 = vmatpush.msra.mxu0 %v436
    %1928 = vmatpush.msra.mxu0 %v428
    %1929 = vmatpush.msra.mxu0 %v420
    %1930 = vmatpush.msra.mxu0 %v412
    %1931 = vmatpush.msra.mxu0 %v404
    %1932 = vmatpush.msra.mxu0 %v396
    %1933 = vmatpush.msra.mxu0 %v388
    %1934 = vmatpush.msra.mxu0 %v380
    %1935 = vmatpush.msra.mxu0 %v372
    %1936 = vmatmul.f32.gmra.mxu0 %v304
    %v1937 = vpop.f32.mrf.mxu0
    %v1938 = vadd.f32 0.0, %v1937
    %1939 = vmatmul.f32.gmra.mxu0 %v308
    %v1940 = vpop.f32.mrf.mxu0
    %v1941 = vadd.f32 0.0, %v1940
    %1942 = vmatmul.f32.gmra.mxu0 %v312
    %v1943 = vpop.f32.mrf.mxu0
    %v1944 = vadd.f32 0.0, %v1943
    %1945 = vmatmul.f32.gmra.mxu0 %v316
    %v1946 = vpop.f32.mrf.mxu0
    %v1947 = vadd.f32 0.0, %v1946
    %1948 = vmatmul.f32.gmra.mxu0 %v320
    %v1949 = vpop.f32.mrf.mxu0
    %v1950 = vadd.f32 0.0, %v1949
    %1951 = vmatmul.f32.gmra.mxu0 %v324
    %v1952 = vpop.f32.mrf.mxu0
    %v1953 = vadd.f32 0.0, %v1952
    %1954 = vmatmul.f32.gmra.mxu0 %v328
    %v1955 = vpop.f32.mrf.mxu0
    %v1956 = vadd.f32 0.0, %v1955
    %1957 = vmatmul.f32.gmra.mxu0 %v332
    %v1958 = vpop.f32.mrf.mxu0
    %v1959 = vadd.f32 0.0, %v1958
    %1960 = vmatmul.f32.gmra.mxu0 %v336
    %v1961 = vpop.f32.mrf.mxu0
    %v1962 = vadd.f32 0.0, %v1961
    %1963 = vmatmul.f32.gmra.mxu0 %v340
    %v1964 = vpop.f32.mrf.mxu0
    %v1965 = vadd.f32 0.0, %v1964
    %1966 = vmatmul.f32.gmra.mxu0 %v344
    %v1967 = vpop.f32.mrf.mxu0
    %v1968 = vadd.f32 0.0, %v1967
    %1969 = vmatmul.f32.gmra.mxu0 %v348
    %v1970 = vpop.f32.mrf.mxu0
    %v1971 = vadd.f32 0.0, %v1970
    %1972 = vmatmul.f32.gmra.mxu0 %v352
    %v1973 = vpop.f32.mrf.mxu0
    %v1974 = vadd.f32 0.0, %v1973
    %1975 = vmatmul.f32.gmra.mxu0 %v356
    %v1976 = vpop.f32.mrf.mxu0
    %v1977 = vadd.f32 0.0, %v1976
    %1978 = vmatmul.f32.gmra.mxu0 %v360
    %v1979 = vpop.f32.mrf.mxu0
    %v1980 = vadd.f32 0.0, %v1979
    %1981 = vmatmul.f32.gmra.mxu0 %v364
    %v1982 = vpop.f32.mrf.mxu0
    %v1983 = vadd.f32 0.0, %v1982
    %1984 = vdwg.mxu0
    %1985 = vmatpush.msra.mxu0 %v620
    %1986 = vmatpush.msra.mxu0 %v612
    %1987 = vmatpush.msra.mxu0 %v604
    %1988 = vmatpush.msra.mxu0 %v596
    %1989 = vmatpush.msra.mxu0 %v588
    %1990 = vmatpush.msra.mxu0 %v580
    %1991 = vmatpush.msra.mxu0 %v572
    %1992 = vmatpush.msra.mxu0 %v564
    %1993 = vmatpush.msra.mxu0 %v556
    %1994 = vmatpush.msra.mxu0 %v548
    %1995 = vmatpush.msra.mxu0 %v540
    %1996 = vmatpush.msra.mxu0 %v532
    %1997 = vmatpush.msra.mxu0 %v524
    %1998 = vmatpush.msra.mxu0 %v516
    %1999 = vmatpush.msra.mxu0 %v508
    %2000 = vmatpush.msra.mxu0 %v500
    %2001 = vmatmul.f32.gmra.mxu0 %v305
    %v2002 = vpop.f32.mrf.mxu0
    %v2003 = vadd.f32 %v1938, %v2002
    %2004 = vmatmul.f32.gmra.mxu0 %v309
    %v2005 = vpop.f32.mrf.mxu0
    %v2006 = vadd.f32 %v1941, %v2005
    %2007 = vmatmul.f32.gmra.mxu0 %v313
    %v2008 = vpop.f32.mrf.mxu0
    %v2009 = vadd.f32 %v1944, %v2008
    %2010 = vmatmul.f32.gmra.mxu0 %v317
    %v2011 = vpop.f32.mrf.mxu0
    %v2012 = vadd.f32 %v1947, %v2011
    %2013 = vmatmul.f32.gmra.mxu0 %v321
    %v2014 = vpop.f32.mrf.mxu0
    %v2015 = vadd.f32 %v1950, %v2014
    %2016 = vmatmul.f32.gmra.mxu0 %v325
    %v2017 = vpop.f32.mrf.mxu0
    %v2018 = vadd.f32 %v1953, %v2017
    %2019 = vmatmul.f32.gmra.mxu0 %v329
    %v2020 = vpop.f32.mrf.mxu0
    %v2021 = vadd.f32 %v1956, %v2020
    %2022 = vmatmul.f32.gmra.mxu0 %v333
    %v2023 = vpop.f32.mrf.mxu0
    %v2024 = vadd.f32 %v1959, %v2023
    %2025 = vmatmul.f32.gmra.mxu0 %v337
    %v2026 = vpop.f32.mrf.mxu0
    %v2027 = vadd.f32 %v1962, %v2026
    %2028 = vmatmul.f32.gmra.mxu0 %v341
    %v2029 = vpop.f32.mrf.mxu0
    %v2030 = vadd.f32 %v1965, %v2029
    %2031 = vmatmul.f32.gmra.mxu0 %v345
    %v2032 = vpop.f32.mrf.mxu0
    %v2033 = vadd.f32 %v1968, %v2032
    %2034 = vmatmul.f32.gmra.mxu0 %v349
    %v2035 = vpop.f32.mrf.mxu0
    %v2036 = vadd.f32 %v1971, %v2035
    %2037 = vmatmul.f32.gmra.mxu0 %v353
    %v2038 = vpop.f32.mrf.mxu0
    %v2039 = vadd.f32 %v1974, %v2038
    %2040 = vmatmul.f32.gmra.mxu0 %v357
    %v2041 = vpop.f32.mrf.mxu0
    %v2042 = vadd.f32 %v1977, %v2041
    %2043 = vmatmul.f32.gmra.mxu0 %v361
    %v2044 = vpop.f32.mrf.mxu0
    %v2045 = vadd.f32 %v1980, %v2044
    %2046 = vmatmul.f32.gmra.mxu0 %v365
    %v2047 = vpop.f32.mrf.mxu0
    %v2048 = vadd.f32 %v1983, %v2047
    %2049 = vdwg.mxu0
    %2050 = vmatpush.msra.mxu0 %v748
    %2051 = vmatpush.msra.mxu0 %v740
    %2052 = vmatpush.msra.mxu0 %v732
    %2053 = vmatpush.msra.mxu0 %v724
    %2054 = vmatpush.msra.mxu0 %v716
    %2055 = vmatpush.msra.mxu0 %v708
    %2056 = vmatpush.msra.mxu0 %v700
    %2057 = vmatpush.msra.mxu0 %v692
    %2058 = vmatpush.msra.mxu0 %v684
    %2059 = vmatpush.msra.mxu0 %v676
    %2060 = vmatpush.msra.mxu0 %v668
    %2061 = vmatpush.msra.mxu0 %v660
    %2062 = vmatpush.msra.mxu0 %v652
    %2063 = vmatpush.msra.mxu0 %v644
    %2064 = vmatpush.msra.mxu0 %v636
    %2065 = vmatpush.msra.mxu0 %v628
    %2066 = vmatmul.f32.gmra.mxu0 %v306
    %v2067 = vpop.f32.mrf.mxu0
    %v2068 = vadd.f32 %v2003, %v2067
    %2069 = vmatmul.f32.gmra.mxu0 %v310
    %v2070 = vpop.f32.mrf.mxu0
    %v2071 = vadd.f32 %v2006, %v2070
    %2072 = vmatmul.f32.gmra.mxu0 %v314
    %v2073 = vpop.f32.mrf.mxu0
    %v2074 = vadd.f32 %v2009, %v2073
    %2075 = vmatmul.f32.gmra.mxu0 %v318
    %v2076 = vpop.f32.mrf.mxu0
    %v2077 = vadd.f32 %v2012, %v2076
    %2078 = vmatmul.f32.gmra.mxu0 %v322
    %v2079 = vpop.f32.mrf.mxu0
    %v2080 = vadd.f32 %v2015, %v2079
    %2081 = vmatmul.f32.gmra.mxu0 %v326
    %v2082 = vpop.f32.mrf.mxu0
    %v2083 = vadd.f32 %v2018, %v2082
    %2084 = vmatmul.f32.gmra.mxu0 %v330
    %v2085 = vpop.f32.mrf.mxu0
    %v2086 = vadd.f32 %v2021, %v2085
    %2087 = vmatmul.f32.gmra.mxu0 %v334
    %v2088 = vpop.f32.mrf.mxu0
    %v2089 = vadd.f32 %v2024, %v2088
    %2090 = vmatmul.f32.gmra.mxu0 %v338
    %v2091 = vpop.f32.mrf.mxu0
    %v2092 = vadd.f32 %v2027, %v2091
    %2093 = vmatmul.f32.gmra.mxu0 %v342
    %v2094 = vpop.f32.mrf.mxu0
    %v2095 = vadd.f32 %v2030, %v2094
    %2096 = vmatmul.f32.gmra.mxu0 %v346
    %v2097 = vpop.f32.mrf.mxu0
    %v2098 = vadd.f32 %v2033, %v2097
    %2099 = vmatmul.f32.gmra.mxu0 %v350
    %v2100 = vpop.f32.mrf.mxu0
    %v2101 = vadd.f32 %v2036, %v2100
    %2102 = vmatmul.f32.gmra.mxu0 %v354
    %v2103 = vpop.f32.mrf.mxu0
    %v2104 = vadd.f32 %v2039, %v2103
    %2105 = vmatmul.f32.gmra.mxu0 %v358
    %v2106 = vpop.f32.mrf.mxu0
    %v2107 = vadd.f32 %v2042, %v2106
    %2108 = vmatmul.f32.gmra.mxu0 %v362
    %v2109 = vpop.f32.mrf.mxu0
    %v2110 = vadd.f32 %v2045, %v2109
    %2111 = vmatmul.f32.gmra.mxu0 %v366
    %v2112 = vpop.f32.mrf.mxu0
    %v2113 = vadd.f32 %v2048, %v2112
    %2114 = vdwg.mxu0
    %2115 = vmatpush.msra.mxu0 %v876
    %2116 = vmatpush.msra.mxu0 %v868
    %2117 = vmatpush.msra.mxu0 %v860
    %2118 = vmatpush.msra.mxu0 %v852
    %2119 = vmatpush.msra.mxu0 %v844
    %2120 = vmatpush.msra.mxu0 %v836
    %2121 = vmatpush.msra.mxu0 %v828
    %2122 = vmatpush.msra.mxu0 %v820
    %2123 = vmatpush.msra.mxu0 %v812
    %2124 = vmatpush.msra.mxu0 %v804
    %2125 = vmatpush.msra.mxu0 %v796
    %2126 = vmatpush.msra.mxu0 %v788
    %2127 = vmatpush.msra.mxu0 %v780
    %2128 = vmatpush.msra.mxu0 %v772
    %2129 = vmatpush.msra.mxu0 %v764
    %2130 = vmatpush.msra.mxu0 %v756
    %2131 = vmatmul.f32.gmra.mxu0 %v307
    %v2132 = vpop.f32.mrf.mxu0
    %v2133 = vadd.f32 %v2068, %v2132
    %2134 = vmatmul.f32.gmra.mxu0 %v311
    %v2135 = vpop.f32.mrf.mxu0
    %v2136 = vadd.f32 %v2071, %v2135
    %2137 = vmatmul.f32.gmra.mxu0 %v315
    %v2138 = vpop.f32.mrf.mxu0
    %v2139 = vadd.f32 %v2074, %v2138
    %2140 = vmatmul.f32.gmra.mxu0 %v319
    %v2141 = vpop.f32.mrf.mxu0
    %v2142 = vadd.f32 %v2077, %v2141
    %2143 = vmatmul.f32.gmra.mxu0 %v323
    %v2144 = vpop.f32.mrf.mxu0
    %v2145 = vadd.f32 %v2080, %v2144
    %2146 = vmatmul.f32.gmra.mxu0 %v327
    %v2147 = vpop.f32.mrf.mxu0
    %v2148 = vadd.f32 %v2083, %v2147
    %2149 = vmatmul.f32.gmra.mxu0 %v331
    %v2150 = vpop.f32.mrf.mxu0
    %v2151 = vadd.f32 %v2086, %v2150
    %2152 = vmatmul.f32.gmra.mxu0 %v335
    %v2153 = vpop.f32.mrf.mxu0
    %v2154 = vadd.f32 %v2089, %v2153
    %2155 = vmatmul.f32.gmra.mxu0 %v339
    %v2156 = vpop.f32.mrf.mxu0
    %v2157 = vadd.f32 %v2092, %v2156
    %2158 = vmatmul.f32.gmra.mxu0 %v343
    %v2159 = vpop.f32.mrf.mxu0
    %v2160 = vadd.f32 %v2095, %v2159
    %2161 = vmatmul.f32.gmra.mxu0 %v347
    %v2162 = vpop.f32.mrf.mxu0
    %v2163 = vadd.f32 %v2098, %v2162
    %2164 = vmatmul.f32.gmra.mxu0 %v351
    %v2165 = vpop.f32.mrf.mxu0
    %v2166 = vadd.f32 %v2101, %v2165
    %2167 = vmatmul.f32.gmra.mxu0 %v355
    %v2168 = vpop.f32.mrf.mxu0
    %v2169 = vadd.f32 %v2104, %v2168
    %2170 = vmatmul.f32.gmra.mxu0 %v359
    %v2171 = vpop.f32.mrf.mxu0
    %v2172 = vadd.f32 %v2107, %v2171
    %2173 = vmatmul.f32.gmra.mxu0 %v363
    %v2174 = vpop.f32.mrf.mxu0
    %v2175 = vadd.f32 %v2110, %v2174
    %2176 = vmatmul.f32.gmra.mxu0 %v367
    %v2177 = vpop.f32.mrf.mxu0
    %v2178 = vadd.f32 %v2113, %v2177
    %2179 = vdwg.mxu0
    %2180 = vmatpush.msra.mxu0 %v493
    %2181 = vmatpush.msra.mxu0 %v485
    %2182 = vmatpush.msra.mxu0 %v477
    %2183 = vmatpush.msra.mxu0 %v469
    %2184 = vmatpush.msra.mxu0 %v461
    %2185 = vmatpush.msra.mxu0 %v453
    %2186 = vmatpush.msra.mxu0 %v445
    %2187 = vmatpush.msra.mxu0 %v437
    %2188 = vmatpush.msra.mxu0 %v429
    %2189 = vmatpush.msra.mxu0 %v421
    %2190 = vmatpush.msra.mxu0 %v413
    %2191 = vmatpush.msra.mxu0 %v405
    %2192 = vmatpush.msra.mxu0 %v397
    %2193 = vmatpush.msra.mxu0 %v389
    %2194 = vmatpush.msra.mxu0 %v381
    %2195 = vmatpush.msra.mxu0 %v373
    %2196 = vmatmul.f32.gmra.mxu0 %v304
    %v2197 = vpop.f32.mrf.mxu0
    %v2198 = vadd.f32 0.0, %v2197
    %2199 = vmatmul.f32.gmra.mxu0 %v308
    %v2200 = vpop.f32.mrf.mxu0
    %v2201 = vadd.f32 0.0, %v2200
    %2202 = vmatmul.f32.gmra.mxu0 %v312
    %v2203 = vpop.f32.mrf.mxu0
    %v2204 = vadd.f32 0.0, %v2203
    %2205 = vmatmul.f32.gmra.mxu0 %v316
    %v2206 = vpop.f32.mrf.mxu0
    %v2207 = vadd.f32 0.0, %v2206
    %2208 = vmatmul.f32.gmra.mxu0 %v320
    %v2209 = vpop.f32.mrf.mxu0
    %v2210 = vadd.f32 0.0, %v2209
    %2211 = vmatmul.f32.gmra.mxu0 %v324
    %v2212 = vpop.f32.mrf.mxu0
    %v2213 = vadd.f32 0.0, %v2212
    %2214 = vmatmul.f32.gmra.mxu0 %v328
    %v2215 = vpop.f32.mrf.mxu0
    %v2216 = vadd.f32 0.0, %v2215
    %2217 = vmatmul.f32.gmra.mxu0 %v332
    %v2218 = vpop.f32.mrf.mxu0
    %v2219 = vadd.f32 0.0, %v2218
    %2220 = vmatmul.f32.gmra.mxu0 %v336
    %v2221 = vpop.f32.mrf.mxu0
    %v2222 = vadd.f32 0.0, %v2221
    %2223 = vmatmul.f32.gmra.mxu0 %v340
    %v2224 = vpop.f32.mrf.mxu0
    %v2225 = vadd.f32 0.0, %v2224
    %2226 = vmatmul.f32.gmra.mxu0 %v344
    %v2227 = vpop.f32.mrf.mxu0
    %v2228 = vadd.f32 0.0, %v2227
    %2229 = vmatmul.f32.gmra.mxu0 %v348
    %v2230 = vpop.f32.mrf.mxu0
    %v2231 = vadd.f32 0.0, %v2230
    %2232 = vmatmul.f32.gmra.mxu0 %v352
    %v2233 = vpop.f32.mrf.mxu0
    %v2234 = vadd.f32 0.0, %v2233
    %2235 = vmatmul.f32.gmra.mxu0 %v356
    %v2236 = vpop.f32.mrf.mxu0
    %v2237 = vadd.f32 0.0, %v2236
    %2238 = vmatmul.f32.gmra.mxu0 %v360
    %v2239 = vpop.f32.mrf.mxu0
    %v2240 = vadd.f32 0.0, %v2239
    %2241 = vmatmul.f32.gmra.mxu0 %v364
    %v2242 = vpop.f32.mrf.mxu0
    %v2243 = vadd.f32 0.0, %v2242
    %2244 = vdwg.mxu0
    %2245 = vmatpush.msra.mxu0 %v621
    %2246 = vmatpush.msra.mxu0 %v613
    %2247 = vmatpush.msra.mxu0 %v605
    %2248 = vmatpush.msra.mxu0 %v597
    %2249 = vmatpush.msra.mxu0 %v589
    %2250 = vmatpush.msra.mxu0 %v581
    %2251 = vmatpush.msra.mxu0 %v573
    %2252 = vmatpush.msra.mxu0 %v565
    %2253 = vmatpush.msra.mxu0 %v557
    %2254 = vmatpush.msra.mxu0 %v549
    %2255 = vmatpush.msra.mxu0 %v541
    %2256 = vmatpush.msra.mxu0 %v533
    %2257 = vmatpush.msra.mxu0 %v525
    %2258 = vmatpush.msra.mxu0 %v517
    %2259 = vmatpush.msra.mxu0 %v509
    %2260 = vmatpush.msra.mxu0 %v501
    %2261 = vmatmul.f32.gmra.mxu0 %v305
    %v2262 = vpop.f32.mrf.mxu0
    %v2263 = vadd.f32 %v2198, %v2262
    %2264 = vmatmul.f32.gmra.mxu0 %v309
    %v2265 = vpop.f32.mrf.mxu0
    %v2266 = vadd.f32 %v2201, %v2265
    %2267 = vmatmul.f32.gmra.mxu0 %v313
    %v2268 = vpop.f32.mrf.mxu0
    %v2269 = vadd.f32 %v2204, %v2268
    %2270 = vmatmul.f32.gmra.mxu0 %v317
    %v2271 = vpop.f32.mrf.mxu0
    %v2272 = vadd.f32 %v2207, %v2271
    %2273 = vmatmul.f32.gmra.mxu0 %v321
    %v2274 = vpop.f32.mrf.mxu0
    %v2275 = vadd.f32 %v2210, %v2274
    %2276 = vmatmul.f32.gmra.mxu0 %v325
    %v2277 = vpop.f32.mrf.mxu0
    %v2278 = vadd.f32 %v2213, %v2277
    %2279 = vmatmul.f32.gmra.mxu0 %v329
    %v2280 = vpop.f32.mrf.mxu0
    %v2281 = vadd.f32 %v2216, %v2280
    %2282 = vmatmul.f32.gmra.mxu0 %v333
    %v2283 = vpop.f32.mrf.mxu0
    %v2284 = vadd.f32 %v2219, %v2283
    %2285 = vmatmul.f32.gmra.mxu0 %v337
    %v2286 = vpop.f32.mrf.mxu0
    %v2287 = vadd.f32 %v2222, %v2286
    %2288 = vmatmul.f32.gmra.mxu0 %v341
    %v2289 = vpop.f32.mrf.mxu0
    %v2290 = vadd.f32 %v2225, %v2289
    %2291 = vmatmul.f32.gmra.mxu0 %v345
    %v2292 = vpop.f32.mrf.mxu0
    %v2293 = vadd.f32 %v2228, %v2292
    %2294 = vmatmul.f32.gmra.mxu0 %v349
    %v2295 = vpop.f32.mrf.mxu0
    %v2296 = vadd.f32 %v2231, %v2295
    %2297 = vmatmul.f32.gmra.mxu0 %v353
    %v2298 = vpop.f32.mrf.mxu0
    %v2299 = vadd.f32 %v2234, %v2298
    %2300 = vmatmul.f32.gmra.mxu0 %v357
    %v2301 = vpop.f32.mrf.mxu0
    %v2302 = vadd.f32 %v2237, %v2301
    %2303 = vmatmul.f32.gmra.mxu0 %v361
    %v2304 = vpop.f32.mrf.mxu0
    %v2305 = vadd.f32 %v2240, %v2304
    %2306 = vmatmul.f32.gmra.mxu0 %v365
    %v2307 = vpop.f32.mrf.mxu0
    %v2308 = vadd.f32 %v2243, %v2307
    %2309 = vdwg.mxu0
    %2310 = vmatpush.msra.mxu0 %v749
    %2311 = vmatpush.msra.mxu0 %v741
    %2312 = vmatpush.msra.mxu0 %v733
    %2313 = vmatpush.msra.mxu0 %v725
    %2314 = vmatpush.msra.mxu0 %v717
    %2315 = vmatpush.msra.mxu0 %v709
    %2316 = vmatpush.msra.mxu0 %v701
    %2317 = vmatpush.msra.mxu0 %v693
    %2318 = vmatpush.msra.mxu0 %v685
    %2319 = vmatpush.msra.mxu0 %v677
    %2320 = vmatpush.msra.mxu0 %v669
    %2321 = vmatpush.msra.mxu0 %v661
    %2322 = vmatpush.msra.mxu0 %v653
    %2323 = vmatpush.msra.mxu0 %v645
    %2324 = vmatpush.msra.mxu0 %v637
    %2325 = vmatpush.msra.mxu0 %v629
    %2326 = vmatmul.f32.gmra.mxu0 %v306
    %v2327 = vpop.f32.mrf.mxu0
    %v2328 = vadd.f32 %v2263, %v2327
    %2329 = vmatmul.f32.gmra.mxu0 %v310
    %v2330 = vpop.f32.mrf.mxu0
    %v2331 = vadd.f32 %v2266, %v2330
    %2332 = vmatmul.f32.gmra.mxu0 %v314
    %v2333 = vpop.f32.mrf.mxu0
    %v2334 = vadd.f32 %v2269, %v2333
    %2335 = vmatmul.f32.gmra.mxu0 %v318
    %v2336 = vpop.f32.mrf.mxu0
    %v2337 = vadd.f32 %v2272, %v2336
    %2338 = vmatmul.f32.gmra.mxu0 %v322
    %v2339 = vpop.f32.mrf.mxu0
    %v2340 = vadd.f32 %v2275, %v2339
    %2341 = vmatmul.f32.gmra.mxu0 %v326
    %v2342 = vpop.f32.mrf.mxu0
    %v2343 = vadd.f32 %v2278, %v2342
    %2344 = vmatmul.f32.gmra.mxu0 %v330
    %v2345 = vpop.f32.mrf.mxu0
    %v2346 = vadd.f32 %v2281, %v2345
    %2347 = vmatmul.f32.gmra.mxu0 %v334
    %v2348 = vpop.f32.mrf.mxu0
    %v2349 = vadd.f32 %v2284, %v2348
    %2350 = vmatmul.f32.gmra.mxu0 %v338
    %v2351 = vpop.f32.mrf.mxu0
    %v2352 = vadd.f32 %v2287, %v2351
    %2353 = vmatmul.f32.gmra.mxu0 %v342
    %v2354 = vpop.f32.mrf.mxu0
    %v2355 = vadd.f32 %v2290, %v2354
    %2356 = vmatmul.f32.gmra.mxu0 %v346
    %v2357 = vpop.f32.mrf.mxu0
    %v2358 = vadd.f32 %v2293, %v2357
    %2359 = vmatmul.f32.gmra.mxu0 %v350
    %v2360 = vpop.f32.mrf.mxu0
    %v2361 = vadd.f32 %v2296, %v2360
    %2362 = vmatmul.f32.gmra.mxu0 %v354
    %v2363 = vpop.f32.mrf.mxu0
    %v2364 = vadd.f32 %v2299, %v2363
    %2365 = vmatmul.f32.gmra.mxu0 %v358
    %v2366 = vpop.f32.mrf.mxu0
    %v2367 = vadd.f32 %v2302, %v2366
    %2368 = vmatmul.f32.gmra.mxu0 %v362
    %v2369 = vpop.f32.mrf.mxu0
    %v2370 = vadd.f32 %v2305, %v2369
    %2371 = vmatmul.f32.gmra.mxu0 %v366
    %v2372 = vpop.f32.mrf.mxu0
    %v2373 = vadd.f32 %v2308, %v2372
    %2374 = vdwg.mxu0
    %2375 = vmatpush.msra.mxu0 %v877
    %2376 = vmatpush.msra.mxu0 %v869
    %2377 = vmatpush.msra.mxu0 %v861
    %2378 = vmatpush.msra.mxu0 %v853
    %2379 = vmatpush.msra.mxu0 %v845
    %2380 = vmatpush.msra.mxu0 %v837
    %2381 = vmatpush.msra.mxu0 %v829
    %2382 = vmatpush.msra.mxu0 %v821
    %2383 = vmatpush.msra.mxu0 %v813
    %2384 = vmatpush.msra.mxu0 %v805
    %2385 = vmatpush.msra.mxu0 %v797
    %2386 = vmatpush.msra.mxu0 %v789
    %2387 = vmatpush.msra.mxu0 %v781
    %2388 = vmatpush.msra.mxu0 %v773
    %2389 = vmatpush.msra.mxu0 %v765
    %2390 = vmatpush.msra.mxu0 %v757
    %2391 = vmatmul.f32.gmra.mxu0 %v307
    %v2392 = vpop.f32.mrf.mxu0
    %v2393 = vadd.f32 %v2328, %v2392
    %2394 = vmatmul.f32.gmra.mxu0 %v311
    %v2395 = vpop.f32.mrf.mxu0
    %v2396 = vadd.f32 %v2331, %v2395
    %2397 = vmatmul.f32.gmra.mxu0 %v315
    %v2398 = vpop.f32.mrf.mxu0
    %v2399 = vadd.f32 %v2334, %v2398
    %2400 = vmatmul.f32.gmra.mxu0 %v319
    %v2401 = vpop.f32.mrf.mxu0
    %v2402 = vadd.f32 %v2337, %v2401
    %2403 = vmatmul.f32.gmra.mxu0 %v323
    %v2404 = vpop.f32.mrf.mxu0
    %v2405 = vadd.f32 %v2340, %v2404
    %2406 = vmatmul.f32.gmra.mxu0 %v327
    %v2407 = vpop.f32.mrf.mxu0
    %v2408 = vadd.f32 %v2343, %v2407
    %2409 = vmatmul.f32.gmra.mxu0 %v331
    %v2410 = vpop.f32.mrf.mxu0
    %v2411 = vadd.f32 %v2346, %v2410
    %2412 = vmatmul.f32.gmra.mxu0 %v335
    %v2413 = vpop.f32.mrf.mxu0
    %v2414 = vadd.f32 %v2349, %v2413
    %2415 = vmatmul.f32.gmra.mxu0 %v339
    %v2416 = vpop.f32.mrf.mxu0
    %v2417 = vadd.f32 %v2352, %v2416
    %2418 = vmatmul.f32.gmra.mxu0 %v343
    %v2419 = vpop.f32.mrf.mxu0
    %v2420 = vadd.f32 %v2355, %v2419
    %2421 = vmatmul.f32.gmra.mxu0 %v347
    %v2422 = vpop.f32.mrf.mxu0
    %v2423 = vadd.f32 %v2358, %v2422
    %2424 = vmatmul.f32.gmra.mxu0 %v351
    %v2425 = vpop.f32.mrf.mxu0
    %v2426 = vadd.f32 %v2361, %v2425
    %2427 = vmatmul.f32.gmra.mxu0 %v355
    %v2428 = vpop.f32.mrf.mxu0
    %v2429 = vadd.f32 %v2364, %v2428
    %2430 = vmatmul.f32.gmra.mxu0 %v359
    %v2431 = vpop.f32.mrf.mxu0
    %v2432 = vadd.f32 %v2367, %v2431
    %2433 = vmatmul.f32.gmra.mxu0 %v363
    %v2434 = vpop.f32.mrf.mxu0
    %v2435 = vadd.f32 %v2370, %v2434
    %2436 = vmatmul.f32.gmra.mxu0 %v367
    %v2437 = vpop.f32.mrf.mxu0
    %v2438 = vadd.f32 %v2373, %v2437
    %2439 = vdwg.mxu0
    %2440 = vmatpush.msra.mxu0 %v494
    %2441 = vmatpush.msra.mxu0 %v486
    %2442 = vmatpush.msra.mxu0 %v478
    %2443 = vmatpush.msra.mxu0 %v470
    %2444 = vmatpush.msra.mxu0 %v462
    %2445 = vmatpush.msra.mxu0 %v454
    %2446 = vmatpush.msra.mxu0 %v446
    %2447 = vmatpush.msra.mxu0 %v438
    %2448 = vmatpush.msra.mxu0 %v430
    %2449 = vmatpush.msra.mxu0 %v422
    %2450 = vmatpush.msra.mxu0 %v414
    %2451 = vmatpush.msra.mxu0 %v406
    %2452 = vmatpush.msra.mxu0 %v398
    %2453 = vmatpush.msra.mxu0 %v390
    %2454 = vmatpush.msra.mxu0 %v382
    %2455 = vmatpush.msra.mxu0 %v374
    %2456 = vmatmul.f32.gmra.mxu0 %v304
    %v2457 = vpop.f32.mrf.mxu0
    %v2458 = vadd.f32 0.0, %v2457
    %2459 = vmatmul.f32.gmra.mxu0 %v308
    %v2460 = vpop.f32.mrf.mxu0
    %v2461 = vadd.f32 0.0, %v2460
    %2462 = vmatmul.f32.gmra.mxu0 %v312
    %v2463 = vpop.f32.mrf.mxu0
    %v2464 = vadd.f32 0.0, %v2463
    %2465 = vmatmul.f32.gmra.mxu0 %v316
    %v2466 = vpop.f32.mrf.mxu0
    %v2467 = vadd.f32 0.0, %v2466
    %2468 = vmatmul.f32.gmra.mxu0 %v320
    %v2469 = vpop.f32.mrf.mxu0
    %v2470 = vadd.f32 0.0, %v2469
    %2471 = vmatmul.f32.gmra.mxu0 %v324
    %v2472 = vpop.f32.mrf.mxu0
    %v2473 = vadd.f32 0.0, %v2472
    %2474 = vmatmul.f32.gmra.mxu0 %v328
    %v2475 = vpop.f32.mrf.mxu0
    %v2476 = vadd.f32 0.0, %v2475
    %2477 = vmatmul.f32.gmra.mxu0 %v332
    %v2478 = vpop.f32.mrf.mxu0
    %v2479 = vadd.f32 0.0, %v2478
    %2480 = vmatmul.f32.gmra.mxu0 %v336
    %v2481 = vpop.f32.mrf.mxu0
    %v2482 = vadd.f32 0.0, %v2481
    %2483 = vmatmul.f32.gmra.mxu0 %v340
    %v2484 = vpop.f32.mrf.mxu0
    %v2485 = vadd.f32 0.0, %v2484
    %2486 = vmatmul.f32.gmra.mxu0 %v344
    %v2487 = vpop.f32.mrf.mxu0
    %v2488 = vadd.f32 0.0, %v2487
    %2489 = vmatmul.f32.gmra.mxu0 %v348
    %v2490 = vpop.f32.mrf.mxu0
    %v2491 = vadd.f32 0.0, %v2490
    %2492 = vmatmul.f32.gmra.mxu0 %v352
    %v2493 = vpop.f32.mrf.mxu0
    %v2494 = vadd.f32 0.0, %v2493
    %2495 = vmatmul.f32.gmra.mxu0 %v356
    %v2496 = vpop.f32.mrf.mxu0
    %v2497 = vadd.f32 0.0, %v2496
    %2498 = vmatmul.f32.gmra.mxu0 %v360
    %v2499 = vpop.f32.mrf.mxu0
    %v2500 = vadd.f32 0.0, %v2499
    %2501 = vmatmul.f32.gmra.mxu0 %v364
    %v2502 = vpop.f32.mrf.mxu0
    %v2503 = vadd.f32 0.0, %v2502
    %2504 = vdwg.mxu0
    %2505 = vmatpush.msra.mxu0 %v622
    %2506 = vmatpush.msra.mxu0 %v614
    %2507 = vmatpush.msra.mxu0 %v606
    %2508 = vmatpush.msra.mxu0 %v598
    %2509 = vmatpush.msra.mxu0 %v590
    %2510 = vmatpush.msra.mxu0 %v582
    %2511 = vmatpush.msra.mxu0 %v574
    %2512 = vmatpush.msra.mxu0 %v566
    %2513 = vmatpush.msra.mxu0 %v558
    %2514 = vmatpush.msra.mxu0 %v550
    %2515 = vmatpush.msra.mxu0 %v542
    %2516 = vmatpush.msra.mxu0 %v534
    %2517 = vmatpush.msra.mxu0 %v526
    %2518 = vmatpush.msra.mxu0 %v518
    %2519 = vmatpush.msra.mxu0 %v510
    %2520 = vmatpush.msra.mxu0 %v502
    %2521 = vmatmul.f32.gmra.mxu0 %v305
    %v2522 = vpop.f32.mrf.mxu0
    %v2523 = vadd.f32 %v2458, %v2522
    %2524 = vmatmul.f32.gmra.mxu0 %v309
    %v2525 = vpop.f32.mrf.mxu0
    %v2526 = vadd.f32 %v2461, %v2525
    %2527 = vmatmul.f32.gmra.mxu0 %v313
    %v2528 = vpop.f32.mrf.mxu0
    %v2529 = vadd.f32 %v2464, %v2528
    %2530 = vmatmul.f32.gmra.mxu0 %v317
    %v2531 = vpop.f32.mrf.mxu0
    %v2532 = vadd.f32 %v2467, %v2531
    %2533 = vmatmul.f32.gmra.mxu0 %v321
    %v2534 = vpop.f32.mrf.mxu0
    %v2535 = vadd.f32 %v2470, %v2534
    %2536 = vmatmul.f32.gmra.mxu0 %v325
    %v2537 = vpop.f32.mrf.mxu0
    %v2538 = vadd.f32 %v2473, %v2537
    %2539 = vmatmul.f32.gmra.mxu0 %v329
    %v2540 = vpop.f32.mrf.mxu0
    %v2541 = vadd.f32 %v2476, %v2540
    %2542 = vmatmul.f32.gmra.mxu0 %v333
    %v2543 = vpop.f32.mrf.mxu0
    %v2544 = vadd.f32 %v2479, %v2543
    %2545 = vmatmul.f32.gmra.mxu0 %v337
    %v2546 = vpop.f32.mrf.mxu0
    %v2547 = vadd.f32 %v2482, %v2546
    %2548 = vmatmul.f32.gmra.mxu0 %v341
    %v2549 = vpop.f32.mrf.mxu0
    %v2550 = vadd.f32 %v2485, %v2549
    %2551 = vmatmul.f32.gmra.mxu0 %v345
    %v2552 = vpop.f32.mrf.mxu0
    %v2553 = vadd.f32 %v2488, %v2552
    %2554 = vmatmul.f32.gmra.mxu0 %v349
    %v2555 = vpop.f32.mrf.mxu0
    %v2556 = vadd.f32 %v2491, %v2555
    %2557 = vmatmul.f32.gmra.mxu0 %v353
    %v2558 = vpop.f32.mrf.mxu0
    %v2559 = vadd.f32 %v2494, %v2558
    %2560 = vmatmul.f32.gmra.mxu0 %v357
    %v2561 = vpop.f32.mrf.mxu0
    %v2562 = vadd.f32 %v2497, %v2561
    %2563 = vmatmul.f32.gmra.mxu0 %v361
    %v2564 = vpop.f32.mrf.mxu0
    %v2565 = vadd.f32 %v2500, %v2564
    %2566 = vmatmul.f32.gmra.mxu0 %v365
    %v2567 = vpop.f32.mrf.mxu0
    %v2568 = vadd.f32 %v2503, %v2567
    %2569 = vdwg.mxu0
    %2570 = vmatpush.msra.mxu0 %v750
    %2571 = vmatpush.msra.mxu0 %v742
    %2572 = vmatpush.msra.mxu0 %v734
    %2573 = vmatpush.msra.mxu0 %v726
    %2574 = vmatpush.msra.mxu0 %v718
    %2575 = vmatpush.msra.mxu0 %v710
    %2576 = vmatpush.msra.mxu0 %v702
    %2577 = vmatpush.msra.mxu0 %v694
    %2578 = vmatpush.msra.mxu0 %v686
    %2579 = vmatpush.msra.mxu0 %v678
    %2580 = vmatpush.msra.mxu0 %v670
    %2581 = vmatpush.msra.mxu0 %v662
    %2582 = vmatpush.msra.mxu0 %v654
    %2583 = vmatpush.msra.mxu0 %v646
    %2584 = vmatpush.msra.mxu0 %v638
    %2585 = vmatpush.msra.mxu0 %v630
    %2586 = vmatmul.f32.gmra.mxu0 %v306
    %v2587 = vpop.f32.mrf.mxu0
    %v2588 = vadd.f32 %v2523, %v2587
    %2589 = vmatmul.f32.gmra.mxu0 %v310
    %v2590 = vpop.f32.mrf.mxu0
    %v2591 = vadd.f32 %v2526, %v2590
    %2592 = vmatmul.f32.gmra.mxu0 %v314
    %v2593 = vpop.f32.mrf.mxu0
    %v2594 = vadd.f32 %v2529, %v2593
    %2595 = vmatmul.f32.gmra.mxu0 %v318
    %v2596 = vpop.f32.mrf.mxu0
    %v2597 = vadd.f32 %v2532, %v2596
    %2598 = vmatmul.f32.gmra.mxu0 %v322
    %v2599 = vpop.f32.mrf.mxu0
    %v2600 = vadd.f32 %v2535, %v2599
    %2601 = vmatmul.f32.gmra.mxu0 %v326
    %v2602 = vpop.f32.mrf.mxu0
    %v2603 = vadd.f32 %v2538, %v2602
    %2604 = vmatmul.f32.gmra.mxu0 %v330
    %v2605 = vpop.f32.mrf.mxu0
    %v2606 = vadd.f32 %v2541, %v2605
    %2607 = vmatmul.f32.gmra.mxu0 %v334
    %v2608 = vpop.f32.mrf.mxu0
    %v2609 = vadd.f32 %v2544, %v2608
    %2610 = vmatmul.f32.gmra.mxu0 %v338
    %v2611 = vpop.f32.mrf.mxu0
    %v2612 = vadd.f32 %v2547, %v2611
    %2613 = vmatmul.f32.gmra.mxu0 %v342
    %v2614 = vpop.f32.mrf.mxu0
    %v2615 = vadd.f32 %v2550, %v2614
    %2616 = vmatmul.f32.gmra.mxu0 %v346
    %v2617 = vpop.f32.mrf.mxu0
    %v2618 = vadd.f32 %v2553, %v2617
    %2619 = vmatmul.f32.gmra.mxu0 %v350
    %v2620 = vpop.f32.mrf.mxu0
    %v2621 = vadd.f32 %v2556, %v2620
    %2622 = vmatmul.f32.gmra.mxu0 %v354
    %v2623 = vpop.f32.mrf.mxu0
    %v2624 = vadd.f32 %v2559, %v2623
    %2625 = vmatmul.f32.gmra.mxu0 %v358
    %v2626 = vpop.f32.mrf.mxu0
    %v2627 = vadd.f32 %v2562, %v2626
    %2628 = vmatmul.f32.gmra.mxu0 %v362
    %v2629 = vpop.f32.mrf.mxu0
    %v2630 = vadd.f32 %v2565, %v2629
    %2631 = vmatmul.f32.gmra.mxu0 %v366
    %v2632 = vpop.f32.mrf.mxu0
    %v2633 = vadd.f32 %v2568, %v2632
    %2634 = vdwg.mxu0
    %2635 = vmatpush.msra.mxu0 %v878
    %2636 = vmatpush.msra.mxu0 %v870
    %2637 = vmatpush.msra.mxu0 %v862
    %2638 = vmatpush.msra.mxu0 %v854
    %2639 = vmatpush.msra.mxu0 %v846
    %2640 = vmatpush.msra.mxu0 %v838
    %2641 = vmatpush.msra.mxu0 %v830
    %2642 = vmatpush.msra.mxu0 %v822
    %2643 = vmatpush.msra.mxu0 %v814
    %2644 = vmatpush.msra.mxu0 %v806
    %2645 = vmatpush.msra.mxu0 %v798
    %2646 = vmatpush.msra.mxu0 %v790
    %2647 = vmatpush.msra.mxu0 %v782
    %2648 = vmatpush.msra.mxu0 %v774
    %2649 = vmatpush.msra.mxu0 %v766
    %2650 = vmatpush.msra.mxu0 %v758
    %2651 = vmatmul.f32.gmra.mxu0 %v307
    %v2652 = vpop.f32.mrf.mxu0
    %v2653 = vadd.f32 %v2588, %v2652
    %2654 = vmatmul.f32.gmra.mxu0 %v311
    %v2655 = vpop.f32.mrf.mxu0
    %v2656 = vadd.f32 %v2591, %v2655
    %2657 = vmatmul.f32.gmra.mxu0 %v315
    %v2658 = vpop.f32.mrf.mxu0
    %v2659 = vadd.f32 %v2594, %v2658
    %2660 = vmatmul.f32.gmra.mxu0 %v319
    %v2661 = vpop.f32.mrf.mxu0
    %v2662 = vadd.f32 %v2597, %v2661
    %2663 = vmatmul.f32.gmra.mxu0 %v323
    %v2664 = vpop.f32.mrf.mxu0
    %v2665 = vadd.f32 %v2600, %v2664
    %2666 = vmatmul.f32.gmra.mxu0 %v327
    %v2667 = vpop.f32.mrf.mxu0
    %v2668 = vadd.f32 %v2603, %v2667
    %2669 = vmatmul.f32.gmra.mxu0 %v331
    %v2670 = vpop.f32.mrf.mxu0
    %v2671 = vadd.f32 %v2606, %v2670
    %2672 = vmatmul.f32.gmra.mxu0 %v335
    %v2673 = vpop.f32.mrf.mxu0
    %v2674 = vadd.f32 %v2609, %v2673
    %2675 = vmatmul.f32.gmra.mxu0 %v339
    %v2676 = vpop.f32.mrf.mxu0
    %v2677 = vadd.f32 %v2612, %v2676
    %2678 = vmatmul.f32.gmra.mxu0 %v343
    %v2679 = vpop.f32.mrf.mxu0
    %v2680 = vadd.f32 %v2615, %v2679
    %2681 = vmatmul.f32.gmra.mxu0 %v347
    %v2682 = vpop.f32.mrf.mxu0
    %v2683 = vadd.f32 %v2618, %v2682
    %2684 = vmatmul.f32.gmra.mxu0 %v351
    %v2685 = vpop.f32.mrf.mxu0
    %v2686 = vadd.f32 %v2621, %v2685
    %2687 = vmatmul.f32.gmra.mxu0 %v355
    %v2688 = vpop.f32.mrf.mxu0
    %v2689 = vadd.f32 %v2624, %v2688
    %2690 = vmatmul.f32.gmra.mxu0 %v359
    %v2691 = vpop.f32.mrf.mxu0
    %v2692 = vadd.f32 %v2627, %v2691
    %2693 = vmatmul.f32.gmra.mxu0 %v363
    %v2694 = vpop.f32.mrf.mxu0
    %v2695 = vadd.f32 %v2630, %v2694
    %2696 = vmatmul.f32.gmra.mxu0 %v367
    %v2697 = vpop.f32.mrf.mxu0
    %v2698 = vadd.f32 %v2633, %v2697
    %2699 = vdwg.mxu0
    %2700 = vmatpush.msra.mxu0 %v495
    %2701 = vmatpush.msra.mxu0 %v487
    %2702 = vmatpush.msra.mxu0 %v479
    %2703 = vmatpush.msra.mxu0 %v471
    %2704 = vmatpush.msra.mxu0 %v463
    %2705 = vmatpush.msra.mxu0 %v455
    %2706 = vmatpush.msra.mxu0 %v447
    %2707 = vmatpush.msra.mxu0 %v439
    %2708 = vmatpush.msra.mxu0 %v431
    %2709 = vmatpush.msra.mxu0 %v423
    %2710 = vmatpush.msra.mxu0 %v415
    %2711 = vmatpush.msra.mxu0 %v407
    %2712 = vmatpush.msra.mxu0 %v399
    %2713 = vmatpush.msra.mxu0 %v391
    %2714 = vmatpush.msra.mxu0 %v383
    %2715 = vmatpush.msra.mxu0 %v375
    %2716 = vmatmul.f32.gmra.mxu0 %v304
    %v2717 = vpop.f32.mrf.mxu0
    %v2718 = vadd.f32 0.0, %v2717
    %2719 = vmatmul.f32.gmra.mxu0 %v308
    %v2720 = vpop.f32.mrf.mxu0
    %v2721 = vadd.f32 0.0, %v2720
    %2722 = vmatmul.f32.gmra.mxu0 %v312
    %v2723 = vpop.f32.mrf.mxu0
    %v2724 = vadd.f32 0.0, %v2723
    %2725 = vmatmul.f32.gmra.mxu0 %v316
    %v2726 = vpop.f32.mrf.mxu0
    %v2727 = vadd.f32 0.0, %v2726
    %2728 = vmatmul.f32.gmra.mxu0 %v320
    %v2729 = vpop.f32.mrf.mxu0
    %v2730 = vadd.f32 0.0, %v2729
    %2731 = vmatmul.f32.gmra.mxu0 %v324
    %v2732 = vpop.f32.mrf.mxu0
    %v2733 = vadd.f32 0.0, %v2732
    %2734 = vmatmul.f32.gmra.mxu0 %v328
    %v2735 = vpop.f32.mrf.mxu0
    %v2736 = vadd.f32 0.0, %v2735
    %2737 = vmatmul.f32.gmra.mxu0 %v332
    %v2738 = vpop.f32.mrf.mxu0
    %v2739 = vadd.f32 0.0, %v2738
    %2740 = vmatmul.f32.gmra.mxu0 %v336
    %v2741 = vpop.f32.mrf.mxu0
    %v2742 = vadd.f32 0.0, %v2741
    %2743 = vmatmul.f32.gmra.mxu0 %v340
    %v2744 = vpop.f32.mrf.mxu0
    %v2745 = vadd.f32 0.0, %v2744
    %2746 = vmatmul.f32.gmra.mxu0 %v344
    %v2747 = vpop.f32.mrf.mxu0
    %v2748 = vadd.f32 0.0, %v2747
    %2749 = vmatmul.f32.gmra.mxu0 %v348
    %v2750 = vpop.f32.mrf.mxu0
    %v2751 = vadd.f32 0.0, %v2750
    %2752 = vmatmul.f32.gmra.mxu0 %v352
    %v2753 = vpop.f32.mrf.mxu0
    %v2754 = vadd.f32 0.0, %v2753
    %2755 = vmatmul.f32.gmra.mxu0 %v356
    %v2756 = vpop.f32.mrf.mxu0
    %v2757 = vadd.f32 0.0, %v2756
    %2758 = vmatmul.f32.gmra.mxu0 %v360
    %v2759 = vpop.f32.mrf.mxu0
    %v2760 = vadd.f32 0.0, %v2759
    %2761 = vmatmul.f32.gmra.mxu0 %v364
    %v2762 = vpop.f32.mrf.mxu0
    %v2763 = vadd.f32 0.0, %v2762
    %2764 = vdwg.mxu0
    %2765 = vmatpush.msra.mxu0 %v623
    %2766 = vmatpush.msra.mxu0 %v615
    %2767 = vmatpush.msra.mxu0 %v607
    %2768 = vmatpush.msra.mxu0 %v599
    %2769 = vmatpush.msra.mxu0 %v591
    %2770 = vmatpush.msra.mxu0 %v583
    %2771 = vmatpush.msra.mxu0 %v575
    %2772 = vmatpush.msra.mxu0 %v567
    %2773 = vmatpush.msra.mxu0 %v559
    %2774 = vmatpush.msra.mxu0 %v551
    %2775 = vmatpush.msra.mxu0 %v543
    %2776 = vmatpush.msra.mxu0 %v535
    %2777 = vmatpush.msra.mxu0 %v527
    %2778 = vmatpush.msra.mxu0 %v519
    %2779 = vmatpush.msra.mxu0 %v511
    %2780 = vmatpush.msra.mxu0 %v503
    %2781 = vmatmul.f32.gmra.mxu0 %v305
    %v2782 = vpop.f32.mrf.mxu0
    %v2783 = vadd.f32 %v2718, %v2782
    %2784 = vmatmul.f32.gmra.mxu0 %v309
    %v2785 = vpop.f32.mrf.mxu0
    %v2786 = vadd.f32 %v2721, %v2785
    %2787 = vmatmul.f32.gmra.mxu0 %v313
    %v2788 = vpop.f32.mrf.mxu0
    %v2789 = vadd.f32 %v2724, %v2788
    %2790 = vmatmul.f32.gmra.mxu0 %v317
    %v2791 = vpop.f32.mrf.mxu0
    %v2792 = vadd.f32 %v2727, %v2791
    %2793 = vmatmul.f32.gmra.mxu0 %v321
    %v2794 = vpop.f32.mrf.mxu0
    %v2795 = vadd.f32 %v2730, %v2794
    %2796 = vmatmul.f32.gmra.mxu0 %v325
    %v2797 = vpop.f32.mrf.mxu0
    %v2798 = vadd.f32 %v2733, %v2797
    %2799 = vmatmul.f32.gmra.mxu0 %v329
    %v2800 = vpop.f32.mrf.mxu0
    %v2801 = vadd.f32 %v2736, %v2800
    %2802 = vmatmul.f32.gmra.mxu0 %v333
    %v2803 = vpop.f32.mrf.mxu0
    %v2804 = vadd.f32 %v2739, %v2803
    %2805 = vmatmul.f32.gmra.mxu0 %v337
    %v2806 = vpop.f32.mrf.mxu0
    %v2807 = vadd.f32 %v2742, %v2806
    %2808 = vmatmul.f32.gmra.mxu0 %v341
    %v2809 = vpop.f32.mrf.mxu0
    %v2810 = vadd.f32 %v2745, %v2809
    %2811 = vmatmul.f32.gmra.mxu0 %v345
    %v2812 = vpop.f32.mrf.mxu0
    %v2813 = vadd.f32 %v2748, %v2812
    %2814 = vmatmul.f32.gmra.mxu0 %v349
    %v2815 = vpop.f32.mrf.mxu0
    %v2816 = vadd.f32 %v2751, %v2815
    %2817 = vmatmul.f32.gmra.mxu0 %v353
    %v2818 = vpop.f32.mrf.mxu0
    %v2819 = vadd.f32 %v2754, %v2818
    %2820 = vmatmul.f32.gmra.mxu0 %v357
    %v2821 = vpop.f32.mrf.mxu0
    %v2822 = vadd.f32 %v2757, %v2821
    %2823 = vmatmul.f32.gmra.mxu0 %v361
    %v2824 = vpop.f32.mrf.mxu0
    %v2825 = vadd.f32 %v2760, %v2824
    %2826 = vmatmul.f32.gmra.mxu0 %v365
    %v2827 = vpop.f32.mrf.mxu0
    %v2828 = vadd.f32 %v2763, %v2827
    %2829 = vdwg.mxu0
    %2830 = vmatpush.msra.mxu0 %v751
    %2831 = vmatpush.msra.mxu0 %v743
    %2832 = vmatpush.msra.mxu0 %v735
    %2833 = vmatpush.msra.mxu0 %v727
    %2834 = vmatpush.msra.mxu0 %v719
    %2835 = vmatpush.msra.mxu0 %v711
    %2836 = vmatpush.msra.mxu0 %v703
    %2837 = vmatpush.msra.mxu0 %v695
    %2838 = vmatpush.msra.mxu0 %v687
    %2839 = vmatpush.msra.mxu0 %v679
    %2840 = vmatpush.msra.mxu0 %v671
    %2841 = vmatpush.msra.mxu0 %v663
    %2842 = vmatpush.msra.mxu0 %v655
    %2843 = vmatpush.msra.mxu0 %v647
    %2844 = vmatpush.msra.mxu0 %v639
    %2845 = vmatpush.msra.mxu0 %v631
    %2846 = vmatmul.f32.gmra.mxu0 %v306
    %v2847 = vpop.f32.mrf.mxu0
    %v2848 = vadd.f32 %v2783, %v2847
    %2849 = vmatmul.f32.gmra.mxu0 %v310
    %v2850 = vpop.f32.mrf.mxu0
    %v2851 = vadd.f32 %v2786, %v2850
    %2852 = vmatmul.f32.gmra.mxu0 %v314
    %v2853 = vpop.f32.mrf.mxu0
    %v2854 = vadd.f32 %v2789, %v2853
    %2855 = vmatmul.f32.gmra.mxu0 %v318
    %v2856 = vpop.f32.mrf.mxu0
    %v2857 = vadd.f32 %v2792, %v2856
    %2858 = vmatmul.f32.gmra.mxu0 %v322
    %v2859 = vpop.f32.mrf.mxu0
    %v2860 = vadd.f32 %v2795, %v2859
    %2861 = vmatmul.f32.gmra.mxu0 %v326
    %v2862 = vpop.f32.mrf.mxu0
    %v2863 = vadd.f32 %v2798, %v2862
    %2864 = vmatmul.f32.gmra.mxu0 %v330
    %v2865 = vpop.f32.mrf.mxu0
    %v2866 = vadd.f32 %v2801, %v2865
    %2867 = vmatmul.f32.gmra.mxu0 %v334
    %v2868 = vpop.f32.mrf.mxu0
    %v2869 = vadd.f32 %v2804, %v2868
    %2870 = vmatmul.f32.gmra.mxu0 %v338
    %v2871 = vpop.f32.mrf.mxu0
    %v2872 = vadd.f32 %v2807, %v2871
    %2873 = vmatmul.f32.gmra.mxu0 %v342
    %v2874 = vpop.f32.mrf.mxu0
    %v2875 = vadd.f32 %v2810, %v2874
    %2876 = vmatmul.f32.gmra.mxu0 %v346
    %v2877 = vpop.f32.mrf.mxu0
    %v2878 = vadd.f32 %v2813, %v2877
    %2879 = vmatmul.f32.gmra.mxu0 %v350
    %v2880 = vpop.f32.mrf.mxu0
    %v2881 = vadd.f32 %v2816, %v2880
    %2882 = vmatmul.f32.gmra.mxu0 %v354
    %v2883 = vpop.f32.mrf.mxu0
    %v2884 = vadd.f32 %v2819, %v2883
    %2885 = vmatmul.f32.gmra.mxu0 %v358
    %v2886 = vpop.f32.mrf.mxu0
    %v2887 = vadd.f32 %v2822, %v2886
    %2888 = vmatmul.f32.gmra.mxu0 %v362
    %v2889 = vpop.f32.mrf.mxu0
    %v2890 = vadd.f32 %v2825, %v2889
    %2891 = vmatmul.f32.gmra.mxu0 %v366
    %v2892 = vpop.f32.mrf.mxu0
    %v2893 = vadd.f32 %v2828, %v2892
    %2894 = vdwg.mxu0
    %2895 = vmatpush.msra.mxu0 %v879
    %2896 = vmatpush.msra.mxu0 %v871
    %2897 = vmatpush.msra.mxu0 %v863
    %2898 = vmatpush.msra.mxu0 %v855
    %2899 = vmatpush.msra.mxu0 %v847
    %2900 = vmatpush.msra.mxu0 %v839
    %2901 = vmatpush.msra.mxu0 %v831
    %2902 = vmatpush.msra.mxu0 %v823
    %2903 = vmatpush.msra.mxu0 %v815
    %2904 = vmatpush.msra.mxu0 %v807
    %2905 = vmatpush.msra.mxu0 %v799
    %2906 = vmatpush.msra.mxu0 %v791
    %2907 = vmatpush.msra.mxu0 %v783
    %2908 = vmatpush.msra.mxu0 %v775
    %2909 = vmatpush.msra.mxu0 %v767
    %2910 = vmatpush.msra.mxu0 %v759
    %2911 = vmatmul.f32.gmra.mxu0 %v307
    %v2912 = vpop.f32.mrf.mxu0
    %v2913 = vadd.f32 %v2848, %v2912
    %2914 = vmatmul.f32.gmra.mxu0 %v311
    %v2915 = vpop.f32.mrf.mxu0
    %v2916 = vadd.f32 %v2851, %v2915
    %2917 = vmatmul.f32.gmra.mxu0 %v315
    %v2918 = vpop.f32.mrf.mxu0
    %v2919 = vadd.f32 %v2854, %v2918
    %2920 = vmatmul.f32.gmra.mxu0 %v319
    %v2921 = vpop.f32.mrf.mxu0
    %v2922 = vadd.f32 %v2857, %v2921
    %2923 = vmatmul.f32.gmra.mxu0 %v323
    %v2924 = vpop.f32.mrf.mxu0
    %v2925 = vadd.f32 %v2860, %v2924
    %2926 = vmatmul.f32.gmra.mxu0 %v327
    %v2927 = vpop.f32.mrf.mxu0
    %v2928 = vadd.f32 %v2863, %v2927
    %2929 = vmatmul.f32.gmra.mxu0 %v331
    %v2930 = vpop.f32.mrf.mxu0
    %v2931 = vadd.f32 %v2866, %v2930
    %2932 = vmatmul.f32.gmra.mxu0 %v335
    %v2933 = vpop.f32.mrf.mxu0
    %v2934 = vadd.f32 %v2869, %v2933
    %2935 = vmatmul.f32.gmra.mxu0 %v339
    %v2936 = vpop.f32.mrf.mxu0
    %v2937 = vadd.f32 %v2872, %v2936
    %2938 = vmatmul.f32.gmra.mxu0 %v343
    %v2939 = vpop.f32.mrf.mxu0
    %v2940 = vadd.f32 %v2875, %v2939
    %2941 = vmatmul.f32.gmra.mxu0 %v347
    %v2942 = vpop.f32.mrf.mxu0
    %v2943 = vadd.f32 %v2878, %v2942
    %2944 = vmatmul.f32.gmra.mxu0 %v351
    %v2945 = vpop.f32.mrf.mxu0
    %v2946 = vadd.f32 %v2881, %v2945
    %2947 = vmatmul.f32.gmra.mxu0 %v355
    %v2948 = vpop.f32.mrf.mxu0
    %v2949 = vadd.f32 %v2884, %v2948
    %2950 = vmatmul.f32.gmra.mxu0 %v359
    %v2951 = vpop.f32.mrf.mxu0
    %v2952 = vadd.f32 %v2887, %v2951
    %2953 = vmatmul.f32.gmra.mxu0 %v363
    %v2954 = vpop.f32.mrf.mxu0
    %v2955 = vadd.f32 %v2890, %v2954
    %2956 = vmatmul.f32.gmra.mxu0 %v367
    %v2957 = vpop.f32.mrf.mxu0
    %v2958 = vadd.f32 %v2893, %v2957
    %2959 = vdwg.mxu0
    %v2960 = vadd.f32 %v176, %v1093
    %v2961 = vadd.f32 %v177, %v1353
    %v2962 = vadd.f32 %v178, %v1613
    %v2963 = vadd.f32 %v179, %v1873
    %v2964 = vadd.f32 %v180, %v2133
    %v2965 = vadd.f32 %v181, %v2393
    %v2966 = vadd.f32 %v182, %v2653
    %v2967 = vadd.f32 %v183, %v2913
    %v2968 = vadd.f32 %v184, %v1096
    %v2969 = vadd.f32 %v185, %v1356
    %v2970 = vadd.f32 %v186, %v1616
    %v2971 = vadd.f32 %v187, %v1876
    %v2972 = vadd.f32 %v188, %v2136
    %v2973 = vadd.f32 %v189, %v2396
    %v2974 = vadd.f32 %v190, %v2656
    %v2975 = vadd.f32 %v191, %v2916
    %v2976 = vadd.f32 %v192, %v1099
    %v2977 = vadd.f32 %v193, %v1359
    %v2978 = vadd.f32 %v194, %v1619
    %v2979 = vadd.f32 %v195, %v1879
    %v2980 = vadd.f32 %v196, %v2139
    %v2981 = vadd.f32 %v197, %v2399
    %v2982 = vadd.f32 %v198, %v2659
    %v2983 = vadd.f32 %v199, %v2919
    %v2984 = vadd.f32 %v200, %v1102
    %v2985 = vadd.f32 %v201, %v1362
    %v2986 = vadd.f32 %v202, %v1622
    %v2987 = vadd.f32 %v203, %v1882
    %v2988 = vadd.f32 %v204, %v2142
    %v2989 = vadd.f32 %v205, %v2402
    %v2990 = vadd.f32 %v206, %v2662
    %v2991 = vadd.f32 %v207, %v2922
    %v2992 = vadd.f32 %v208, %v1105
    %v2993 = vadd.f32 %v209, %v1365
    %v2994 = vadd.f32 %v210, %v1625
    %v2995 = vadd.f32 %v211, %v1885
    %v2996 = vadd.f32 %v212, %v2145
    %v2997 = vadd.f32 %v213, %v2405
    %v2998 = vadd.f32 %v214, %v2665
    %v2999 = vadd.f32 %v215, %v2925
    %v3000 = vadd.f32 %v216, %v1108
    %v3001 = vadd.f32 %v217, %v1368
    %v3002 = vadd.f32 %v218, %v1628
    %v3003 = vadd.f32 %v219, %v1888
    %v3004 = vadd.f32 %v220, %v2148
    %v3005 = vadd.f32 %v221, %v2408
    %v3006 = vadd.f32 %v222, %v2668
    %v3007 = vadd.f32 %v223, %v2928
    %v3008 = vadd.f32 %v224, %v1111
    %v3009 = vadd.f32 %v225, %v1371
    %v3010 = vadd.f32 %v226, %v1631
    %v3011 = vadd.f32 %v227, %v1891
    %v3012 = vadd.f32 %v228, %v2151
    %v3013 = vadd.f32 %v229, %v2411
    %v3014 = vadd.f32 %v230, %v2671
    %v3015 = vadd.f32 %v231, %v2931
    %v3016 = vadd.f32 %v232, %v1114
    %v3017 = vadd.f32 %v233, %v1374
    %v3018 = vadd.f32 %v234, %v1634
    %v3019 = vadd.f32 %v235, %v1894
    %v3020 = vadd.f32 %v236, %v2154
    %v3021 = vadd.f32 %v237, %v2414
    %v3022 = vadd.f32 %v238, %v2674
    %v3023 = vadd.f32 %v239, %v2934
    %v3024 = vadd.f32 %v240, %v1117
    %v3025 = vadd.f32 %v241, %v1377
    %v3026 = vadd.f32 %v242, %v1637
    %v3027 = vadd.f32 %v243, %v1897
    %v3028 = vadd.f32 %v244, %v2157
    %v3029 = vadd.f32 %v245, %v2417
    %v3030 = vadd.f32 %v246, %v2677
    %v3031 = vadd.f32 %v247, %v2937
    %v3032 = vadd.f32 %v248, %v1120
    %v3033 = vadd.f32 %v249, %v1380
    %v3034 = vadd.f32 %v250, %v1640
    %v3035 = vadd.f32 %v251, %v1900
    %v3036 = vadd.f32 %v252, %v2160
    %v3037 = vadd.f32 %v253, %v2420
    %v3038 = vadd.f32 %v254, %v2680
    %v3039 = vadd.f32 %v255, %v2940
    %v3040 = vadd.f32 %v256, %v1123
    %v3041 = vadd.f32 %v257, %v1383
    %v3042 = vadd.f32 %v258, %v1643
    %v3043 = vadd.f32 %v259, %v1903
    %v3044 = vadd.f32 %v260, %v2163
    %v3045 = vadd.f32 %v261, %v2423
    %v3046 = vadd.f32 %v262, %v2683
    %v3047 = vadd.f32 %v263, %v2943
    %v3048 = vadd.f32 %v264, %v1126
    %v3049 = vadd.f32 %v265, %v1386
    %v3050 = vadd.f32 %v266, %v1646
    %v3051 = vadd.f32 %v267, %v1906
    %v3052 = vadd.f32 %v268, %v2166
    %v3053 = vadd.f32 %v269, %v2426
    %v3054 = vadd.f32 %v270, %v2686
    %v3055 = vadd.f32 %v271, %v2946
    %v3056 = vadd.f32 %v272, %v1129
    %v3057 = vadd.f32 %v273, %v1389
    %v3058 = vadd.f32 %v274, %v1649
    %v3059 = vadd.f32 %v275, %v1909
    %v3060 = vadd.f32 %v276, %v2169
    %v3061 = vadd.f32 %v277, %v2429
    %v3062 = vadd.f32 %v278, %v2689
    %v3063 = vadd.f32 %v279, %v2949
    %v3064 = vadd.f32 %v280, %v1132
    %v3065 = vadd.f32 %v281, %v1392
    %v3066 = vadd.f32 %v282, %v1652
    %v3067 = vadd.f32 %v283, %v1912
    %v3068 = vadd.f32 %v284, %v2172
    %v3069 = vadd.f32 %v285, %v2432
    %v3070 = vadd.f32 %v286, %v2692
    %v3071 = vadd.f32 %v287, %v2952
    %v3072 = vadd.f32 %v288, %v1135
    %v3073 = vadd.f32 %v289, %v1395
    %v3074 = vadd.f32 %v290, %v1655
    %v3075 = vadd.f32 %v291, %v1915
    %v3076 = vadd.f32 %v292, %v2175
    %v3077 = vadd.f32 %v293, %v2435
    %v3078 = vadd.f32 %v294, %v2695
    %v3079 = vadd.f32 %v295, %v2955
    %v3080 = vadd.f32 %v296, %v1138
    %v3081 = vadd.f32 %v297, %v1398
    %v3082 = vadd.f32 %v298, %v1658
    %v3083 = vadd.f32 %v299, %v1918
    %v3084 = vadd.f32 %v300, %v2178
    %v3085 = vadd.f32 %v301, %v2438
    %v3086 = vadd.f32 %v302, %v2698
    %v3087 = vadd.f32 %v303, %v2958
    %3088 = vst [vmem:[#allocation2] sm:$0xff] %v2960
    %3089 = vst [vmem:[#allocation2 + $0x8] sm:$0xff] %v2961
    %3090 = vst [vmem:[#allocation2 + $0x10] sm:$0xff] %v2962
    %3091 = vst [vmem:[#allocation2 + $0x18] sm:$0xff] %v2963
    %3092 = vst [vmem:[#allocation2 + $0x20] sm:$0xff] %v2964
    %3093 = vst [vmem:[#allocation2 + $0x28] sm:$0xff] %v2965
    %3094 = vst [vmem:[#allocation2 + $0x30] sm:$0xff] %v2966
    %3095 = vst [vmem:[#allocation2 + $0x38] sm:$0xff] %v2967
    %3096 = vst [vmem:[#allocation2 + $0x40] sm:$0xff] %v2968
    %3097 = vst [vmem:[#allocation2 + $0x48] sm:$0xff] %v2969
    %3098 = vst [vmem:[#allocation2 + $0x50] sm:$0xff] %v2970
    %3099 = vst [vmem:[#allocation2 + $0x58] sm:$0xff] %v2971
    %3100 = vst [vmem:[#allocation2 + $0x60] sm:$0xff] %v2972
    %3101 = vst [vmem:[#allocation2 + $0x68] sm:$0xff] %v2973
    %3102 = vst [vmem:[#allocation2 + $0x70] sm:$0xff] %v2974
    %3103 = vst [vmem:[#allocation2 + $0x78] sm:$0xff] %v2975
    %3104 = vst [vmem:[#allocation2 + $0x80] sm:$0xff] %v2976
    %3105 = vst [vmem:[#allocation2 + $0x88] sm:$0xff] %v2977
    %3106 = vst [vmem:[#allocation2 + $0x90] sm:$0xff] %v2978
    %3107 = vst [vmem:[#allocation2 + $0x98] sm:$0xff] %v2979
    %3108 = vst [vmem:[#allocation2 + $0xa0] sm:$0xff] %v2980
    %3109 = vst [vmem:[#allocation2 + $0xa8] sm:$0xff] %v2981
    %3110 = vst [vmem:[#allocation2 + $0xb0] sm:$0xff] %v2982
    %3111 = vst [vmem:[#allocation2 + $0xb8] sm:$0xff] %v2983
    %3112 = vst [vmem:[#allocation2 + $0xc0] sm:$0xff] %v2984
    %3113 = vst [vmem:[#allocation2 + $0xc8] sm:$0xff] %v2985
    %3114 = vst [vmem:[#allocation2 + $0xd0] sm:$0xff] %v2986
    %3115 = vst [vmem:[#allocation2 + $0xd8] sm:$0xff] %v2987
    %3116 = vst [vmem:[#allocation2 + $0xe0] sm:$0xff] %v2988
    %3117 = vst [vmem:[#allocation2 + $0xe8] sm:$0xff] %v2989
    %3118 = vst [vmem:[#allocation2 + $0xf0] sm:$0xff] %v2990
    %3119 = vst [vmem:[#allocation2 + $0xf8] sm:$0xff] %v2991
    %3120 = vst [vmem:[#allocation2 + $0x100] sm:$0xff] %v2992
    %3121 = vst [vmem:[#allocation2 + $0x108] sm:$0xff] %v2993
    %3122 = vst [vmem:[#allocation2 + $0x110] sm:$0xff] %v2994
    %3123 = vst [vmem:[#allocation2 + $0x118] sm:$0xff] %v2995
    %3124 = vst [vmem:[#allocation2 + $0x120] sm:$0xff] %v2996
    %3125 = vst [vmem:[#allocation2 + $0x128] sm:$0xff] %v2997
    %3126 = vst [vmem:[#allocation2 + $0x130] sm:$0xff] %v2998
    %3127 = vst [vmem:[#allocation2 + $0x138] sm:$0xff] %v2999
    %3128 = vst [vmem:[#allocation2 + $0x140] sm:$0xff] %v3000
    %3129 = vst [vmem:[#allocation2 + $0x148] sm:$0xff] %v3001
    %3130 = vst [vmem:[#allocation2 + $0x150] sm:$0xff] %v3002
    %3131 = vst [vmem:[#allocation2 + $0x158] sm:$0xff] %v3003
    %3132 = vst [vmem:[#allocation2 + $0x160] sm:$0xff] %v3004
    %3133 = vst [vmem:[#allocation2 + $0x168] sm:$0xff] %v3005
    %3134 = vst [vmem:[#allocation2 + $0x170] sm:$0xff] %v3006
    %3135 = vst [vmem:[#allocation2 + $0x178] sm:$0xff] %v3007
    %3136 = vst [vmem:[#allocation2 + $0x180] sm:$0xff] %v3008
    %3137 = vst [vmem:[#allocation2 + $0x188] sm:$0xff] %v3009
    %3138 = vst [vmem:[#allocation2 + $0x190] sm:$0xff] %v3010
    %3139 = vst [vmem:[#allocation2 + $0x198] sm:$0xff] %v3011
    %3140 = vst [vmem:[#allocation2 + $0x1a0] sm:$0xff] %v3012
    %3141 = vst [vmem:[#allocation2 + $0x1a8] sm:$0xff] %v3013
    %3142 = vst [vmem:[#allocation2 + $0x1b0] sm:$0xff] %v3014
    %3143 = vst [vmem:[#allocation2 + $0x1b8] sm:$0xff] %v3015
    %3144 = vst [vmem:[#allocation2 + $0x1c0] sm:$0xff] %v3016
    %3145 = vst [vmem:[#allocation2 + $0x1c8] sm:$0xff] %v3017
    %3146 = vst [vmem:[#allocation2 + $0x1d0] sm:$0xff] %v3018
    %3147 = vst [vmem:[#allocation2 + $0x1d8] sm:$0xff] %v3019
    %3148 = vst [vmem:[#allocation2 + $0x1e0] sm:$0xff] %v3020
    %3149 = vst [vmem:[#allocation2 + $0x1e8] sm:$0xff] %v3021
    %3150 = vst [vmem:[#allocation2 + $0x1f0] sm:$0xff] %v3022
    %3151 = vst [vmem:[#allocation2 + $0x1f8] sm:$0xff] %v3023
    %3152 = vst [vmem:[#allocation2 + $0x200] sm:$0xff] %v3024
    %3153 = vst [vmem:[#allocation2 + $0x208] sm:$0xff] %v3025
    %3154 = vst [vmem:[#allocation2 + $0x210] sm:$0xff] %v3026
    %3155 = vst [vmem:[#allocation2 + $0x218] sm:$0xff] %v3027
    %3156 = vst [vmem:[#allocation2 + $0x220] sm:$0xff] %v3028
    %3157 = vst [vmem:[#allocation2 + $0x228] sm:$0xff] %v3029
    %3158 = vst [vmem:[#allocation2 + $0x230] sm:$0xff] %v3030
    %3159 = vst [vmem:[#allocation2 + $0x238] sm:$0xff] %v3031
    %3160 = vst [vmem:[#allocation2 + $0x240] sm:$0xff] %v3032
    %3161 = vst [vmem:[#allocation2 + $0x248] sm:$0xff] %v3033
    %3162 = vst [vmem:[#allocation2 + $0x250] sm:$0xff] %v3034
    %3163 = vst [vmem:[#allocation2 + $0x258] sm:$0xff] %v3035
    %3164 = vst [vmem:[#allocation2 + $0x260] sm:$0xff] %v3036
    %3165 = vst [vmem:[#allocation2 + $0x268] sm:$0xff] %v3037
    %3166 = vst [vmem:[#allocation2 + $0x270] sm:$0xff] %v3038
    %3167 = vst [vmem:[#allocation2 + $0x278] sm:$0xff] %v3039
    %3168 = vst [vmem:[#allocation2 + $0x280] sm:$0xff] %v3040
    %3169 = vst [vmem:[#allocation2 + $0x288] sm:$0xff] %v3041
    %3170 = vst [vmem:[#allocation2 + $0x290] sm:$0xff] %v3042
    %3171 = vst [vmem:[#allocation2 + $0x298] sm:$0xff] %v3043
    %3172 = vst [vmem:[#allocation2 + $0x2a0] sm:$0xff] %v3044
    %3173 = vst [vmem:[#allocation2 + $0x2a8] sm:$0xff] %v3045
    %3174 = vst [vmem:[#allocation2 + $0x2b0] sm:$0xff] %v3046
    %3175 = vst [vmem:[#allocation2 + $0x2b8] sm:$0xff] %v3047
    %3176 = vst [vmem:[#allocation2 + $0x2c0] sm:$0xff] %v3048
    %3177 = vst [vmem:[#allocation2 + $0x2c8] sm:$0xff] %v3049
    %3178 = vst [vmem:[#allocation2 + $0x2d0] sm:$0xff] %v3050
    %3179 = vst [vmem:[#allocation2 + $0x2d8] sm:$0xff] %v3051
    %3180 = vst [vmem:[#allocation2 + $0x2e0] sm:$0xff] %v3052
    %3181 = vst [vmem:[#allocation2 + $0x2e8] sm:$0xff] %v3053
    %3182 = vst [vmem:[#allocation2 + $0x2f0] sm:$0xff] %v3054
    %3183 = vst [vmem:[#allocation2 + $0x2f8] sm:$0xff] %v3055
    %3184 = vst [vmem:[#allocation2 + $0x300] sm:$0xff] %v3056
    %3185 = vst [vmem:[#allocation2 + $0x308] sm:$0xff] %v3057
    %3186 = vst [vmem:[#allocation2 + $0x310] sm:$0xff] %v3058
    %3187 = vst [vmem:[#allocation2 + $0x318] sm:$0xff] %v3059
    %3188 = vst [vmem:[#allocation2 + $0x320] sm:$0xff] %v3060
    %3189 = vst [vmem:[#allocation2 + $0x328] sm:$0xff] %v3061
    %3190 = vst [vmem:[#allocation2 + $0x330] sm:$0xff] %v3062
    %3191 = vst [vmem:[#allocation2 + $0x338] sm:$0xff] %v3063
    %3192 = vst [vmem:[#allocation2 + $0x340] sm:$0xff] %v3064
    %3193 = vst [vmem:[#allocation2 + $0x348] sm:$0xff] %v3065
    %3194 = vst [vmem:[#allocation2 + $0x350] sm:$0xff] %v3066
    %3195 = vst [vmem:[#allocation2 + $0x358] sm:$0xff] %v3067
    %3196 = vst [vmem:[#allocation2 + $0x360] sm:$0xff] %v3068
    %3197 = vst [vmem:[#allocation2 + $0x368] sm:$0xff] %v3069
    %3198 = vst [vmem:[#allocation2 + $0x370] sm:$0xff] %v3070
    %3199 = vst [vmem:[#allocation2 + $0x378] sm:$0xff] %v3071
    %3200 = vst [vmem:[#allocation2 + $0x380] sm:$0xff] %v3072
    %3201 = vst [vmem:[#allocation2 + $0x388] sm:$0xff] %v3073
    %3202 = vst [vmem:[#allocation2 + $0x390] sm:$0xff] %v3074
    %3203 = vst [vmem:[#allocation2 + $0x398] sm:$0xff] %v3075
    %3204 = vst [vmem:[#allocation2 + $0x3a0] sm:$0xff] %v3076
    %3205 = vst [vmem:[#allocation2 + $0x3a8] sm:$0xff] %v3077
    %3206 = vst [vmem:[#allocation2 + $0x3b0] sm:$0xff] %v3078
    %3207 = vst [vmem:[#allocation2 + $0x3b8] sm:$0xff] %v3079
    %3208 = vst [vmem:[#allocation2 + $0x3c0] sm:$0xff] %v3080
    %3209 = vst [vmem:[#allocation2 + $0x3c8] sm:$0xff] %v3081
    %3210 = vst [vmem:[#allocation2 + $0x3d0] sm:$0xff] %v3082
    %3211 = vst [vmem:[#allocation2 + $0x3d8] sm:$0xff] %v3083
    %3212 = vst [vmem:[#allocation2 + $0x3e0] sm:$0xff] %v3084
    %3213 = vst [vmem:[#allocation2 + $0x3e8] sm:$0xff] %v3085
    %3214 = vst [vmem:[#allocation2 + $0x3f0] sm:$0xff] %v3086
    %3215 = vst [vmem:[#allocation2 + $0x3f8] sm:$0xff] %v3087
    // Predicated region
    $region22: #{tpu_custom_call.1} parent=1 // pred_check
      %p3216 = pneg %p44
    $region23: #{tpu_custom_call.1} parent=1 // pred_check_branch
      %3218 = sbr.rel (%p3216) target = $region25
    $region24: #{tpu_custom_call.1} parent=1 // pred_region
      %v3219 = vld [vmem:[#allocation2] sm:$0xff]
      %v3220 = vld [vmem:[#allocation2 + $0x8] sm:$0xff]
      %v3221 = vld [vmem:[#allocation2 + $0x10] sm:$0xff]
      %v3222 = vld [vmem:[#allocation2 + $0x18] sm:$0xff]
      %v3223 = vld [vmem:[#allocation2 + $0x20] sm:$0xff]
      %v3224 = vld [vmem:[#allocation2 + $0x28] sm:$0xff]
      %v3225 = vld [vmem:[#allocation2 + $0x30] sm:$0xff]
      %v3226 = vld [vmem:[#allocation2 + $0x38] sm:$0xff]
      %v3227 = vld [vmem:[#allocation2 + $0x40] sm:$0xff]
      %v3228 = vld [vmem:[#allocation2 + $0x48] sm:$0xff]
      %v3229 = vld [vmem:[#allocation2 + $0x50] sm:$0xff]
      %v3230 = vld [vmem:[#allocation2 + $0x58] sm:$0xff]
      %v3231 = vld [vmem:[#allocation2 + $0x60] sm:$0xff]
      %v3232 = vld [vmem:[#allocation2 + $0x68] sm:$0xff]
      %v3233 = vld [vmem:[#allocation2 + $0x70] sm:$0xff]
      %v3234 = vld [vmem:[#allocation2 + $0x78] sm:$0xff]
      %v3235 = vld [vmem:[#allocation2 + $0x80] sm:$0xff]
      %v3236 = vld [vmem:[#allocation2 + $0x88] sm:$0xff]
      %v3237 = vld [vmem:[#allocation2 + $0x90] sm:$0xff]
      %v3238 = vld [vmem:[#allocation2 + $0x98] sm:$0xff]
      %v3239 = vld [vmem:[#allocation2 + $0xa0] sm:$0xff]
      %v3240 = vld [vmem:[#allocation2 + $0xa8] sm:$0xff]
      %v3241 = vld [vmem:[#allocation2 + $0xb0] sm:$0xff]
      %v3242 = vld [vmem:[#allocation2 + $0xb8] sm:$0xff]
      %v3243 = vld [vmem:[#allocation2 + $0xc0] sm:$0xff]
      %v3244 = vld [vmem:[#allocation2 + $0xc8] sm:$0xff]
      %v3245 = vld [vmem:[#allocation2 + $0xd0] sm:$0xff]
      %v3246 = vld [vmem:[#allocation2 + $0xd8] sm:$0xff]
      %v3247 = vld [vmem:[#allocation2 + $0xe0] sm:$0xff]
      %v3248 = vld [vmem:[#allocation2 + $0xe8] sm:$0xff]
      %v3249 = vld [vmem:[#allocation2 + $0xf0] sm:$0xff]
      %v3250 = vld [vmem:[#allocation2 + $0xf8] sm:$0xff]
      %v3251 = vld [vmem:[#allocation2 + $0x100] sm:$0xff]
      %v3252 = vld [vmem:[#allocation2 + $0x108] sm:$0xff]
      %v3253 = vld [vmem:[#allocation2 + $0x110] sm:$0xff]
      %v3254 = vld [vmem:[#allocation2 + $0x118] sm:$0xff]
      %v3255 = vld [vmem:[#allocation2 + $0x120] sm:$0xff]
      %v3256 = vld [vmem:[#allocation2 + $0x128] sm:$0xff]
      %v3257 = vld [vmem:[#allocation2 + $0x130] sm:$0xff]
      %v3258 = vld [vmem:[#allocation2 + $0x138] sm:$0xff]
      %v3259 = vld [vmem:[#allocation2 + $0x140] sm:$0xff]
      %v3260 = vld [vmem:[#allocation2 + $0x148] sm:$0xff]
      %v3261 = vld [vmem:[#allocation2 + $0x150] sm:$0xff]
      %v3262 = vld [vmem:[#allocation2 + $0x158] sm:$0xff]
      %v3263 = vld [vmem:[#allocation2 + $0x160] sm:$0xff]
      %v3264 = vld [vmem:[#allocation2 + $0x168] sm:$0xff]
      %v3265 = vld [vmem:[#allocation2 + $0x170] sm:$0xff]
      %v3266 = vld [vmem:[#allocation2 + $0x178] sm:$0xff]
      %v3267 = vld [vmem:[#allocation2 + $0x180] sm:$0xff]
      %v3268 = vld [vmem:[#allocation2 + $0x188] sm:$0xff]
      %v3269 = vld [vmem:[#allocation2 + $0x190] sm:$0xff]
      %v3270 = vld [vmem:[#allocation2 + $0x198] sm:$0xff]
      %v3271 = vld [vmem:[#allocation2 + $0x1a0] sm:$0xff]
      %v3272 = vld [vmem:[#allocation2 + $0x1a8] sm:$0xff]
      %v3273 = vld [vmem:[#allocation2 + $0x1b0] sm:$0xff]
      %v3274 = vld [vmem:[#allocation2 + $0x1b8] sm:$0xff]
      %v3275 = vld [vmem:[#allocation2 + $0x1c0] sm:$0xff]
      %v3276 = vld [vmem:[#allocation2 + $0x1c8] sm:$0xff]
      %v3277 = vld [vmem:[#allocation2 + $0x1d0] sm:$0xff]
      %v3278 = vld [vmem:[#allocation2 + $0x1d8] sm:$0xff]
      %v3279 = vld [vmem:[#allocation2 + $0x1e0] sm:$0xff]
      %v3280 = vld [vmem:[#allocation2 + $0x1e8] sm:$0xff]
      %v3281 = vld [vmem:[#allocation2 + $0x1f0] sm:$0xff]
      %v3282 = vld [vmem:[#allocation2 + $0x1f8] sm:$0xff]
      %v3283 = vld [vmem:[#allocation2 + $0x200] sm:$0xff]
      %v3284 = vld [vmem:[#allocation2 + $0x208] sm:$0xff]
      %v3285 = vld [vmem:[#allocation2 + $0x210] sm:$0xff]
      %v3286 = vld [vmem:[#allocation2 + $0x218] sm:$0xff]
      %v3287 = vld [vmem:[#allocation2 + $0x220] sm:$0xff]
      %v3288 = vld [vmem:[#allocation2 + $0x228] sm:$0xff]
      %v3289 = vld [vmem:[#allocation2 + $0x230] sm:$0xff]
      %v3290 = vld [vmem:[#allocation2 + $0x238] sm:$0xff]
      %v3291 = vld [vmem:[#allocation2 + $0x240] sm:$0xff]
      %v3292 = vld [vmem:[#allocation2 + $0x248] sm:$0xff]
      %v3293 = vld [vmem:[#allocation2 + $0x250] sm:$0xff]
      %v3294 = vld [vmem:[#allocation2 + $0x258] sm:$0xff]
      %v3295 = vld [vmem:[#allocation2 + $0x260] sm:$0xff]
      %v3296 = vld [vmem:[#allocation2 + $0x268] sm:$0xff]
      %v3297 = vld [vmem:[#allocation2 + $0x270] sm:$0xff]
      %v3298 = vld [vmem:[#allocation2 + $0x278] sm:$0xff]
      %v3299 = vld [vmem:[#allocation2 + $0x280] sm:$0xff]
      %v3300 = vld [vmem:[#allocation2 + $0x288] sm:$0xff]
      %v3301 = vld [vmem:[#allocation2 + $0x290] sm:$0xff]
      %v3302 = vld [vmem:[#allocation2 + $0x298] sm:$0xff]
      %v3303 = vld [vmem:[#allocation2 + $0x2a0] sm:$0xff]
      %v3304 = vld [vmem:[#allocation2 + $0x2a8] sm:$0xff]
      %v3305 = vld [vmem:[#allocation2 + $0x2b0] sm:$0xff]
      %v3306 = vld [vmem:[#allocation2 + $0x2b8] sm:$0xff]
      %v3307 = vld [vmem:[#allocation2 + $0x2c0] sm:$0xff]
      %v3308 = vld [vmem:[#allocation2 + $0x2c8] sm:$0xff]
      %v3309 = vld [vmem:[#allocation2 + $0x2d0] sm:$0xff]
      %v3310 = vld [vmem:[#allocation2 + $0x2d8] sm:$0xff]
      %v3311 = vld [vmem:[#allocation2 + $0x2e0] sm:$0xff]
      %v3312 = vld [vmem:[#allocation2 + $0x2e8] sm:$0xff]
      %v3313 = vld [vmem:[#allocation2 + $0x2f0] sm:$0xff]
      %v3314 = vld [vmem:[#allocation2 + $0x2f8] sm:$0xff]
      %v3315 = vld [vmem:[#allocation2 + $0x300] sm:$0xff]
      %v3316 = vld [vmem:[#allocation2 + $0x308] sm:$0xff]
      %v3317 = vld [vmem:[#allocation2 + $0x310] sm:$0xff]
      %v3318 = vld [vmem:[#allocation2 + $0x318] sm:$0xff]
      %v3319 = vld [vmem:[#allocation2 + $0x320] sm:$0xff]
      %v3320 = vld [vmem:[#allocation2 + $0x328] sm:$0xff]
      %v3321 = vld [vmem:[#allocation2 + $0x330] sm:$0xff]
      %v3322 = vld [vmem:[#allocation2 + $0x338] sm:$0xff]
      %v3323 = vld [vmem:[#allocation2 + $0x340] sm:$0xff]
      %v3324 = vld [vmem:[#allocation2 + $0x348] sm:$0xff]
      %v3325 = vld [vmem:[#allocation2 + $0x350] sm:$0xff]
      %v3326 = vld [vmem:[#allocation2 + $0x358] sm:$0xff]
      %v3327 = vld [vmem:[#allocation2 + $0x360] sm:$0xff]
      %v3328 = vld [vmem:[#allocation2 + $0x368] sm:$0xff]
      %v3329 = vld [vmem:[#allocation2 + $0x370] sm:$0xff]
      %v3330 = vld [vmem:[#allocation2 + $0x378] sm:$0xff]
      %v3331 = vld [vmem:[#allocation2 + $0x380] sm:$0xff]
      %v3332 = vld [vmem:[#allocation2 + $0x388] sm:$0xff]
      %v3333 = vld [vmem:[#allocation2 + $0x390] sm:$0xff]
      %v3334 = vld [vmem:[#allocation2 + $0x398] sm:$0xff]
      %v3335 = vld [vmem:[#allocation2 + $0x3a0] sm:$0xff]
      %v3336 = vld [vmem:[#allocation2 + $0x3a8] sm:$0xff]
      %v3337 = vld [vmem:[#allocation2 + $0x3b0] sm:$0xff]
      %v3338 = vld [vmem:[#allocation2 + $0x3b8] sm:$0xff]
      %v3339 = vld [vmem:[#allocation2 + $0x3c0] sm:$0xff]
      %v3340 = vld [vmem:[#allocation2 + $0x3c8] sm:$0xff]
      %v3341 = vld [vmem:[#allocation2 + $0x3d0] sm:$0xff]
      %v3342 = vld [vmem:[#allocation2 + $0x3d8] sm:$0xff]
      %v3343 = vld [vmem:[#allocation2 + $0x3e0] sm:$0xff]
      %v3344 = vld [vmem:[#allocation2 + $0x3e8] sm:$0xff]
      %v3345 = vld [vmem:[#allocation2 + $0x3f0] sm:$0xff]
      %v3346 = vld [vmem:[#allocation2 + $0x3f8] sm:$0xff]
      %3347 = vst [vmem:[#allocation8] sm:$0xff] %v3219
      %3348 = vst [vmem:[#allocation8 + $0x8] sm:$0xff] %v3220
      %3349 = vst [vmem:[#allocation8 + $0x10] sm:$0xff] %v3221
      %3350 = vst [vmem:[#allocation8 + $0x18] sm:$0xff] %v3222
      %3351 = vst [vmem:[#allocation8 + $0x20] sm:$0xff] %v3223
      %3352 = vst [vmem:[#allocation8 + $0x28] sm:$0xff] %v3224
      %3353 = vst [vmem:[#allocation8 + $0x30] sm:$0xff] %v3225
      %3354 = vst [vmem:[#allocation8 + $0x38] sm:$0xff] %v3226
      %3355 = vst [vmem:[#allocation8 + $0x40] sm:$0xff] %v3227
      %3356 = vst [vmem:[#allocation8 + $0x48] sm:$0xff] %v3228
      %3357 = vst [vmem:[#allocation8 + $0x50] sm:$0xff] %v3229
      %3358 = vst [vmem:[#allocation8 + $0x58] sm:$0xff] %v3230
      %3359 = vst [vmem:[#allocation8 + $0x60] sm:$0xff] %v3231
      %3360 = vst [vmem:[#allocation8 + $0x68] sm:$0xff] %v3232
      %3361 = vst [vmem:[#allocation8 + $0x70] sm:$0xff] %v3233
      %3362 = vst [vmem:[#allocation8 + $0x78] sm:$0xff] %v3234
      %3363 = vst [vmem:[#allocation8 + $0x80] sm:$0xff] %v3235
      %3364 = vst [vmem:[#allocation8 + $0x88] sm:$0xff] %v3236
      %3365 = vst [vmem:[#allocation8 + $0x90] sm:$0xff] %v3237
      %3366 = vst [vmem:[#allocation8 + $0x98] sm:$0xff] %v3238
      %3367 = vst [vmem:[#allocation8 + $0xa0] sm:$0xff] %v3239
      %3368 = vst [vmem:[#allocation8 + $0xa8] sm:$0xff] %v3240
      %3369 = vst [vmem:[#allocation8 + $0xb0] sm:$0xff] %v3241
      %3370 = vst [vmem:[#allocation8 + $0xb8] sm:$0xff] %v3242
      %3371 = vst [vmem:[#allocation8 + $0xc0] sm:$0xff] %v3243
      %3372 = vst [vmem:[#allocation8 + $0xc8] sm:$0xff] %v3244
      %3373 = vst [vmem:[#allocation8 + $0xd0] sm:$0xff] %v3245
      %3374 = vst [vmem:[#allocation8 + $0xd8] sm:$0xff] %v3246
      %3375 = vst [vmem:[#allocation8 + $0xe0] sm:$0xff] %v3247
      %3376 = vst [vmem:[#allocation8 + $0xe8] sm:$0xff] %v3248
      %3377 = vst [vmem:[#allocation8 + $0xf0] sm:$0xff] %v3249
      %3378 = vst [vmem:[#allocation8 + $0xf8] sm:$0xff] %v3250
      %3379 = vst [vmem:[#allocation8 + $0x100] sm:$0xff] %v3251
      %3380 = vst [vmem:[#allocation8 + $0x108] sm:$0xff] %v3252
      %3381 = vst [vmem:[#allocation8 + $0x110] sm:$0xff] %v3253
      %3382 = vst [vmem:[#allocation8 + $0x118] sm:$0xff] %v3254
      %3383 = vst [vmem:[#allocation8 + $0x120] sm:$0xff] %v3255
      %3384 = vst [vmem:[#allocation8 + $0x128] sm:$0xff] %v3256
      %3385 = vst [vmem:[#allocation8 + $0x130] sm:$0xff] %v3257
      %3386 = vst [vmem:[#allocation8 + $0x138] sm:$0xff] %v3258
      %3387 = vst [vmem:[#allocation8 + $0x140] sm:$0xff] %v3259
      %3388 = vst [vmem:[#allocation8 + $0x148] sm:$0xff] %v3260
      %3389 = vst [vmem:[#allocation8 + $0x150] sm:$0xff] %v3261
      %3390 = vst [vmem:[#allocation8 + $0x158] sm:$0xff] %v3262
      %3391 = vst [vmem:[#allocation8 + $0x160] sm:$0xff] %v3263
      %3392 = vst [vmem:[#allocation8 + $0x168] sm:$0xff] %v3264
      %3393 = vst [vmem:[#allocation8 + $0x170] sm:$0xff] %v3265
      %3394 = vst [vmem:[#allocation8 + $0x178] sm:$0xff] %v3266
      %3395 = vst [vmem:[#allocation8 + $0x180] sm:$0xff] %v3267
      %3396 = vst [vmem:[#allocation8 + $0x188] sm:$0xff] %v3268
      %3397 = vst [vmem:[#allocation8 + $0x190] sm:$0xff] %v3269
      %3398 = vst [vmem:[#allocation8 + $0x198] sm:$0xff] %v3270
      %3399 = vst [vmem:[#allocation8 + $0x1a0] sm:$0xff] %v3271
      %3400 = vst [vmem:[#allocation8 + $0x1a8] sm:$0xff] %v3272
      %3401 = vst [vmem:[#allocation8 + $0x1b0] sm:$0xff] %v3273
      %3402 = vst [vmem:[#allocation8 + $0x1b8] sm:$0xff] %v3274
      %3403 = vst [vmem:[#allocation8 + $0x1c0] sm:$0xff] %v3275
      %3404 = vst [vmem:[#allocation8 + $0x1c8] sm:$0xff] %v3276
      %3405 = vst [vmem:[#allocation8 + $0x1d0] sm:$0xff] %v3277
      %3406 = vst [vmem:[#allocation8 + $0x1d8] sm:$0xff] %v3278
      %3407 = vst [vmem:[#allocation8 + $0x1e0] sm:$0xff] %v3279
      %3408 = vst [vmem:[#allocation8 + $0x1e8] sm:$0xff] %v3280
      %3409 = vst [vmem:[#allocation8 + $0x1f0] sm:$0xff] %v3281
      %3410 = vst [vmem:[#allocation8 + $0x1f8] sm:$0xff] %v3282
      %3411 = vst [vmem:[#allocation8 + $0x200] sm:$0xff] %v3283
      %3412 = vst [vmem:[#allocation8 + $0x208] sm:$0xff] %v3284
      %3413 = vst [vmem:[#allocation8 + $0x210] sm:$0xff] %v3285
      %3414 = vst [vmem:[#allocation8 + $0x218] sm:$0xff] %v3286
      %3415 = vst [vmem:[#allocation8 + $0x220] sm:$0xff] %v3287
      %3416 = vst [vmem:[#allocation8 + $0x228] sm:$0xff] %v3288
      %3417 = vst [vmem:[#allocation8 + $0x230] sm:$0xff] %v3289
      %3418 = vst [vmem:[#allocation8 + $0x238] sm:$0xff] %v3290
      %3419 = vst [vmem:[#allocation8 + $0x240] sm:$0xff] %v3291
      %3420 = vst [vmem:[#allocation8 + $0x248] sm:$0xff] %v3292
      %3421 = vst [vmem:[#allocation8 + $0x250] sm:$0xff] %v3293
      %3422 = vst [vmem:[#allocation8 + $0x258] sm:$0xff] %v3294
      %3423 = vst [vmem:[#allocation8 + $0x260] sm:$0xff] %v3295
      %3424 = vst [vmem:[#allocation8 + $0x268] sm:$0xff] %v3296
      %3425 = vst [vmem:[#allocation8 + $0x270] sm:$0xff] %v3297
      %3426 = vst [vmem:[#allocation8 + $0x278] sm:$0xff] %v3298
      %3427 = vst [vmem:[#allocation8 + $0x280] sm:$0xff] %v3299
      %3428 = vst [vmem:[#allocation8 + $0x288] sm:$0xff] %v3300
      %3429 = vst [vmem:[#allocation8 + $0x290] sm:$0xff] %v3301
      %3430 = vst [vmem:[#allocation8 + $0x298] sm:$0xff] %v3302
      %3431 = vst [vmem:[#allocation8 + $0x2a0] sm:$0xff] %v3303
      %3432 = vst [vmem:[#allocation8 + $0x2a8] sm:$0xff] %v3304
      %3433 = vst [vmem:[#allocation8 + $0x2b0] sm:$0xff] %v3305
      %3434 = vst [vmem:[#allocation8 + $0x2b8] sm:$0xff] %v3306
      %3435 = vst [vmem:[#allocation8 + $0x2c0] sm:$0xff] %v3307
      %3436 = vst [vmem:[#allocation8 + $0x2c8] sm:$0xff] %v3308
      %3437 = vst [vmem:[#allocation8 + $0x2d0] sm:$0xff] %v3309
      %3438 = vst [vmem:[#allocation8 + $0x2d8] sm:$0xff] %v3310
      %3439 = vst [vmem:[#allocation8 + $0x2e0] sm:$0xff] %v3311
      %3440 = vst [vmem:[#allocation8 + $0x2e8] sm:$0xff] %v3312
      %3441 = vst [vmem:[#allocation8 + $0x2f0] sm:$0xff] %v3313
      %3442 = vst [vmem:[#allocation8 + $0x2f8] sm:$0xff] %v3314
      %3443 = vst [vmem:[#allocation8 + $0x300] sm:$0xff] %v3315
      %3444 = vst [vmem:[#allocation8 + $0x308] sm:$0xff] %v3316
      %3445 = vst [vmem:[#allocation8 + $0x310] sm:$0xff] %v3317
      %3446 = vst [vmem:[#allocation8 + $0x318] sm:$0xff] %v3318
      %3447 = vst [vmem:[#allocation8 + $0x320] sm:$0xff] %v3319
      %3448 = vst [vmem:[#allocation8 + $0x328] sm:$0xff] %v3320
      %3449 = vst [vmem:[#allocation8 + $0x330] sm:$0xff] %v3321
      %3450 = vst [vmem:[#allocation8 + $0x338] sm:$0xff] %v3322
      %3451 = vst [vmem:[#allocation8 + $0x340] sm:$0xff] %v3323
      %3452 = vst [vmem:[#allocation8 + $0x348] sm:$0xff] %v3324
      %3453 = vst [vmem:[#allocation8 + $0x350] sm:$0xff] %v3325
      %3454 = vst [vmem:[#allocation8 + $0x358] sm:$0xff] %v3326
      %3455 = vst [vmem:[#allocation8 + $0x360] sm:$0xff] %v3327
      %3456 = vst [vmem:[#allocation8 + $0x368] sm:$0xff] %v3328
      %3457 = vst [vmem:[#allocation8 + $0x370] sm:$0xff] %v3329
      %3458 = vst [vmem:[#allocation8 + $0x378] sm:$0xff] %v3330
      %3459 = vst [vmem:[#allocation8 + $0x380] sm:$0xff] %v3331
      %3460 = vst [vmem:[#allocation8 + $0x388] sm:$0xff] %v3332
      %3461 = vst [vmem:[#allocation8 + $0x390] sm:$0xff] %v3333
      %3462 = vst [vmem:[#allocation8 + $0x398] sm:$0xff] %v3334
      %3463 = vst [vmem:[#allocation8 + $0x3a0] sm:$0xff] %v3335
      %3464 = vst [vmem:[#allocation8 + $0x3a8] sm:$0xff] %v3336
      %3465 = vst [vmem:[#allocation8 + $0x3b0] sm:$0xff] %v3337
      %3466 = vst [vmem:[#allocation8 + $0x3b8] sm:$0xff] %v3338
      %3467 = vst [vmem:[#allocation8 + $0x3c0] sm:$0xff] %v3339
      %3468 = vst [vmem:[#allocation8 + $0x3c8] sm:$0xff] %v3340
      %3469 = vst [vmem:[#allocation8 + $0x3d0] sm:$0xff] %v3341
      %3470 = vst [vmem:[#allocation8 + $0x3d8] sm:$0xff] %v3342
      %3471 = vst [vmem:[#allocation8 + $0x3e0] sm:$0xff] %v3343
      %3472 = vst [vmem:[#allocation8 + $0x3e8] sm:$0xff] %v3344
      %3473 = vst [vmem:[#allocation8 + $0x3f0] sm:$0xff] %v3345
      %3474 = vst [vmem:[#allocation8 + $0x3f8] sm:$0xff] %v3346
    $region25: #{tpu_custom_call.1} parent=1 // pred_fallthru
      _
    // Predicated region
    $region26: #{tpu_custom_call.1} parent=1 // pred_check
      _
    $region27: #{tpu_custom_call.1} parent=1 // pred_check_branch
      %3476 = sbr.rel (0) target = $region29
    $region28: #{tpu_custom_call.1} parent=1 // pred_region
      %3478 = vsyncadd [#allocation5], 0
      %s3479 = sshll.u32 [#allocation8], 4
      %s3480 = int_to_ptr.vmem [resolvable:$true] %s3479
      %s3481 = sshll.u32 %s2, 4
      %s3482 = int_to_ptr.hbm [resolvable:$true] %s3481
      %3487 = dma.vmem_to_hbm [thread:$0]  %s3480, 16384, %s3482, [#allocation5], 1024, 1024, 64
    $region29: #{tpu_custom_call.1} parent=1 // pred_fallthru
      _
    // Predicated region
    $region30: #{tpu_custom_call.1} parent=1 // pred_check
      _
    $region31: #{tpu_custom_call.1} parent=1 // pred_check_branch
      %3489 = sbr.rel (0) target = $region33
    $region32: #{tpu_custom_call.1} parent=1 // pred_region
      %3491 = dma.done [#allocation5], 16384
    $region33: #{tpu_custom_call.1} parent=1 // pred_fallthru
      _
    %3492 = vsyncpa [#allocation4], 1
    %3493 = vsyncpa [#allocation7], 1
    %3494 = vsyncpa [#allocation5], 1

</llo_original>
